<compile_context>
chip_gen: v5e
topology: v5e:2x2
jax: 0.10.0
libtpu: 0.0.40
codegen_flags: <defaults>
</compile_context>

<pallas_src>
import functools
import math

import jax
import jax.numpy as jnp
from jax import lax
from jax.experimental import pallas as pl
from jax.experimental.pallas import tpu as pltpu


def _round_up(x, m):
  return (x + m - 1) // m * m


# ----------------------------------------------------------------------------
# Pallas kernel
# ----------------------------------------------------------------------------
def _seq2seq_lstm_kernel(
    x_ref,        # (S, Bblk, Ip)   encoder inputs (compute dtype)
    enc_wih_ref,  # (Ip, 4*Hp)      encoder W_ih^T (gate-padded)
    enc_whh_ref,  # (Hp, 4*Hp)      encoder W_hh^T
    enc_b_ref,    # (1, 4*Hp)       encoder b_ih + b_hh (f32)
    dec_w0_ref,   # (Hp, 4*Hp)      decoder step-0 weights (= dec W_hh^T)
    dec_b0_ref,   # (1, 4*Hp)       decoder step-0 bias (f32)
    dec_wf_ref,   # (Hp, 4*Hp)      folded feedback weights: lin_w@dec_wih+dec_whh
    dec_bf_ref,   # (1, 4*Hp)       folded feedback bias (f32)
    lin_w_ref,    # (Hp, Op)        output linear W^T
    lin_b_ref,    # (1, Op)         output linear bias (f32)
    out_ref,      # (T, Bblk, Op)
    xproj_scr,    # (S, Bblk, 4*Hp) hoisted encoder input projection
    hall_scr,     # (T, Bblk, Hp)   all decoder hidden states
    *,
    enc_unroll,
    dec_unroll,
    precision,
):
  S, Bblk, Ip = x_ref.shape
  T = out_ref.shape[0]
  Hp = enc_whh_ref.shape[0]
  G4 = enc_whh_ref.shape[1]          # 4 * Hp
  cdt = enc_whh_ref.dtype            # MXU operand dtype (f32 or bf16)

  def mm(a, b):
    return jnp.dot(a, b, preferred_element_type=jnp.float32,
                   precision=precision)

  def cell(gates, c):
    # PyTorch gate order [i, f, g, o]; each gate slab is 128-lane aligned.
    i = jax.nn.sigmoid(gates[:, 0 * Hp:1 * Hp])
    f = jax.nn.sigmoid(gates[:, 1 * Hp:2 * Hp])
    g = jnp.tanh(gates[:, 2 * Hp:3 * Hp])
    o = jax.nn.sigmoid(gates[:, 3 * Hp:4 * Hp])
    c_new = f * c + i * g
    h_new = o * jnp.tanh(c_new)
    return h_new, c_new

  # --- encoder input projection hoisted out of the recurrence: one MXU matmul
  # TODO(synk): for very long S on v7x (64 MiB VMEM), stream this projection in
  # time chunks (pltpu.emit_pipeline over S-chunks) instead of a full scratch.
  x2d = x_ref[...].reshape(S * Bblk, Ip)
  xproj = mm(x2d, enc_wih_ref[...]) + enc_b_ref[...]
  xproj_scr[...] = xproj.reshape(S, Bblk, G4).astype(xproj_scr.dtype)

  enc_whh = enc_whh_ref[...]

  def enc_body(t, carry):
    h, c = carry
    gates = xproj_scr[t].astype(jnp.float32) + mm(h.astype(cdt), enc_whh)
    return cell(gates, c)

  h0 = jnp.zeros((Bblk, Hp), jnp.float32)
  c0 = jnp.zeros((Bblk, Hp), jnp.float32)
  h, c = lax.fori_loop(0, S, enc_body, (h0, c0), unroll=enc_unroll)

  # --- decoder step 0: input is zeros -> gates = h @ dec_whh + dec_b
  gates0 = mm(h.astype(cdt), dec_w0_ref[...]) + dec_b0_ref[...]
  h, c = cell(gates0, c)
  hall_scr[0] = h.astype(hall_scr.dtype)

  # --- decoder steps 1..T-1: linear feedback folded -> a single dot per step
  dec_wf = dec_wf_ref[...]
  dec_bf = dec_bf_ref[...]

  def dec_body(t, carry):
    h, c = carry
    gates = mm(h.astype(cdt), dec_wf) + dec_bf
    h, c = cell(gates, c)
    hall_scr[t] = h.astype(hall_scr.dtype)
    return (h, c)

  _ = lax.fori_loop(1, T, dec_body, (h, c), unroll=dec_unroll)

  # --- output linear over ALL decoder hidden states: one lane-dense matmul
  hall = hall_scr[...].reshape(T * Bblk, Hp)
  y = mm(hall.astype(cdt), lin_w_ref[...]) + lin_b_ref[...]
  out_ref[...] = y.reshape(T, Bblk, out_ref.shape[2]).astype(out_ref.dtype)


# ----------------------------------------------------------------------------
# Wrapper: pad / pack / fold parameters, launch the kernel
# ----------------------------------------------------------------------------
def _pad_gates(w, hidden, hidden_p):
  """(rows, 4*hidden) -> (rows, 4*hidden_p), each gate padded to hidden_p."""
  rows = w.shape[0]
  w4 = w.reshape(rows, 4, hidden)
  w4 = jnp.pad(w4, ((0, 0), (0, 0), (0, hidden_p - hidden)))
  return w4.reshape(rows, 4 * hidden_p)


def _pad_rows(w, rows_p):
  return jnp.pad(w, ((0, rows_p - w.shape[0]), (0, 0)))


@functools.partial(
    jax.jit,
    static_argnames=("output_length", "weight_dtype", "num_batch_blocks",
                     "mxu_precision"))
def seq2seq_lstm_forward(inputs, params, output_length,
                         weight_dtype=jnp.float32,
                         num_batch_blocks=1,
                         mxu_precision=None):
  """inputs: (seq_len, batch, input_size) f32 -> (output_length, batch, output_size) f32.

  num_batch_blocks: 1 on v5e/v6e (single TensorCore -> grid is a serial loop),
  2 on v7x so each TensorCore runs one block of the "parallel" grid axis.
  """
  S, B, I = inputs.shape
  H = params["enc_whh_t"].shape[0]
  O = params["lin_w_t"].shape[1]
  T = output_length

  nb = max(1, int(num_batch_blocks))
  Hp = _round_up(H, 128)                        # lane-aligned gate slabs
  Ip = _round_up(I, 128)
  Op = _round_up(O, 128)                        # lane-dense output slab
  Bp = _round_up(B, 8 * nb)                     # sublane-dense batch blocks
  batch_block = Bp // nb

  f32 = jnp.float32

  # ---- pad + pack parameters (zero padding keeps padded state exactly 0) ---
  enc_wih = _pad_rows(_pad_gates(params["enc_wih_t"].astype(f32), H, Hp), Ip)
  enc_whh = _pad_rows(_pad_gates(params["enc_whh_t"].astype(f32), H, Hp), Hp)
  enc_b = _pad_gates(params["enc_b"].astype(f32), H, Hp)

  dec_wih = _pad_rows(_pad_gates(params["dec_wih_t"].astype(f32), H, Hp), Op)
  dec_whh = _pad_rows(_pad_gates(params["dec_whh_t"].astype(f32), H, Hp), Hp)
  dec_b = _pad_gates(params["dec_b"].astype(f32), H, Hp)

  lin_w = jnp.pad(params["lin_w_t"].astype(f32), ((0, Hp - H), (0, Op - O)))
  lin_b = jnp.pad(params["lin_b"].astype(f32), ((0, 0), (0, Op - O)))

  # Fold the decoder feedback (in_{t+1} = y_t = h_t @ lin_w + lin_b) into the
  # recurrence:  gates_{t+1} = h_t @ (lin_w @ dec_wih + dec_whh)
  #                            + (lin_b @ dec_wih + dec_b).
  # Step 0 uses a zero input, so gates_0 = h_enc @ dec_whh + dec_b.
  dec_w0 = dec_whh
  dec_b0 = dec_b
  dec_wf = lin_w @ dec_wih + dec_whh
  dec_bf = lin_b @ dec_wih + dec_b

  # ---- MXU operands in the compute dtype (bf16 halves weight traffic) ------
  x = jnp.pad(inputs.astype(f32),
              ((0, 0), (0, Bp - B), (0, Ip - I))).astype(weight_dtype)
  operands = (
      x,
      enc_wih.astype(weight_dtype), enc_whh.astype(weight_dtype), enc_b,
      dec_w0.astype(weight_dtype), dec_b0,
      dec_wf.astype(weight_dtype), dec_bf,
      lin_w.astype(weight_dtype), lin_b,
  )

  # Constant-index operands never re-DMA across the grid -> single buffer.
  def const_spec(a):
    try:
      return pl.BlockSpec(a.shape, lambda b: (0,) * a.ndim,
                          pipeline_mode=pl.Buffered(1))
    except TypeError:
      return pl.BlockSpec(a.shape, lambda b: (0,) * a.ndim)

  in_specs = [pl.BlockSpec((S, batch_block, Ip), lambda b: (0, b, 0))]
  in_specs += [const_spec(a) for a in operands[1:]]
  out_spec = pl.BlockSpec((T, batch_block, Op), lambda b: (0, b, 0))

  # Scratch dtype follows the MXU operand dtype (bf16 scratch in bf16 mode).
  scratch_dtype = jnp.float32 if weight_dtype == jnp.float32 else weight_dtype

  # ---- VMEM budget: estimate actual footprint, cap below physical capacity -
  est = S * batch_block * Ip * jnp.dtype(weight_dtype).itemsize * 2   # x (x2)
  est += T * batch_block * Op * 4 * 2                                 # out (x2)
  est += sum(int(math.prod(a.shape)) * a.dtype.itemsize
             for a in operands[1:])                                   # weights x1
  est += (S * batch_block * 4 * Hp
          + T * batch_block * Hp) * jnp.dtype(scratch_dtype).itemsize  # scratch
  try:
    vmem_cap = int(pltpu.get_tpu_info().vmem_capacity_bytes)
  except Exception:                                                   # pragma: no cover
    vmem_cap = 64 * 1024 * 1024
  vmem_limit = int(min(int(0.85 * vmem_cap),
                       max(32 * 1024 * 1024, int(1.5 * est) + (4 << 20))))

  # Full unroll only for short recurrences; partial (8) keeps code size /
  # live ranges bounded when S or T is large.
  enc_unroll = True if S <= 16 else 8
  dec_unroll = True if T <= 16 else 8

  kernel = functools.partial(
      _seq2seq_lstm_kernel,
      enc_unroll=enc_unroll, dec_unroll=dec_unroll, precision=mxu_precision)

  out_padded = pl.pallas_call(
      kernel,
      out_shape=jax.ShapeDtypeStruct((T, Bp, Op), jnp.float32),
      grid=(nb,),
      in_specs=in_specs,
      out_specs=out_spec,
      scratch_shapes=[
          pltpu.VMEM((S, batch_block, 4 * Hp), scratch_dtype),  # x-projection
          pltpu.VMEM((T, batch_block, Hp), scratch_dtype),      # decoder h's
      ],
      compiler_params=pltpu.CompilerParams(
          dimension_semantics=("parallel",),   # batch blocks -> v7x 2 TCs
          vmem_limit_bytes=vmem_limit,
      ),
  )(*operands)

  return out_padded[:, :B, :O]


# ----------------------------------------------------------------------------
# Pure-JAX reference mirroring the PyTorch forward (f32, sequential, unfused)
# ----------------------------------------------------------------------------
def seq2seq_lstm_reference(inputs, params, output_length):
  seq_len, batch, _ = inputs.shape
  hidden = params["enc_whh_t"].shape[0]
  out_size = params["lin_w_t"].shape[1]

  def cell(x_t, h, c, wih_t, whh_t, b):
    gates = x_t @ wih_t + h @ whh_t + b
    i = jax.nn.sigmoid(gates[:, :hidden])
    f = jax.nn.sigmoid(gates[:, hidden:2 * hidden])
    g = jnp.tanh(gates[:, 2 * hidden:3 * hidden])
    o = jax.nn.sigmoid(gates[:, 3 * hidden:])
    c = f * c + i * g
    h = o * jnp.tanh(c)
    return h, c

  h = jnp.zeros((batch, hidden), jnp.float32)
  c = jnp.zeros((batch, hidden), jnp.float32)
  for t in range(seq_len):
    h, c = cell(inputs[t], h, c, params["enc_wih_t"], params["enc_whh_t"],
                params["enc_b"])

  dec_in = jnp.zeros((batch, out_size), jnp.float32)
  outs = []
  for _ in range(output_length):
    h, c = cell(dec_in, h, c, params["dec_wih_t"], params["dec_whh_t"],
                params["dec_b"])
    y = h @ params["lin_w_t"] + params["lin_b"]
    outs.append(y)
    dec_in = y                      # decoder_input = decoder_output.detach()
  return jnp.stack(outs, axis=0)


# ----------------------------------------------------------------------------
# Deterministic parameter init (PyTorch-style uniform(-1/sqrt(H), 1/sqrt(H)))
# ----------------------------------------------------------------------------
def init_params(key, input_size, hidden_size, output_size):
  bound = 1.0 / float(hidden_size) ** 0.5
  ks = jax.random.split(key, 10)

  def u(k, shape):
    return jax.random.uniform(k, shape, jnp.float32, -bound, bound)

  return {
      # encoder LSTM (single layer), weights stored transposed
      "enc_wih_t": u(ks[0], (input_size, 4 * hidden_size)),
      "enc_whh_t": u(ks[1], (hidden_size, 4 * hidden_size)),
      "enc_b": u(ks[2], (1, 4 * hidden_size)) + u(ks[3], (1, 4 * hidden_size)),
      # decoder LSTM (single layer); its input is the fed-back linear output
      "dec_wih_t": u(ks[4], (output_size, 4 * hidden_size)),
      "dec_whh_t": u(ks[5], (hidden_size, 4 * hidden_size)),
      "dec_b": u(ks[6], (1, 4 * hidden_size)) + u(ks[7], (1, 4 * hidden_size)),
      # decoder linear
      "lin_w_t": u(ks[8], (hidden_size, output_size)),
      "lin_b": u(ks[9], (1, output_size)),
  }


if __name__ == "__main__":
  # TODO(synk): teacher-forcing path (target is not None) not implemented;
  # only the inference forward (target=None) is translated.
  seq_len = 8
  batch = 4
  input_size = 8
  output_size = 8       # must equal input_size (decoder feeds its output back)
  hidden_size = 32
  output_length = 6

  key = jax.random.PRNGKey(0)
  k_in, k_par = jax.random.split(key)
  inputs = jax.random.normal(k_in, (seq_len, batch, input_size), jnp.float32)
  params = init_params(k_par, input_size, hidden_size, output_size)

  ref = seq2seq_lstm_reference(inputs, params, output_length)

  # f32 weights, single batch block (default: whole batch, one recurrence).
  out_f32 = jax.block_until_ready(
      seq2seq_lstm_forward(inputs, params, output_length,
                           weight_dtype=jnp.float32))
  assert out_f32.shape == (output_length, batch, output_size)
  err32 = float(jnp.max(jnp.abs(out_f32 - ref)))
  assert err32 < 1e-4, f"f32 kernel mismatch: max abs diff = {err32}"

  # Two batch blocks (v7x-style megacore sharding path) — same numerics.
  out_2blk = jax.block_until_ready(
      seq2seq_lstm_forward(inputs, params, output_length,
                           weight_dtype=jnp.float32, num_batch_blocks=2))
  err2 = float(jnp.max(jnp.abs(out_2blk - ref)))
  assert err2 < 1e-4, f"2-block kernel mismatch: max abs diff = {err2}"

  # bf16 MXU operands (f32 accumulation / f32 state): loose tolerance.
  out_bf16 = jax.block_until_ready(
      seq2seq_lstm_forward(inputs, params, output_length,
                           weight_dtype=jnp.bfloat16))
  assert bool(jnp.all(jnp.isfinite(out_bf16)))
  err16 = float(jnp.max(jnp.abs(out_bf16 - ref)))
  assert err16 < 1e-1, f"bf16 kernel mismatch: max abs diff = {err16}"

  print("KERNEL_OK")
</pallas_src>

<mosaic_0001>
module attributes {stable_mosaic.version = 11 : i64} {
  func.func @_seq2seq_lstm_kernel(%arg0: i32, %arg1: memref<8x8x128xf32, #tpu.memory_space<vmem>>, %arg2: memref<128x512xf32, #tpu.memory_space<vmem>>, %arg3: memref<128x512xf32, #tpu.memory_space<vmem>>, %arg4: memref<1x512xf32, #tpu.memory_space<vmem>>, %arg5: memref<128x512xf32, #tpu.memory_space<vmem>>, %arg6: memref<1x512xf32, #tpu.memory_space<vmem>>, %arg7: memref<128x512xf32, #tpu.memory_space<vmem>>, %arg8: memref<1x512xf32, #tpu.memory_space<vmem>>, %arg9: memref<128x128xf32, #tpu.memory_space<vmem>>, %arg10: memref<1x128xf32, #tpu.memory_space<vmem>>, %arg11: memref<6x8x128xf32, #tpu.memory_space<vmem>>, %arg12: memref<8x8x512xf32, #tpu.memory_space<vmem>>, %arg13: memref<6x8x128xf32, #tpu.memory_space<vmem>>) attributes {dimension_semantics = [#tpu.dimension_semantics<parallel>], iteration_bounds = array<i64: 1>, scalar_prefetch = 0 : i64, scratch_operands = 2 : i64, tpu.core_type = #tpu.core_type<tc>, window_params = [{transform_indices = @transform_0, window_bounds = array<i64: 8, 8, 128>}, {pipeline_mode = #tpu.pipeline_mode<synchronous>, transform_indices = @transform_1, window_bounds = array<i64: 128, 512>}, {pipeline_mode = #tpu.pipeline_mode<synchronous>, transform_indices = @transform_2, window_bounds = array<i64: 128, 512>}, {pipeline_mode = #tpu.pipeline_mode<synchronous>, transform_indices = @transform_3, window_bounds = array<i64: 1, 512>}, {pipeline_mode = #tpu.pipeline_mode<synchronous>, transform_indices = @transform_4, window_bounds = array<i64: 128, 512>}, {pipeline_mode = #tpu.pipeline_mode<synchronous>, transform_indices = @transform_5, window_bounds = array<i64: 1, 512>}, {pipeline_mode = #tpu.pipeline_mode<synchronous>, transform_indices = @transform_6, window_bounds = array<i64: 128, 512>}, {pipeline_mode = #tpu.pipeline_mode<synchronous>, transform_indices = @transform_7, window_bounds = array<i64: 1, 512>}, {pipeline_mode = #tpu.pipeline_mode<synchronous>, transform_indices = @transform_8, window_bounds = array<i64: 128, 128>}, {pipeline_mode = #tpu.pipeline_mode<synchronous>, transform_indices = @transform_9, window_bounds = array<i64: 1, 128>}, {transform_indices = @transform_10, window_bounds = array<i64: 6, 8, 128>}]} {
    %c0 = arith.constant 0 : index
    %c0_0 = arith.constant 0 : index
    %c0_1 = arith.constant 0 : index
    %0 = vector.load %arg1[%c0, %c0_0, %c0_1] : memref<8x8x128xf32, #tpu.memory_space<vmem>>, vector<8x8x128xf32>
    %1 = vector.shape_cast %0 : vector<8x8x128xf32> to vector<64x128xf32>
    %c0_2 = arith.constant 0 : index
    %c0_3 = arith.constant 0 : index
    %2 = vector.load %arg2[%c0_2, %c0_3] : memref<128x512xf32, #tpu.memory_space<vmem>>, vector<128x512xf32>
    %cst = arith.constant dense<0.000000e+00> : vector<64x512xf32>
    %3 = tpu.matmul %1, %2, %cst {dimension_numbers = #tpu.dot_dimension_numbers<[1], [0], [0], [1], [0, 0, 1, 1], [], []>} : vector<64x128xf32>, vector<128x512xf32>, vector<64x512xf32> -> vector<64x512xf32>
    %c0_4 = arith.constant 0 : index
    %c0_5 = arith.constant 0 : index
    %4 = vector.load %arg4[%c0_4, %c0_5] : memref<1x512xf32, #tpu.memory_space<vmem>>, vector<1x512xf32>
    %5 = vector.broadcast %4 : vector<1x512xf32> to vector<64x512xf32>
    %6 = arith.addf %3, %5 : vector<64x512xf32>
    %7 = vector.shape_cast %6 : vector<64x512xf32> to vector<8x8x512xf32>
    %c0_6 = arith.constant 0 : index
    %c0_7 = arith.constant 0 : index
    %c0_8 = arith.constant 0 : index
    %8 = vector.load %arg12[%c0_6, %c0_7, %c0_8] : memref<8x8x512xf32, #tpu.memory_space<vmem>>, vector<8x8x512xf32>
    tpu.vector_store %arg12[%c0_6, %c0_7, %c0_8], %7 {strides = array<i32>} : memref<8x8x512xf32, #tpu.memory_space<vmem>>, vector<8x8x512xf32>,
    %c0_9 = arith.constant 0 : index
    %c0_10 = arith.constant 0 : index
    %9 = vector.load %arg3[%c0_9, %c0_10] : memref<128x512xf32, #tpu.memory_space<vmem>>, vector<128x512xf32>
    %cst_11 = arith.constant 0.000000e+00 : f32
    %10 = vector.broadcast %cst_11 : f32 to vector<8x128xf32>
    %cst_12 = arith.constant 0.000000e+00 : f32
    %11 = vector.broadcast %cst_12 : f32 to vector<8x128xf32>
    %c0_i32 = arith.constant 0 : i32
    %12 = arith.index_cast %c0_i32 : i32 to index
    %c0_13 = arith.constant 0 : index
    %c0_14 = arith.constant 0 : index
    %13 = vector.load %arg12[%12, %c0_13, %c0_14] : memref<8x8x512xf32, #tpu.memory_space<vmem>>, vector<1x8x512xf32>
    %14 = vector.shape_cast %13 : vector<1x8x512xf32> to vector<8x512xf32>
    %cst_15 = arith.constant dense<0.000000e+00> : vector<8x512xf32>
    %15 = tpu.matmul %10, %9, %cst_15 {dimension_numbers = #tpu.dot_dimension_numbers<[1], [0], [0], [1], [0, 0, 1, 1], [], []>} : vector<8x128xf32>, vector<128x512xf32>, vector<8x512xf32> -> vector<8x512xf32>
    %16 = arith.addf %14, %15 : vector<8x512xf32>
    %17 = vector.extract_strided_slice %16 {offsets = [0, 0], sizes = [8, 128], strides = [1, 1]} : vector<8x512xf32> to vector<8x128xf32>
    %18 = arith.negf %17 : vector<8x128xf32>
    %19 = math.exp %18 : vector<8x128xf32>
    %cst_16 = arith.constant 1.000000e+00 : f32
    %20 = vector.broadcast %cst_16 : f32 to vector<8x128xf32>
    %21 = arith.addf %20, %19 : vector<8x128xf32>
    %22 = arith.divf %20, %21 : vector<8x128xf32>
    %23 = vector.extract_strided_slice %16 {offsets = [0, 128], sizes = [8, 128], strides = [1, 1]} : vector<8x512xf32> to vector<8x128xf32>
    %24 = arith.negf %23 : vector<8x128xf32>
    %25 = math.exp %24 : vector<8x128xf32>
    %cst_17 = arith.constant 1.000000e+00 : f32
    %26 = vector.broadcast %cst_17 : f32 to vector<8x128xf32>
    %27 = arith.addf %26, %25 : vector<8x128xf32>
    %28 = arith.divf %26, %27 : vector<8x128xf32>
    %29 = vector.extract_strided_slice %16 {offsets = [0, 256], sizes = [8, 128], strides = [1, 1]} : vector<8x512xf32> to vector<8x128xf32>
    %30 = math.tanh %29 : vector<8x128xf32>
    %31 = vector.extract_strided_slice %16 {offsets = [0, 384], sizes = [8, 128], strides = [1, 1]} : vector<8x512xf32> to vector<8x128xf32>
    %32 = arith.negf %31 : vector<8x128xf32>
    %33 = math.exp %32 : vector<8x128xf32>
    %cst_18 = arith.constant 1.000000e+00 : f32
    %34 = vector.broadcast %cst_18 : f32 to vector<8x128xf32>
    %35 = arith.addf %34, %33 : vector<8x128xf32>
    %36 = arith.divf %34, %35 : vector<8x128xf32>
    %37 = arith.mulf %28, %11 : vector<8x128xf32>
    %38 = arith.mulf %22, %30 : vector<8x128xf32>
    %39 = arith.addf %37, %38 : vector<8x128xf32>
    %40 = math.tanh %39 : vector<8x128xf32>
    %41 = arith.mulf %36, %40 : vector<8x128xf32>
    %c1_i32 = arith.constant 1 : i32
    %42 = arith.index_cast %c1_i32 : i32 to index
    %c0_19 = arith.constant 0 : index
    %c0_20 = arith.constant 0 : index
    %43 = vector.load %arg12[%42, %c0_19, %c0_20] : memref<8x8x512xf32, #tpu.memory_space<vmem>>, vector<1x8x512xf32>
    %44 = vector.shape_cast %43 : vector<1x8x512xf32> to vector<8x512xf32>
    %cst_21 = arith.constant dense<0.000000e+00> : vector<8x512xf32>
    %45 = tpu.matmul %41, %9, %cst_21 {dimension_numbers = #tpu.dot_dimension_numbers<[1], [0], [0], [1], [0, 0, 1, 1], [], []>} : vector<8x128xf32>, vector<128x512xf32>, vector<8x512xf32> -> vector<8x512xf32>
    %46 = arith.addf %44, %45 : vector<8x512xf32>
    %47 = vector.extract_strided_slice %46 {offsets = [0, 0], sizes = [8, 128], strides = [1, 1]} : vector<8x512xf32> to vector<8x128xf32>
    %48 = arith.negf %47 : vector<8x128xf32>
    %49 = math.exp %48 : vector<8x128xf32>
    %cst_22 = arith.constant 1.000000e+00 : f32
    %50 = vector.broadcast %cst_22 : f32 to vector<8x128xf32>
    %51 = arith.addf %50, %49 : vector<8x128xf32>
    %52 = arith.divf %50, %51 : vector<8x128xf32>
    %53 = vector.extract_strided_slice %46 {offsets = [0, 128], sizes = [8, 128], strides = [1, 1]} : vector<8x512xf32> to vector<8x128xf32>
    %54 = arith.negf %53 : vector<8x128xf32>
    %55 = math.exp %54 : vector<8x128xf32>
    %cst_23 = arith.constant 1.000000e+00 : f32
    %56 = vector.broadcast %cst_23 : f32 to vector<8x128xf32>
    %57 = arith.addf %56, %55 : vector<8x128xf32>
    %58 = arith.divf %56, %57 : vector<8x128xf32>
    %59 = vector.extract_strided_slice %46 {offsets = [0, 256], sizes = [8, 128], strides = [1, 1]} : vector<8x512xf32> to vector<8x128xf32>
    %60 = math.tanh %59 : vector<8x128xf32>
    %61 = vector.extract_strided_slice %46 {offsets = [0, 384], sizes = [8, 128], strides = [1, 1]} : vector<8x512xf32> to vector<8x128xf32>
    %62 = arith.negf %61 : vector<8x128xf32>
    %63 = math.exp %62 : vector<8x128xf32>
    %cst_24 = arith.constant 1.000000e+00 : f32
    %64 = vector.broadcast %cst_24 : f32 to vector<8x128xf32>
    %65 = arith.addf %64, %63 : vector<8x128xf32>
    %66 = arith.divf %64, %65 : vector<8x128xf32>
    %67 = arith.mulf %58, %39 : vector<8x128xf32>
    %68 = arith.mulf %52, %60 : vector<8x128xf32>
    %69 = arith.addf %67, %68 : vector<8x128xf32>
    %70 = math.tanh %69 : vector<8x128xf32>
    %71 = arith.mulf %66, %70 : vector<8x128xf32>
    %c2_i32 = arith.constant 2 : i32
    %72 = arith.index_cast %c2_i32 : i32 to index
    %c0_25 = arith.constant 0 : index
    %c0_26 = arith.constant 0 : index
    %73 = vector.load %arg12[%72, %c0_25, %c0_26] : memref<8x8x512xf32, #tpu.memory_space<vmem>>, vector<1x8x512xf32>
    %74 = vector.shape_cast %73 : vector<1x8x512xf32> to vector<8x512xf32>
    %cst_27 = arith.constant dense<0.000000e+00> : vector<8x512xf32>
    %75 = tpu.matmul %71, %9, %cst_27 {dimension_numbers = #tpu.dot_dimension_numbers<[1], [0], [0], [1], [0, 0, 1, 1], [], []>} : vector<8x128xf32>, vector<128x512xf32>, vector<8x512xf32> -> vector<8x512xf32>
    %76 = arith.addf %74, %75 : vector<8x512xf32>
    %77 = vector.extract_strided_slice %76 {offsets = [0, 0], sizes = [8, 128], strides = [1, 1]} : vector<8x512xf32> to vector<8x128xf32>
    %78 = arith.negf %77 : vector<8x128xf32>
    %79 = math.exp %78 : vector<8x128xf32>
    %cst_28 = arith.constant 1.000000e+00 : f32
    %80 = vector.broadcast %cst_28 : f32 to vector<8x128xf32>
    %81 = arith.addf %80, %79 : vector<8x128xf32>
    %82 = arith.divf %80, %81 : vector<8x128xf32>
    %83 = vector.extract_strided_slice %76 {offsets = [0, 128], sizes = [8, 128], strides = [1, 1]} : vector<8x512xf32> to vector<8x128xf32>
    %84 = arith.negf %83 : vector<8x128xf32>
    %85 = math.exp %84 : vector<8x128xf32>
    %cst_29 = arith.constant 1.000000e+00 : f32
    %86 = vector.broadcast %cst_29 : f32 to vector<8x128xf32>
    %87 = arith.addf %86, %85 : vector<8x128xf32>
    %88 = arith.divf %86, %87 : vector<8x128xf32>
    %89 = vector.extract_strided_slice %76 {offsets = [0, 256], sizes = [8, 128], strides = [1, 1]} : vector<8x512xf32> to vector<8x128xf32>
    %90 = math.tanh %89 : vector<8x128xf32>
    %91 = vector.extract_strided_slice %76 {offsets = [0, 384], sizes = [8, 128], strides = [1, 1]} : vector<8x512xf32> to vector<8x128xf32>
    %92 = arith.negf %91 : vector<8x128xf32>
    %93 = math.exp %92 : vector<8x128xf32>
    %cst_30 = arith.constant 1.000000e+00 : f32
    %94 = vector.broadcast %cst_30 : f32 to vector<8x128xf32>
    %95 = arith.addf %94, %93 : vector<8x128xf32>
    %96 = arith.divf %94, %95 : vector<8x128xf32>
    %97 = arith.mulf %88, %69 : vector<8x128xf32>
    %98 = arith.mulf %82, %90 : vector<8x128xf32>
    %99 = arith.addf %97, %98 : vector<8x128xf32>
    %100 = math.tanh %99 : vector<8x128xf32>
    %101 = arith.mulf %96, %100 : vector<8x128xf32>
    %c3_i32 = arith.constant 3 : i32
    %102 = arith.index_cast %c3_i32 : i32 to index
    %c0_31 = arith.constant 0 : index
    %c0_32 = arith.constant 0 : index
    %103 = vector.load %arg12[%102, %c0_31, %c0_32] : memref<8x8x512xf32, #tpu.memory_space<vmem>>, vector<1x8x512xf32>
    %104 = vector.shape_cast %103 : vector<1x8x512xf32> to vector<8x512xf32>
    %cst_33 = arith.constant dense<0.000000e+00> : vector<8x512xf32>
    %105 = tpu.matmul %101, %9, %cst_33 {dimension_numbers = #tpu.dot_dimension_numbers<[1], [0], [0], [1], [0, 0, 1, 1], [], []>} : vector<8x128xf32>, vector<128x512xf32>, vector<8x512xf32> -> vector<8x512xf32>
    %106 = arith.addf %104, %105 : vector<8x512xf32>
    %107 = vector.extract_strided_slice %106 {offsets = [0, 0], sizes = [8, 128], strides = [1, 1]} : vector<8x512xf32> to vector<8x128xf32>
    %108 = arith.negf %107 : vector<8x128xf32>
    %109 = math.exp %108 : vector<8x128xf32>
    %cst_34 = arith.constant 1.000000e+00 : f32
    %110 = vector.broadcast %cst_34 : f32 to vector<8x128xf32>
    %111 = arith.addf %110, %109 : vector<8x128xf32>
    %112 = arith.divf %110, %111 : vector<8x128xf32>
    %113 = vector.extract_strided_slice %106 {offsets = [0, 128], sizes = [8, 128], strides = [1, 1]} : vector<8x512xf32> to vector<8x128xf32>
    %114 = arith.negf %113 : vector<8x128xf32>
    %115 = math.exp %114 : vector<8x128xf32>
    %cst_35 = arith.constant 1.000000e+00 : f32
    %116 = vector.broadcast %cst_35 : f32 to vector<8x128xf32>
    %117 = arith.addf %116, %115 : vector<8x128xf32>
    %118 = arith.divf %116, %117 : vector<8x128xf32>
    %119 = vector.extract_strided_slice %106 {offsets = [0, 256], sizes = [8, 128], strides = [1, 1]} : vector<8x512xf32> to vector<8x128xf32>
    %120 = math.tanh %119 : vector<8x128xf32>
    %121 = vector.extract_strided_slice %106 {offsets = [0, 384], sizes = [8, 128], strides = [1, 1]} : vector<8x512xf32> to vector<8x128xf32>
    %122 = arith.negf %121 : vector<8x128xf32>
    %123 = math.exp %122 : vector<8x128xf32>
    %cst_36 = arith.constant 1.000000e+00 : f32
    %124 = vector.broadcast %cst_36 : f32 to vector<8x128xf32>
    %125 = arith.addf %124, %123 : vector<8x128xf32>
    %126 = arith.divf %124, %125 : vector<8x128xf32>
    %127 = arith.mulf %118, %99 : vector<8x128xf32>
    %128 = arith.mulf %112, %120 : vector<8x128xf32>
    %129 = arith.addf %127, %128 : vector<8x128xf32>
    %130 = math.tanh %129 : vector<8x128xf32>
    %131 = arith.mulf %126, %130 : vector<8x128xf32>
    %c4_i32 = arith.constant 4 : i32
    %132 = arith.index_cast %c4_i32 : i32 to index
    %c0_37 = arith.constant 0 : index
    %c0_38 = arith.constant 0 : index
    %133 = vector.load %arg12[%132, %c0_37, %c0_38] : memref<8x8x512xf32, #tpu.memory_space<vmem>>, vector<1x8x512xf32>
    %134 = vector.shape_cast %133 : vector<1x8x512xf32> to vector<8x512xf32>
    %cst_39 = arith.constant dense<0.000000e+00> : vector<8x512xf32>
    %135 = tpu.matmul %131, %9, %cst_39 {dimension_numbers = #tpu.dot_dimension_numbers<[1], [0], [0], [1], [0, 0, 1, 1], [], []>} : vector<8x128xf32>, vector<128x512xf32>, vector<8x512xf32> -> vector<8x512xf32>
    %136 = arith.addf %134, %135 : vector<8x512xf32>
    %137 = vector.extract_strided_slice %136 {offsets = [0, 0], sizes = [8, 128], strides = [1, 1]} : vector<8x512xf32> to vector<8x128xf32>
    %138 = arith.negf %137 : vector<8x128xf32>
    %139 = math.exp %138 : vector<8x128xf32>
    %cst_40 = arith.constant 1.000000e+00 : f32
    %140 = vector.broadcast %cst_40 : f32 to vector<8x128xf32>
    %141 = arith.addf %140, %139 : vector<8x128xf32>
    %142 = arith.divf %140, %141 : vector<8x128xf32>
    %143 = vector.extract_strided_slice %136 {offsets = [0, 128], sizes = [8, 128], strides = [1, 1]} : vector<8x512xf32> to vector<8x128xf32>
    %144 = arith.negf %143 : vector<8x128xf32>
    %145 = math.exp %144 : vector<8x128xf32>
    %cst_41 = arith.constant 1.000000e+00 : f32
    %146 = vector.broadcast %cst_41 : f32 to vector<8x128xf32>
    %147 = arith.addf %146, %145 : vector<8x128xf32>
    %148 = arith.divf %146, %147 : vector<8x128xf32>
    %149 = vector.extract_strided_slice %136 {offsets = [0, 256], sizes = [8, 128], strides = [1, 1]} : vector<8x512xf32> to vector<8x128xf32>
    %150 = math.tanh %149 : vector<8x128xf32>
    %151 = vector.extract_strided_slice %136 {offsets = [0, 384], sizes = [8, 128], strides = [1, 1]} : vector<8x512xf32> to vector<8x128xf32>
    %152 = arith.negf %151 : vector<8x128xf32>
    %153 = math.exp %152 : vector<8x128xf32>
    %cst_42 = arith.constant 1.000000e+00 : f32
    %154 = vector.broadcast %cst_42 : f32 to vector<8x128xf32>
    %155 = arith.addf %154, %153 : vector<8x128xf32>
    %156 = arith.divf %154, %155 : vector<8x128xf32>
    %157 = arith.mulf %148, %129 : vector<8x128xf32>
    %158 = arith.mulf %142, %150 : vector<8x128xf32>
    %159 = arith.addf %157, %158 : vector<8x128xf32>
    %160 = math.tanh %159 : vector<8x128xf32>
    %161 = arith.mulf %156, %160 : vector<8x128xf32>
    %c5_i32 = arith.constant 5 : i32
    %162 = arith.index_cast %c5_i32 : i32 to index
    %c0_43 = arith.constant 0 : index
    %c0_44 = arith.constant 0 : index
    %163 = vector.load %arg12[%162, %c0_43, %c0_44] : memref<8x8x512xf32, #tpu.memory_space<vmem>>, vector<1x8x512xf32>
    %164 = vector.shape_cast %163 : vector<1x8x512xf32> to vector<8x512xf32>
    %cst_45 = arith.constant dense<0.000000e+00> : vector<8x512xf32>
    %165 = tpu.matmul %161, %9, %cst_45 {dimension_numbers = #tpu.dot_dimension_numbers<[1], [0], [0], [1], [0, 0, 1, 1], [], []>} : vector<8x128xf32>, vector<128x512xf32>, vector<8x512xf32> -> vector<8x512xf32>
    %166 = arith.addf %164, %165 : vector<8x512xf32>
    %167 = vector.extract_strided_slice %166 {offsets = [0, 0], sizes = [8, 128], strides = [1, 1]} : vector<8x512xf32> to vector<8x128xf32>
    %168 = arith.negf %167 : vector<8x128xf32>
    %169 = math.exp %168 : vector<8x128xf32>
    %cst_46 = arith.constant 1.000000e+00 : f32
    %170 = vector.broadcast %cst_46 : f32 to vector<8x128xf32>
    %171 = arith.addf %170, %169 : vector<8x128xf32>
    %172 = arith.divf %170, %171 : vector<8x128xf32>
    %173 = vector.extract_strided_slice %166 {offsets = [0, 128], sizes = [8, 128], strides = [1, 1]} : vector<8x512xf32> to vector<8x128xf32>
    %174 = arith.negf %173 : vector<8x128xf32>
    %175 = math.exp %174 : vector<8x128xf32>
    %cst_47 = arith.constant 1.000000e+00 : f32
    %176 = vector.broadcast %cst_47 : f32 to vector<8x128xf32>
    %177 = arith.addf %176, %175 : vector<8x128xf32>
    %178 = arith.divf %176, %177 : vector<8x128xf32>
    %179 = vector.extract_strided_slice %166 {offsets = [0, 256], sizes = [8, 128], strides = [1, 1]} : vector<8x512xf32> to vector<8x128xf32>
    %180 = math.tanh %179 : vector<8x128xf32>
    %181 = vector.extract_strided_slice %166 {offsets = [0, 384], sizes = [8, 128], strides = [1, 1]} : vector<8x512xf32> to vector<8x128xf32>
    %182 = arith.negf %181 : vector<8x128xf32>
    %183 = math.exp %182 : vector<8x128xf32>
    %cst_48 = arith.constant 1.000000e+00 : f32
    %184 = vector.broadcast %cst_48 : f32 to vector<8x128xf32>
    %185 = arith.addf %184, %183 : vector<8x128xf32>
    %186 = arith.divf %184, %185 : vector<8x128xf32>
    %187 = arith.mulf %178, %159 : vector<8x128xf32>
    %188 = arith.mulf %172, %180 : vector<8x128xf32>
    %189 = arith.addf %187, %188 : vector<8x128xf32>
    %190 = math.tanh %189 : vector<8x128xf32>
    %191 = arith.mulf %186, %190 : vector<8x128xf32>
    %c6_i32 = arith.constant 6 : i32
    %192 = arith.index_cast %c6_i32 : i32 to index
    %c0_49 = arith.constant 0 : index
    %c0_50 = arith.constant 0 : index
    %193 = vector.load %arg12[%192, %c0_49, %c0_50] : memref<8x8x512xf32, #tpu.memory_space<vmem>>, vector<1x8x512xf32>
    %194 = vector.shape_cast %193 : vector<1x8x512xf32> to vector<8x512xf32>
    %cst_51 = arith.constant dense<0.000000e+00> : vector<8x512xf32>
    %195 = tpu.matmul %191, %9, %cst_51 {dimension_numbers = #tpu.dot_dimension_numbers<[1], [0], [0], [1], [0, 0, 1, 1], [], []>} : vector<8x128xf32>, vector<128x512xf32>, vector<8x512xf32> -> vector<8x512xf32>
    %196 = arith.addf %194, %195 : vector<8x512xf32>
    %197 = vector.extract_strided_slice %196 {offsets = [0, 0], sizes = [8, 128], strides = [1, 1]} : vector<8x512xf32> to vector<8x128xf32>
    %198 = arith.negf %197 : vector<8x128xf32>
    %199 = math.exp %198 : vector<8x128xf32>
    %cst_52 = arith.constant 1.000000e+00 : f32
    %200 = vector.broadcast %cst_52 : f32 to vector<8x128xf32>
    %201 = arith.addf %200, %199 : vector<8x128xf32>
    %202 = arith.divf %200, %201 : vector<8x128xf32>
    %203 = vector.extract_strided_slice %196 {offsets = [0, 128], sizes = [8, 128], strides = [1, 1]} : vector<8x512xf32> to vector<8x128xf32>
    %204 = arith.negf %203 : vector<8x128xf32>
    %205 = math.exp %204 : vector<8x128xf32>
    %cst_53 = arith.constant 1.000000e+00 : f32
    %206 = vector.broadcast %cst_53 : f32 to vector<8x128xf32>
    %207 = arith.addf %206, %205 : vector<8x128xf32>
    %208 = arith.divf %206, %207 : vector<8x128xf32>
    %209 = vector.extract_strided_slice %196 {offsets = [0, 256], sizes = [8, 128], strides = [1, 1]} : vector<8x512xf32> to vector<8x128xf32>
    %210 = math.tanh %209 : vector<8x128xf32>
    %211 = vector.extract_strided_slice %196 {offsets = [0, 384], sizes = [8, 128], strides = [1, 1]} : vector<8x512xf32> to vector<8x128xf32>
    %212 = arith.negf %211 : vector<8x128xf32>
    %213 = math.exp %212 : vector<8x128xf32>
    %cst_54 = arith.constant 1.000000e+00 : f32
    %214 = vector.broadcast %cst_54 : f32 to vector<8x128xf32>
    %215 = arith.addf %214, %213 : vector<8x128xf32>
    %216 = arith.divf %214, %215 : vector<8x128xf32>
    %217 = arith.mulf %208, %189 : vector<8x128xf32>
    %218 = arith.mulf %202, %210 : vector<8x128xf32>
    %219 = arith.addf %217, %218 : vector<8x128xf32>
    %220 = math.tanh %219 : vector<8x128xf32>
    %221 = arith.mulf %216, %220 : vector<8x128xf32>
    %c7_i32 = arith.constant 7 : i32
    %222 = arith.index_cast %c7_i32 : i32 to index
    %c0_55 = arith.constant 0 : index
    %c0_56 = arith.constant 0 : index
    %223 = vector.load %arg12[%222, %c0_55, %c0_56] : memref<8x8x512xf32, #tpu.memory_space<vmem>>, vector<1x8x512xf32>
    %224 = vector.shape_cast %223 : vector<1x8x512xf32> to vector<8x512xf32>
    %cst_57 = arith.constant dense<0.000000e+00> : vector<8x512xf32>
    %225 = tpu.matmul %221, %9, %cst_57 {dimension_numbers = #tpu.dot_dimension_numbers<[1], [0], [0], [1], [0, 0, 1, 1], [], []>} : vector<8x128xf32>, vector<128x512xf32>, vector<8x512xf32> -> vector<8x512xf32>
    %226 = arith.addf %224, %225 : vector<8x512xf32>
    %227 = vector.extract_strided_slice %226 {offsets = [0, 0], sizes = [8, 128], strides = [1, 1]} : vector<8x512xf32> to vector<8x128xf32>
    %228 = arith.negf %227 : vector<8x128xf32>
    %229 = math.exp %228 : vector<8x128xf32>
    %cst_58 = arith.constant 1.000000e+00 : f32
    %230 = vector.broadcast %cst_58 : f32 to vector<8x128xf32>
    %231 = arith.addf %230, %229 : vector<8x128xf32>
    %232 = arith.divf %230, %231 : vector<8x128xf32>
    %233 = vector.extract_strided_slice %226 {offsets = [0, 128], sizes = [8, 128], strides = [1, 1]} : vector<8x512xf32> to vector<8x128xf32>
    %234 = arith.negf %233 : vector<8x128xf32>
    %235 = math.exp %234 : vector<8x128xf32>
    %cst_59 = arith.constant 1.000000e+00 : f32
    %236 = vector.broadcast %cst_59 : f32 to vector<8x128xf32>
    %237 = arith.addf %236, %235 : vector<8x128xf32>
    %238 = arith.divf %236, %237 : vector<8x128xf32>
    %239 = vector.extract_strided_slice %226 {offsets = [0, 256], sizes = [8, 128], strides = [1, 1]} : vector<8x512xf32> to vector<8x128xf32>
    %240 = math.tanh %239 : vector<8x128xf32>
    %241 = vector.extract_strided_slice %226 {offsets = [0, 384], sizes = [8, 128], strides = [1, 1]} : vector<8x512xf32> to vector<8x128xf32>
    %242 = arith.negf %241 : vector<8x128xf32>
    %243 = math.exp %242 : vector<8x128xf32>
    %cst_60 = arith.constant 1.000000e+00 : f32
    %244 = vector.broadcast %cst_60 : f32 to vector<8x128xf32>
    %245 = arith.addf %244, %243 : vector<8x128xf32>
    %246 = arith.divf %244, %245 : vector<8x128xf32>
    %247 = arith.mulf %238, %219 : vector<8x128xf32>
    %248 = arith.mulf %232, %240 : vector<8x128xf32>
    %249 = arith.addf %247, %248 : vector<8x128xf32>
    %250 = math.tanh %249 : vector<8x128xf32>
    %251 = arith.mulf %246, %250 : vector<8x128xf32>
    %c8_i32 = arith.constant 8 : i32
    %c0_61 = arith.constant 0 : index
    %c0_62 = arith.constant 0 : index
    %252 = vector.load %arg5[%c0_61, %c0_62] : memref<128x512xf32, #tpu.memory_space<vmem>>, vector<128x512xf32>
    %cst_63 = arith.constant dense<0.000000e+00> : vector<8x512xf32>
    %253 = tpu.matmul %251, %252, %cst_63 {dimension_numbers = #tpu.dot_dimension_numbers<[1], [0], [0], [1], [0, 0, 1, 1], [], []>} : vector<8x128xf32>, vector<128x512xf32>, vector<8x512xf32> -> vector<8x512xf32>
    %c0_64 = arith.constant 0 : index
    %c0_65 = arith.constant 0 : index
    %254 = vector.load %arg6[%c0_64, %c0_65] : memref<1x512xf32, #tpu.memory_space<vmem>>, vector<1x512xf32>
    %255 = vector.broadcast %254 : vector<1x512xf32> to vector<8x512xf32>
    %256 = arith.addf %253, %255 : vector<8x512xf32>
    %257 = vector.extract_strided_slice %256 {offsets = [0, 0], sizes = [8, 128], strides = [1, 1]} : vector<8x512xf32> to vector<8x128xf32>
    %258 = arith.negf %257 : vector<8x128xf32>
    %259 = math.exp %258 : vector<8x128xf32>
    %cst_66 = arith.constant 1.000000e+00 : f32
    %260 = vector.broadcast %cst_66 : f32 to vector<8x128xf32>
    %261 = arith.addf %260, %259 : vector<8x128xf32>
    %262 = arith.divf %260, %261 : vector<8x128xf32>
    %263 = vector.extract_strided_slice %256 {offsets = [0, 128], sizes = [8, 128], strides = [1, 1]} : vector<8x512xf32> to vector<8x128xf32>
    %264 = arith.negf %263 : vector<8x128xf32>
    %265 = math.exp %264 : vector<8x128xf32>
    %cst_67 = arith.constant 1.000000e+00 : f32
    %266 = vector.broadcast %cst_67 : f32 to vector<8x128xf32>
    %267 = arith.addf %266, %265 : vector<8x128xf32>
    %268 = arith.divf %266, %267 : vector<8x128xf32>
    %269 = vector.extract_strided_slice %256 {offsets = [0, 256], sizes = [8, 128], strides = [1, 1]} : vector<8x512xf32> to vector<8x128xf32>
    %270 = math.tanh %269 : vector<8x128xf32>
    %271 = vector.extract_strided_slice %256 {offsets = [0, 384], sizes = [8, 128], strides = [1, 1]} : vector<8x512xf32> to vector<8x128xf32>
    %272 = arith.negf %271 : vector<8x128xf32>
    %273 = math.exp %272 : vector<8x128xf32>
    %cst_68 = arith.constant 1.000000e+00 : f32
    %274 = vector.broadcast %cst_68 : f32 to vector<8x128xf32>
    %275 = arith.addf %274, %273 : vector<8x128xf32>
    %276 = arith.divf %274, %275 : vector<8x128xf32>
    %277 = arith.mulf %268, %249 : vector<8x128xf32>
    %278 = arith.mulf %262, %270 : vector<8x128xf32>
    %279 = arith.addf %277, %278 : vector<8x128xf32>
    %280 = math.tanh %279 : vector<8x128xf32>
    %281 = arith.mulf %276, %280 : vector<8x128xf32>
    %c0_69 = arith.constant 0 : index
    %c0_70 = arith.constant 0 : index
    %c0_71 = arith.constant 0 : index
    %282 = vector.load %arg13[%c0_69, %c0_70, %c0_71] : memref<6x8x128xf32, #tpu.memory_space<vmem>>, vector<1x8x128xf32>
    %283 = vector.shape_cast %282 : vector<1x8x128xf32> to vector<8x128xf32>
    %284 = vector.shape_cast %281 : vector<8x128xf32> to vector<1x8x128xf32>
    tpu.vector_store %arg13[%c0_69, %c0_70, %c0_71], %284 {strides = array<i32>} : memref<6x8x128xf32, #tpu.memory_space<vmem>>, vector<1x8x128xf32>,
    %c0_72 = arith.constant 0 : index
    %c0_73 = arith.constant 0 : index
    %285 = vector.load %arg7[%c0_72, %c0_73] : memref<128x512xf32, #tpu.memory_space<vmem>>, vector<128x512xf32>
    %c0_74 = arith.constant 0 : index
    %c0_75 = arith.constant 0 : index
    %286 = vector.load %arg8[%c0_74, %c0_75] : memref<1x512xf32, #tpu.memory_space<vmem>>, vector<1x512xf32>
    %c1_i32_76 = arith.constant 1 : i32
    %cst_77 = arith.constant dense<0.000000e+00> : vector<8x512xf32>
    %287 = tpu.matmul %281, %285, %cst_77 {dimension_numbers = #tpu.dot_dimension_numbers<[1], [0], [0], [1], [0, 0, 1, 1], [], []>} : vector<8x128xf32>, vector<128x512xf32>, vector<8x512xf32> -> vector<8x512xf32>
    %288 = vector.broadcast %286 : vector<1x512xf32> to vector<8x512xf32>
    %289 = arith.addf %287, %288 : vector<8x512xf32>
    %290 = vector.extract_strided_slice %289 {offsets = [0, 0], sizes = [8, 128], strides = [1, 1]} : vector<8x512xf32> to vector<8x128xf32>
    %291 = arith.negf %290 : vector<8x128xf32>
    %292 = math.exp %291 : vector<8x128xf32>
    %cst_78 = arith.constant 1.000000e+00 : f32
    %293 = vector.broadcast %cst_78 : f32 to vector<8x128xf32>
    %294 = arith.addf %293, %292 : vector<8x128xf32>
    %295 = arith.divf %293, %294 : vector<8x128xf32>
    %296 = vector.extract_strided_slice %289 {offsets = [0, 128], sizes = [8, 128], strides = [1, 1]} : vector<8x512xf32> to vector<8x128xf32>
    %297 = arith.negf %296 : vector<8x128xf32>
    %298 = math.exp %297 : vector<8x128xf32>
    %cst_79 = arith.constant 1.000000e+00 : f32
    %299 = vector.broadcast %cst_79 : f32 to vector<8x128xf32>
    %300 = arith.addf %299, %298 : vector<8x128xf32>
    %301 = arith.divf %299, %300 : vector<8x128xf32>
    %302 = vector.extract_strided_slice %289 {offsets = [0, 256], sizes = [8, 128], strides = [1, 1]} : vector<8x512xf32> to vector<8x128xf32>
    %303 = math.tanh %302 : vector<8x128xf32>
    %304 = vector.extract_strided_slice %289 {offsets = [0, 384], sizes = [8, 128], strides = [1, 1]} : vector<8x512xf32> to vector<8x128xf32>
    %305 = arith.negf %304 : vector<8x128xf32>
    %306 = math.exp %305 : vector<8x128xf32>
    %cst_80 = arith.constant 1.000000e+00 : f32
    %307 = vector.broadcast %cst_80 : f32 to vector<8x128xf32>
    %308 = arith.addf %307, %306 : vector<8x128xf32>
    %309 = arith.divf %307, %308 : vector<8x128xf32>
    %310 = arith.mulf %301, %279 : vector<8x128xf32>
    %311 = arith.mulf %295, %303 : vector<8x128xf32>
    %312 = arith.addf %310, %311 : vector<8x128xf32>
    %313 = math.tanh %312 : vector<8x128xf32>
    %314 = arith.mulf %309, %313 : vector<8x128xf32>
    %315 = arith.index_cast %c1_i32_76 : i32 to index
    %c0_81 = arith.constant 0 : index
    %c0_82 = arith.constant 0 : index
    %316 = vector.load %arg13[%315, %c0_81, %c0_82] : memref<6x8x128xf32, #tpu.memory_space<vmem>>, vector<1x8x128xf32>
    %317 = vector.shape_cast %316 : vector<1x8x128xf32> to vector<8x128xf32>
    %318 = vector.shape_cast %314 : vector<8x128xf32> to vector<1x8x128xf32>
    tpu.vector_store %arg13[%315, %c0_81, %c0_82], %318 {strides = array<i32>} : memref<6x8x128xf32, #tpu.memory_space<vmem>>, vector<1x8x128xf32>,
    %c2_i32_83 = arith.constant 2 : i32
    %cst_84 = arith.constant dense<0.000000e+00> : vector<8x512xf32>
    %319 = tpu.matmul %314, %285, %cst_84 {dimension_numbers = #tpu.dot_dimension_numbers<[1], [0], [0], [1], [0, 0, 1, 1], [], []>} : vector<8x128xf32>, vector<128x512xf32>, vector<8x512xf32> -> vector<8x512xf32>
    %320 = vector.broadcast %286 : vector<1x512xf32> to vector<8x512xf32>
    %321 = arith.addf %319, %320 : vector<8x512xf32>
    %322 = vector.extract_strided_slice %321 {offsets = [0, 0], sizes = [8, 128], strides = [1, 1]} : vector<8x512xf32> to vector<8x128xf32>
    %323 = arith.negf %322 : vector<8x128xf32>
    %324 = math.exp %323 : vector<8x128xf32>
    %cst_85 = arith.constant 1.000000e+00 : f32
    %325 = vector.broadcast %cst_85 : f32 to vector<8x128xf32>
    %326 = arith.addf %325, %324 : vector<8x128xf32>
    %327 = arith.divf %325, %326 : vector<8x128xf32>
    %328 = vector.extract_strided_slice %321 {offsets = [0, 128], sizes = [8, 128], strides = [1, 1]} : vector<8x512xf32> to vector<8x128xf32>
    %329 = arith.negf %328 : vector<8x128xf32>
    %330 = math.exp %329 : vector<8x128xf32>
    %cst_86 = arith.constant 1.000000e+00 : f32
    %331 = vector.broadcast %cst_86 : f32 to vector<8x128xf32>
    %332 = arith.addf %331, %330 : vector<8x128xf32>
    %333 = arith.divf %331, %332 : vector<8x128xf32>
    %334 = vector.extract_strided_slice %321 {offsets = [0, 256], sizes = [8, 128], strides = [1, 1]} : vector<8x512xf32> to vector<8x128xf32>
    %335 = math.tanh %334 : vector<8x128xf32>
    %336 = vector.extract_strided_slice %321 {offsets = [0, 384], sizes = [8, 128], strides = [1, 1]} : vector<8x512xf32> to vector<8x128xf32>
    %337 = arith.negf %336 : vector<8x128xf32>
    %338 = math.exp %337 : vector<8x128xf32>
    %cst_87 = arith.constant 1.000000e+00 : f32
    %339 = vector.broadcast %cst_87 : f32 to vector<8x128xf32>
    %340 = arith.addf %339, %338 : vector<8x128xf32>
    %341 = arith.divf %339, %340 : vector<8x128xf32>
    %342 = arith.mulf %333, %312 : vector<8x128xf32>
    %343 = arith.mulf %327, %335 : vector<8x128xf32>
    %344 = arith.addf %342, %343 : vector<8x128xf32>
    %345 = math.tanh %344 : vector<8x128xf32>
    %346 = arith.mulf %341, %345 : vector<8x128xf32>
    %347 = arith.index_cast %c2_i32_83 : i32 to index
    %c0_88 = arith.constant 0 : index
    %c0_89 = arith.constant 0 : index
    %348 = vector.load %arg13[%347, %c0_88, %c0_89] : memref<6x8x128xf32, #tpu.memory_space<vmem>>, vector<1x8x128xf32>
    %349 = vector.shape_cast %348 : vector<1x8x128xf32> to vector<8x128xf32>
    %350 = vector.shape_cast %346 : vector<8x128xf32> to vector<1x8x128xf32>
    tpu.vector_store %arg13[%347, %c0_88, %c0_89], %350 {strides = array<i32>} : memref<6x8x128xf32, #tpu.memory_space<vmem>>, vector<1x8x128xf32>,
    %c3_i32_90 = arith.constant 3 : i32
    %cst_91 = arith.constant dense<0.000000e+00> : vector<8x512xf32>
    %351 = tpu.matmul %346, %285, %cst_91 {dimension_numbers = #tpu.dot_dimension_numbers<[1], [0], [0], [1], [0, 0, 1, 1], [], []>} : vector<8x128xf32>, vector<128x512xf32>, vector<8x512xf32> -> vector<8x512xf32>
    %352 = vector.broadcast %286 : vector<1x512xf32> to vector<8x512xf32>
    %353 = arith.addf %351, %352 : vector<8x512xf32>
    %354 = vector.extract_strided_slice %353 {offsets = [0, 0], sizes = [8, 128], strides = [1, 1]} : vector<8x512xf32> to vector<8x128xf32>
    %355 = arith.negf %354 : vector<8x128xf32>
    %356 = math.exp %355 : vector<8x128xf32>
    %cst_92 = arith.constant 1.000000e+00 : f32
    %357 = vector.broadcast %cst_92 : f32 to vector<8x128xf32>
    %358 = arith.addf %357, %356 : vector<8x128xf32>
    %359 = arith.divf %357, %358 : vector<8x128xf32>
    %360 = vector.extract_strided_slice %353 {offsets = [0, 128], sizes = [8, 128], strides = [1, 1]} : vector<8x512xf32> to vector<8x128xf32>
    %361 = arith.negf %360 : vector<8x128xf32>
    %362 = math.exp %361 : vector<8x128xf32>
    %cst_93 = arith.constant 1.000000e+00 : f32
    %363 = vector.broadcast %cst_93 : f32 to vector<8x128xf32>
    %364 = arith.addf %363, %362 : vector<8x128xf32>
    %365 = arith.divf %363, %364 : vector<8x128xf32>
    %366 = vector.extract_strided_slice %353 {offsets = [0, 256], sizes = [8, 128], strides = [1, 1]} : vector<8x512xf32> to vector<8x128xf32>
    %367 = math.tanh %366 : vector<8x128xf32>
    %368 = vector.extract_strided_slice %353 {offsets = [0, 384], sizes = [8, 128], strides = [1, 1]} : vector<8x512xf32> to vector<8x128xf32>
    %369 = arith.negf %368 : vector<8x128xf32>
    %370 = math.exp %369 : vector<8x128xf32>
    %cst_94 = arith.constant 1.000000e+00 : f32
    %371 = vector.broadcast %cst_94 : f32 to vector<8x128xf32>
    %372 = arith.addf %371, %370 : vector<8x128xf32>
    %373 = arith.divf %371, %372 : vector<8x128xf32>
    %374 = arith.mulf %365, %344 : vector<8x128xf32>
    %375 = arith.mulf %359, %367 : vector<8x128xf32>
    %376 = arith.addf %374, %375 : vector<8x128xf32>
    %377 = math.tanh %376 : vector<8x128xf32>
    %378 = arith.mulf %373, %377 : vector<8x128xf32>
    %379 = arith.index_cast %c3_i32_90 : i32 to index
    %c0_95 = arith.constant 0 : index
    %c0_96 = arith.constant 0 : index
    %380 = vector.load %arg13[%379, %c0_95, %c0_96] : memref<6x8x128xf32, #tpu.memory_space<vmem>>, vector<1x8x128xf32>
    %381 = vector.shape_cast %380 : vector<1x8x128xf32> to vector<8x128xf32>
    %382 = vector.shape_cast %378 : vector<8x128xf32> to vector<1x8x128xf32>
    tpu.vector_store %arg13[%379, %c0_95, %c0_96], %382 {strides = array<i32>} : memref<6x8x128xf32, #tpu.memory_space<vmem>>, vector<1x8x128xf32>,
    %c4_i32_97 = arith.constant 4 : i32
    %cst_98 = arith.constant dense<0.000000e+00> : vector<8x512xf32>
    %383 = tpu.matmul %378, %285, %cst_98 {dimension_numbers = #tpu.dot_dimension_numbers<[1], [0], [0], [1], [0, 0, 1, 1], [], []>} : vector<8x128xf32>, vector<128x512xf32>, vector<8x512xf32> -> vector<8x512xf32>
    %384 = vector.broadcast %286 : vector<1x512xf32> to vector<8x512xf32>
    %385 = arith.addf %383, %384 : vector<8x512xf32>
    %386 = vector.extract_strided_slice %385 {offsets = [0, 0], sizes = [8, 128], strides = [1, 1]} : vector<8x512xf32> to vector<8x128xf32>
    %387 = arith.negf %386 : vector<8x128xf32>
    %388 = math.exp %387 : vector<8x128xf32>
    %cst_99 = arith.constant 1.000000e+00 : f32
    %389 = vector.broadcast %cst_99 : f32 to vector<8x128xf32>
    %390 = arith.addf %389, %388 : vector<8x128xf32>
    %391 = arith.divf %389, %390 : vector<8x128xf32>
    %392 = vector.extract_strided_slice %385 {offsets = [0, 128], sizes = [8, 128], strides = [1, 1]} : vector<8x512xf32> to vector<8x128xf32>
    %393 = arith.negf %392 : vector<8x128xf32>
    %394 = math.exp %393 : vector<8x128xf32>
    %cst_100 = arith.constant 1.000000e+00 : f32
    %395 = vector.broadcast %cst_100 : f32 to vector<8x128xf32>
    %396 = arith.addf %395, %394 : vector<8x128xf32>
    %397 = arith.divf %395, %396 : vector<8x128xf32>
    %398 = vector.extract_strided_slice %385 {offsets = [0, 256], sizes = [8, 128], strides = [1, 1]} : vector<8x512xf32> to vector<8x128xf32>
    %399 = math.tanh %398 : vector<8x128xf32>
    %400 = vector.extract_strided_slice %385 {offsets = [0, 384], sizes = [8, 128], strides = [1, 1]} : vector<8x512xf32> to vector<8x128xf32>
    %401 = arith.negf %400 : vector<8x128xf32>
    %402 = math.exp %401 : vector<8x128xf32>
    %cst_101 = arith.constant 1.000000e+00 : f32
    %403 = vector.broadcast %cst_101 : f32 to vector<8x128xf32>
    %404 = arith.addf %403, %402 : vector<8x128xf32>
    %405 = arith.divf %403, %404 : vector<8x128xf32>
    %406 = arith.mulf %397, %376 : vector<8x128xf32>
    %407 = arith.mulf %391, %399 : vector<8x128xf32>
    %408 = arith.addf %406, %407 : vector<8x128xf32>
    %409 = math.tanh %408 : vector<8x128xf32>
    %410 = arith.mulf %405, %409 : vector<8x128xf32>
    %411 = arith.index_cast %c4_i32_97 : i32 to index
    %c0_102 = arith.constant 0 : index
    %c0_103 = arith.constant 0 : index
    %412 = vector.load %arg13[%411, %c0_102, %c0_103] : memref<6x8x128xf32, #tpu.memory_space<vmem>>, vector<1x8x128xf32>
    %413 = vector.shape_cast %412 : vector<1x8x128xf32> to vector<8x128xf32>
    %414 = vector.shape_cast %410 : vector<8x128xf32> to vector<1x8x128xf32>
    tpu.vector_store %arg13[%411, %c0_102, %c0_103], %414 {strides = array<i32>} : memref<6x8x128xf32, #tpu.memory_space<vmem>>, vector<1x8x128xf32>,
    %c5_i32_104 = arith.constant 5 : i32
    %cst_105 = arith.constant dense<0.000000e+00> : vector<8x512xf32>
    %415 = tpu.matmul %410, %285, %cst_105 {dimension_numbers = #tpu.dot_dimension_numbers<[1], [0], [0], [1], [0, 0, 1, 1], [], []>} : vector<8x128xf32>, vector<128x512xf32>, vector<8x512xf32> -> vector<8x512xf32>
    %416 = vector.broadcast %286 : vector<1x512xf32> to vector<8x512xf32>
    %417 = arith.addf %415, %416 : vector<8x512xf32>
    %418 = vector.extract_strided_slice %417 {offsets = [0, 0], sizes = [8, 128], strides = [1, 1]} : vector<8x512xf32> to vector<8x128xf32>
    %419 = arith.negf %418 : vector<8x128xf32>
    %420 = math.exp %419 : vector<8x128xf32>
    %cst_106 = arith.constant 1.000000e+00 : f32
    %421 = vector.broadcast %cst_106 : f32 to vector<8x128xf32>
    %422 = arith.addf %421, %420 : vector<8x128xf32>
    %423 = arith.divf %421, %422 : vector<8x128xf32>
    %424 = vector.extract_strided_slice %417 {offsets = [0, 128], sizes = [8, 128], strides = [1, 1]} : vector<8x512xf32> to vector<8x128xf32>
    %425 = arith.negf %424 : vector<8x128xf32>
    %426 = math.exp %425 : vector<8x128xf32>
    %cst_107 = arith.constant 1.000000e+00 : f32
    %427 = vector.broadcast %cst_107 : f32 to vector<8x128xf32>
    %428 = arith.addf %427, %426 : vector<8x128xf32>
    %429 = arith.divf %427, %428 : vector<8x128xf32>
    %430 = vector.extract_strided_slice %417 {offsets = [0, 256], sizes = [8, 128], strides = [1, 1]} : vector<8x512xf32> to vector<8x128xf32>
    %431 = math.tanh %430 : vector<8x128xf32>
    %432 = vector.extract_strided_slice %417 {offsets = [0, 384], sizes = [8, 128], strides = [1, 1]} : vector<8x512xf32> to vector<8x128xf32>
    %433 = arith.negf %432 : vector<8x128xf32>
    %434 = math.exp %433 : vector<8x128xf32>
    %cst_108 = arith.constant 1.000000e+00 : f32
    %435 = vector.broadcast %cst_108 : f32 to vector<8x128xf32>
    %436 = arith.addf %435, %434 : vector<8x128xf32>
    %437 = arith.divf %435, %436 : vector<8x128xf32>
    %438 = arith.mulf %429, %408 : vector<8x128xf32>
    %439 = arith.mulf %423, %431 : vector<8x128xf32>
    %440 = arith.addf %438, %439 : vector<8x128xf32>
    %441 = math.tanh %440 : vector<8x128xf32>
    %442 = arith.mulf %437, %441 : vector<8x128xf32>
    %443 = arith.index_cast %c5_i32_104 : i32 to index
    %c0_109 = arith.constant 0 : index
    %c0_110 = arith.constant 0 : index
    %444 = vector.load %arg13[%443, %c0_109, %c0_110] : memref<6x8x128xf32, #tpu.memory_space<vmem>>, vector<1x8x128xf32>
    %445 = vector.shape_cast %444 : vector<1x8x128xf32> to vector<8x128xf32>
    %446 = vector.shape_cast %442 : vector<8x128xf32> to vector<1x8x128xf32>
    tpu.vector_store %arg13[%443, %c0_109, %c0_110], %446 {strides = array<i32>} : memref<6x8x128xf32, #tpu.memory_space<vmem>>, vector<1x8x128xf32>,
    %c5_i32_111 = arith.constant 5 : i32
    %c0_112 = arith.constant 0 : index
    %c0_113 = arith.constant 0 : index
    %c0_114 = arith.constant 0 : index
    %447 = vector.load %arg13[%c0_112, %c0_113, %c0_114] : memref<6x8x128xf32, #tpu.memory_space<vmem>>, vector<6x8x128xf32>
    %448 = vector.shape_cast %447 : vector<6x8x128xf32> to vector<48x128xf32>
    %c0_115 = arith.constant 0 : index
    %c0_116 = arith.constant 0 : index
    %449 = vector.load %arg9[%c0_115, %c0_116] : memref<128x128xf32, #tpu.memory_space<vmem>>, vector<128x128xf32>
    %cst_117 = arith.constant dense<0.000000e+00> : vector<48x128xf32>
    %450 = tpu.matmul %448, %449, %cst_117 {dimension_numbers = #tpu.dot_dimension_numbers<[1], [0], [0], [1], [0, 0, 1, 1], [], []>} : vector<48x128xf32>, vector<128x128xf32>, vector<48x128xf32> -> vector<48x128xf32>
    %c0_118 = arith.constant 0 : index
    %c0_119 = arith.constant 0 : index
    %451 = vector.load %arg10[%c0_118, %c0_119] : memref<1x128xf32, #tpu.memory_space<vmem>>, vector<1x128xf32>
    %452 = vector.broadcast %451 : vector<1x128xf32> to vector<48x128xf32>
    %453 = arith.addf %450, %452 : vector<48x128xf32>
    %454 = vector.shape_cast %453 : vector<48x128xf32> to vector<6x8x128xf32>
    %c0_120 = arith.constant 0 : index
    %c0_121 = arith.constant 0 : index
    %c0_122 = arith.constant 0 : index
    %455 = vector.load %arg11[%c0_120, %c0_121, %c0_122] : memref<6x8x128xf32, #tpu.memory_space<vmem>>, vector<6x8x128xf32>
    tpu.vector_store %arg11[%c0_120, %c0_121, %c0_122], %454 {strides = array<i32>} : memref<6x8x128xf32, #tpu.memory_space<vmem>>, vector<6x8x128xf32>,
    return
  }
  func.func @transform_0(%arg0: i32) -> (i32, i32, i32) {
    %c0_i32 = arith.constant 0 : i32
    %c0_i32_0 = arith.constant 0 : i32
    %c0_i32_1 = arith.constant 0 : i32
    return %c0_i32, %arg0, %c0_i32_0 : i32, i32, i32
  }
  func.func @transform_1(%arg0: i32) -> (i32, i32) {
    %c0_i32 = arith.constant 0 : i32
    %c0_i32_0 = arith.constant 0 : i32
    %c0_i32_1 = arith.constant 0 : i32
    return %c0_i32, %c0_i32_0 : i32, i32
  }
  func.func @transform_2(%arg0: i32) -> (i32, i32) {
    %c0_i32 = arith.constant 0 : i32
    %c0_i32_0 = arith.constant 0 : i32
    %c0_i32_1 = arith.constant 0 : i32
    return %c0_i32, %c0_i32_0 : i32, i32
  }
  func.func @transform_3(%arg0: i32) -> (i32, i32) {
    %c0_i32 = arith.constant 0 : i32
    %c0_i32_0 = arith.constant 0 : i32
    %c0_i32_1 = arith.constant 0 : i32
    return %c0_i32, %c0_i32_0 : i32, i32
  }
  func.func @transform_4(%arg0: i32) -> (i32, i32) {
    %c0_i32 = arith.constant 0 : i32
    %c0_i32_0 = arith.constant 0 : i32
    %c0_i32_1 = arith.constant 0 : i32
    return %c0_i32, %c0_i32_0 : i32, i32
  }
  func.func @transform_5(%arg0: i32) -> (i32, i32) {
    %c0_i32 = arith.constant 0 : i32
    %c0_i32_0 = arith.constant 0 : i32
    %c0_i32_1 = arith.constant 0 : i32
    return %c0_i32, %c0_i32_0 : i32, i32
  }
  func.func @transform_6(%arg0: i32) -> (i32, i32) {
    %c0_i32 = arith.constant 0 : i32
    %c0_i32_0 = arith.constant 0 : i32
    %c0_i32_1 = arith.constant 0 : i32
    return %c0_i32, %c0_i32_0 : i32, i32
  }
  func.func @transform_7(%arg0: i32) -> (i32, i32) {
    %c0_i32 = arith.constant 0 : i32
    %c0_i32_0 = arith.constant 0 : i32
    %c0_i32_1 = arith.constant 0 : i32
    return %c0_i32, %c0_i32_0 : i32, i32
  }
  func.func @transform_8(%arg0: i32) -> (i32, i32) {
    %c0_i32 = arith.constant 0 : i32
    %c0_i32_0 = arith.constant 0 : i32
    %c0_i32_1 = arith.constant 0 : i32
    return %c0_i32, %c0_i32_0 : i32, i32
  }
  func.func @transform_9(%arg0: i32) -> (i32, i32) {
    %c0_i32 = arith.constant 0 : i32
    %c0_i32_0 = arith.constant 0 : i32
    %c0_i32_1 = arith.constant 0 : i32
    return %c0_i32, %c0_i32_0 : i32, i32
  }
  func.func @transform_10(%arg0: i32) -> (i32, i32, i32) {
    %c0_i32 = arith.constant 0 : i32
    %c0_i32_0 = arith.constant 0 : i32
    %c0_i32_1 = arith.constant 0 : i32
    return %c0_i32, %arg0, %c0_i32_0 : i32, i32, i32
  }
}

</mosaic_0001>

<llo_original>
// kernel: seq2seq_lstm_forward.1
$region0: #{seq2seq_lstm_forward.1}
  #allocation0 [shape = 'u32[]', space=smem, size = 0x4, offset = 0x4, fixed_abs, tag = 'smem constant byte address 0x4 - core index']
  #allocation1 [shape = 'u32[72,128]{1,0:T(1,128)}', space=vmem, size = 0x9000, scoped, tag = 'internal scratch']
  #allocation2 [shape = 'f32[8,8,512]{2,1,0:T(8,128)}', space=vmem, size = 0x20000, scoped, tag = 'scratch operand']
  #allocation3 [shape = 'f32[6,8,128]{2,1,0:T(8,128)}', space=vmem, size = 0x6000, scoped, tag = 'scratch operand']
  %s0 = inlined_call_operand.vmem [shape: f32[8,8,128], index: 0, kind: input, shape index: {}]
  %s1 = inlined_call_operand.vmem [shape: f32[128,512], index: 1, kind: input, shape index: {}]
  %s2 = inlined_call_operand.vmem [shape: f32[128,512], index: 2, kind: input, shape index: {}]
  %s3 = inlined_call_operand.vmem [shape: f32[1,512], index: 3, kind: input, shape index: {}]
  %s4 = inlined_call_operand.vmem [shape: f32[128,512], index: 4, kind: input, shape index: {}]
  %s5 = inlined_call_operand.vmem [shape: f32[1,512], index: 5, kind: input, shape index: {}]
  %s6 = inlined_call_operand.vmem [shape: f32[128,512], index: 6, kind: input, shape index: {}]
  %s7 = inlined_call_operand.vmem [shape: f32[1,512], index: 7, kind: input, shape index: {}]
  %s8 = inlined_call_operand.vmem [shape: f32[128,128], index: 8, kind: input, shape index: {}]
  %s9 = inlined_call_operand.vmem [shape: f32[1,128], index: 9, kind: input, shape index: {}]
  %s10 = inlined_call_operand.vmem [shape: f32[6,8,128], index: 10, kind: output, shape index: {}]
  %s11 = sld [smem:[#allocation0]]
  $region50: #{seq2seq_lstm_forward.1} parent=0
    _
  %s13 = ssub.s32 1, %s11
  %s14 = scalar_select 0, %s13, %s11
  // Predicated region
  $region2: #{seq2seq_lstm_forward.1} parent=0 // pred_check
    _
  $region3: #{seq2seq_lstm_forward.1} parent=0 // pred_check_branch
    %16 = sbr.rel (0) target = $region5
  $region4: #{seq2seq_lstm_forward.1} parent=0 // pred_region
    _
  $region5: #{seq2seq_lstm_forward.1} parent=0 // pred_fallthru
    _
  // Predicated region
  $region6: #{seq2seq_lstm_forward.1} parent=0 // pred_check
    _
  $region7: #{seq2seq_lstm_forward.1} parent=0 // pred_check_branch
    %18 = sbr.rel (0) target = $region9
  $region8: #{seq2seq_lstm_forward.1} parent=0 // pred_region
    _
  $region9: #{seq2seq_lstm_forward.1} parent=0 // pred_fallthru
    _
  // Predicated region
  $region10: #{seq2seq_lstm_forward.1} parent=0 // pred_check
    _
  $region11: #{seq2seq_lstm_forward.1} parent=0 // pred_check_branch
    %20 = sbr.rel (0) target = $region13
  $region12: #{seq2seq_lstm_forward.1} parent=0 // pred_region
    _
  $region13: #{seq2seq_lstm_forward.1} parent=0 // pred_fallthru
    _
  // Predicated region
  $region14: #{seq2seq_lstm_forward.1} parent=0 // pred_check
    _
  $region15: #{seq2seq_lstm_forward.1} parent=0 // pred_check_branch
    %22 = sbr.rel (0) target = $region17
  $region16: #{seq2seq_lstm_forward.1} parent=0 // pred_region
    _
  $region17: #{seq2seq_lstm_forward.1} parent=0 // pred_fallthru
    _
  // Predicated region
  $region18: #{seq2seq_lstm_forward.1} parent=0 // pred_check
    _
  $region19: #{seq2seq_lstm_forward.1} parent=0 // pred_check_branch
    %24 = sbr.rel (0) target = $region21
  $region20: #{seq2seq_lstm_forward.1} parent=0 // pred_region
    _
  $region21: #{seq2seq_lstm_forward.1} parent=0 // pred_fallthru
    _
  // Predicated region
  $region22: #{seq2seq_lstm_forward.1} parent=0 // pred_check
    _
  $region23: #{seq2seq_lstm_forward.1} parent=0 // pred_check_branch
    %26 = sbr.rel (0) target = $region25
  $region24: #{seq2seq_lstm_forward.1} parent=0 // pred_region
    _
  $region25: #{seq2seq_lstm_forward.1} parent=0 // pred_fallthru
    _
  // Predicated region
  $region26: #{seq2seq_lstm_forward.1} parent=0 // pred_check
    _
  $region27: #{seq2seq_lstm_forward.1} parent=0 // pred_check_branch
    %28 = sbr.rel (0) target = $region29
  $region28: #{seq2seq_lstm_forward.1} parent=0 // pred_region
    _
  $region29: #{seq2seq_lstm_forward.1} parent=0 // pred_fallthru
    _
  // Predicated region
  $region30: #{seq2seq_lstm_forward.1} parent=0 // pred_check
    _
  $region31: #{seq2seq_lstm_forward.1} parent=0 // pred_check_branch
    %30 = sbr.rel (0) target = $region33
  $region32: #{seq2seq_lstm_forward.1} parent=0 // pred_region
    _
  $region33: #{seq2seq_lstm_forward.1} parent=0 // pred_fallthru
    _
  // Predicated region
  $region34: #{seq2seq_lstm_forward.1} parent=0 // pred_check
    _
  $region35: #{seq2seq_lstm_forward.1} parent=0 // pred_check_branch
    %32 = sbr.rel (0) target = $region37
  $region36: #{seq2seq_lstm_forward.1} parent=0 // pred_region
    _
  $region37: #{seq2seq_lstm_forward.1} parent=0 // pred_fallthru
    _
  // Predicated region
  $region38: #{seq2seq_lstm_forward.1} parent=0 // pred_check
    _
  $region39: #{seq2seq_lstm_forward.1} parent=0 // pred_check_branch
    %34 = sbr.rel (0) target = $region41
  $region40: #{seq2seq_lstm_forward.1} parent=0 // pred_region
    _
  $region41: #{seq2seq_lstm_forward.1} parent=0 // pred_fallthru
    _
  %v35 = vld [vmem:[%s0] sm:$0xff]
  %v36 = vld [vmem:[%s0 + $0x8] sm:$0xff]
  %v37 = vld [vmem:[%s0 + $0x10] sm:$0xff]
  %v38 = vld [vmem:[%s0 + $0x18] sm:$0xff]
  %v39 = vld [vmem:[%s0 + $0x20] sm:$0xff]
  %v40 = vld [vmem:[%s0 + $0x28] sm:$0xff]
  %v41 = vld [vmem:[%s0 + $0x30] sm:$0xff]
  %v42 = vld [vmem:[%s0 + $0x38] sm:$0xff]
  %v43 = vld [vmem:[%s1] sm:$0xff]
  %v44 = vld [vmem:[%s1 + $0x8] sm:$0xff]
  %v45 = vld [vmem:[%s1 + $0x10] sm:$0xff]
  %v46 = vld [vmem:[%s1 + $0x18] sm:$0xff]
  %v47 = vld [vmem:[%s1 + $0x20] sm:$0xff]
  %v48 = vld [vmem:[%s1 + $0x28] sm:$0xff]
  %v49 = vld [vmem:[%s1 + $0x30] sm:$0xff]
  %v50 = vld [vmem:[%s1 + $0x38] sm:$0xff]
  %v51 = vld [vmem:[%s1 + $0x40] sm:$0xff]
  %v52 = vld [vmem:[%s1 + $0x48] sm:$0xff]
  %v53 = vld [vmem:[%s1 + $0x50] sm:$0xff]
  %v54 = vld [vmem:[%s1 + $0x58] sm:$0xff]
  %v55 = vld [vmem:[%s1 + $0x60] sm:$0xff]
  %v56 = vld [vmem:[%s1 + $0x68] sm:$0xff]
  %v57 = vld [vmem:[%s1 + $0x70] sm:$0xff]
  %v58 = vld [vmem:[%s1 + $0x78] sm:$0xff]
  %v59 = vld [vmem:[%s1 + $0x80] sm:$0xff]
  %v60 = vld [vmem:[%s1 + $0x88] sm:$0xff]
  %v61 = vld [vmem:[%s1 + $0x90] sm:$0xff]
  %v62 = vld [vmem:[%s1 + $0x98] sm:$0xff]
  %v63 = vld [vmem:[%s1 + $0xa0] sm:$0xff]
  %v64 = vld [vmem:[%s1 + $0xa8] sm:$0xff]
  %v65 = vld [vmem:[%s1 + $0xb0] sm:$0xff]
  %v66 = vld [vmem:[%s1 + $0xb8] sm:$0xff]
  %v67 = vld [vmem:[%s1 + $0xc0] sm:$0xff]
  %v68 = vld [vmem:[%s1 + $0xc8] sm:$0xff]
  %v69 = vld [vmem:[%s1 + $0xd0] sm:$0xff]
  %v70 = vld [vmem:[%s1 + $0xd8] sm:$0xff]
  %v71 = vld [vmem:[%s1 + $0xe0] sm:$0xff]
  %v72 = vld [vmem:[%s1 + $0xe8] sm:$0xff]
  %v73 = vld [vmem:[%s1 + $0xf0] sm:$0xff]
  %v74 = vld [vmem:[%s1 + $0xf8] sm:$0xff]
  %v75 = vld [vmem:[%s1 + $0x100] sm:$0xff]
  %v76 = vld [vmem:[%s1 + $0x108] sm:$0xff]
  %v77 = vld [vmem:[%s1 + $0x110] sm:$0xff]
  %v78 = vld [vmem:[%s1 + $0x118] sm:$0xff]
  %v79 = vld [vmem:[%s1 + $0x120] sm:$0xff]
  %v80 = vld [vmem:[%s1 + $0x128] sm:$0xff]
  %v81 = vld [vmem:[%s1 + $0x130] sm:$0xff]
  %v82 = vld [vmem:[%s1 + $0x138] sm:$0xff]
  %v83 = vld [vmem:[%s1 + $0x140] sm:$0xff]
  %v84 = vld [vmem:[%s1 + $0x148] sm:$0xff]
  %v85 = vld [vmem:[%s1 + $0x150] sm:$0xff]
  %v86 = vld [vmem:[%s1 + $0x158] sm:$0xff]
  %v87 = vld [vmem:[%s1 + $0x160] sm:$0xff]
  %v88 = vld [vmem:[%s1 + $0x168] sm:$0xff]
  %v89 = vld [vmem:[%s1 + $0x170] sm:$0xff]
  %v90 = vld [vmem:[%s1 + $0x178] sm:$0xff]
  %v91 = vld [vmem:[%s1 + $0x180] sm:$0xff]
  %v92 = vld [vmem:[%s1 + $0x188] sm:$0xff]
  %v93 = vld [vmem:[%s1 + $0x190] sm:$0xff]
  %v94 = vld [vmem:[%s1 + $0x198] sm:$0xff]
  %v95 = vld [vmem:[%s1 + $0x1a0] sm:$0xff]
  %v96 = vld [vmem:[%s1 + $0x1a8] sm:$0xff]
  %v97 = vld [vmem:[%s1 + $0x1b0] sm:$0xff]
  %v98 = vld [vmem:[%s1 + $0x1b8] sm:$0xff]
  %v99 = vld [vmem:[%s1 + $0x1c0] sm:$0xff]
  %v100 = vld [vmem:[%s1 + $0x1c8] sm:$0xff]
  %v101 = vld [vmem:[%s1 + $0x1d0] sm:$0xff]
  %v102 = vld [vmem:[%s1 + $0x1d8] sm:$0xff]
  %v103 = vld [vmem:[%s1 + $0x1e0] sm:$0xff]
  %v104 = vld [vmem:[%s1 + $0x1e8] sm:$0xff]
  %v105 = vld [vmem:[%s1 + $0x1f0] sm:$0xff]
  %v106 = vld [vmem:[%s1 + $0x1f8] sm:$0xff]
  %v107 = vld [vmem:[%s3] sm:$0xf]
  %v109 = vperm.slane %v107, 0
  %v110 = vperm.slane %v107, 1
  %v111 = vperm.slane %v107, 2
  %v112 = vperm.slane %v107, 3
  %117 = vmatpush.msra.mxu0 %v103
  %118 = vmatpush.msra.mxu0 %v99
  %119 = vmatpush.msra.mxu0 %v95
  %120 = vmatpush.msra.mxu0 %v91
  %121 = vmatpush.msra.mxu0 %v87
  %122 = vmatpush.msra.mxu0 %v83
  %123 = vmatpush.msra.mxu0 %v79
  %124 = vmatpush.msra.mxu0 %v75
  %125 = vmatpush.msra.mxu0 %v71
  %126 = vmatpush.msra.mxu0 %v67
  %127 = vmatpush.msra.mxu0 %v63
  %128 = vmatpush.msra.mxu0 %v59
  %129 = vmatpush.msra.mxu0 %v55
  %130 = vmatpush.msra.mxu0 %v51
  %131 = vmatpush.msra.mxu0 %v47
  %132 = vmatpush.msra.mxu0 %v43
  %133 = vmatmul.f32.gmra.mxu0 %v35
  %v134 = vpop.f32.mrf.mxu0
  %v135 = vadd.f32 %v109, %v134
  %136 = vmatmul.f32.gmra.mxu0 %v36
  %v137 = vpop.f32.mrf.mxu0
  %v138 = vadd.f32 %v109, %v137
  %139 = vmatmul.f32.gmra.mxu0 %v37
  %v140 = vpop.f32.mrf.mxu0
  %v141 = vadd.f32 %v109, %v140
  %142 = vmatmul.f32.gmra.mxu0 %v38
  %v143 = vpop.f32.mrf.mxu0
  %v144 = vadd.f32 %v109, %v143
  %145 = vmatmul.f32.gmra.mxu0 %v39
  %v146 = vpop.f32.mrf.mxu0
  %v147 = vadd.f32 %v109, %v146
  %148 = vmatmul.f32.gmra.mxu0 %v40
  %v149 = vpop.f32.mrf.mxu0
  %v150 = vadd.f32 %v109, %v149
  %151 = vmatmul.f32.gmra.mxu0 %v41
  %v152 = vpop.f32.mrf.mxu0
  %v153 = vadd.f32 %v109, %v152
  %154 = vmatmul.f32.gmra.mxu0 %v42
  %v155 = vpop.f32.mrf.mxu0
  %v156 = vadd.f32 %v109, %v155
  %157 = vdwg.mxu0
  %158 = vmatpush.msra.mxu0 %v104
  %159 = vmatpush.msra.mxu0 %v100
  %160 = vmatpush.msra.mxu0 %v96
  %161 = vmatpush.msra.mxu0 %v92
  %162 = vmatpush.msra.mxu0 %v88
  %163 = vmatpush.msra.mxu0 %v84
  %164 = vmatpush.msra.mxu0 %v80
  %165 = vmatpush.msra.mxu0 %v76
  %166 = vmatpush.msra.mxu0 %v72
  %167 = vmatpush.msra.mxu0 %v68
  %168 = vmatpush.msra.mxu0 %v64
  %169 = vmatpush.msra.mxu0 %v60
  %170 = vmatpush.msra.mxu0 %v56
  %171 = vmatpush.msra.mxu0 %v52
  %172 = vmatpush.msra.mxu0 %v48
  %173 = vmatpush.msra.mxu0 %v44
  %174 = vmatmul.f32.gmra.mxu0 %v35
  %v175 = vpop.f32.mrf.mxu0
  %v176 = vadd.f32 %v110, %v175
  %177 = vmatmul.f32.gmra.mxu0 %v36
  %v178 = vpop.f32.mrf.mxu0
  %v179 = vadd.f32 %v110, %v178
  %180 = vmatmul.f32.gmra.mxu0 %v37
  %v181 = vpop.f32.mrf.mxu0
  %v182 = vadd.f32 %v110, %v181
  %183 = vmatmul.f32.gmra.mxu0 %v38
  %v184 = vpop.f32.mrf.mxu0
  %v185 = vadd.f32 %v110, %v184
  %186 = vmatmul.f32.gmra.mxu0 %v39
  %v187 = vpop.f32.mrf.mxu0
  %v188 = vadd.f32 %v110, %v187
  %189 = vmatmul.f32.gmra.mxu0 %v40
  %v190 = vpop.f32.mrf.mxu0
  %v191 = vadd.f32 %v110, %v190
  %192 = vmatmul.f32.gmra.mxu0 %v41
  %v193 = vpop.f32.mrf.mxu0
  %v194 = vadd.f32 %v110, %v193
  %195 = vmatmul.f32.gmra.mxu0 %v42
  %v196 = vpop.f32.mrf.mxu0
  %v197 = vadd.f32 %v110, %v196
  %198 = vdwg.mxu0
  %199 = vmatpush.msra.mxu0 %v105
  %200 = vmatpush.msra.mxu0 %v101
  %201 = vmatpush.msra.mxu0 %v97
  %202 = vmatpush.msra.mxu0 %v93
  %203 = vmatpush.msra.mxu0 %v89
  %204 = vmatpush.msra.mxu0 %v85
  %205 = vmatpush.msra.mxu0 %v81
  %206 = vmatpush.msra.mxu0 %v77
  %207 = vmatpush.msra.mxu0 %v73
  %208 = vmatpush.msra.mxu0 %v69
  %209 = vmatpush.msra.mxu0 %v65
  %210 = vmatpush.msra.mxu0 %v61
  %211 = vmatpush.msra.mxu0 %v57
  %212 = vmatpush.msra.mxu0 %v53
  %213 = vmatpush.msra.mxu0 %v49
  %214 = vmatpush.msra.mxu0 %v45
  %215 = vmatmul.f32.gmra.mxu0 %v35
  %v216 = vpop.f32.mrf.mxu0
  %v217 = vadd.f32 %v111, %v216
  %218 = vmatmul.f32.gmra.mxu0 %v36
  %v219 = vpop.f32.mrf.mxu0
  %v220 = vadd.f32 %v111, %v219
  %221 = vmatmul.f32.gmra.mxu0 %v37
  %v222 = vpop.f32.mrf.mxu0
  %v223 = vadd.f32 %v111, %v222
  %224 = vmatmul.f32.gmra.mxu0 %v38
  %v225 = vpop.f32.mrf.mxu0
  %v226 = vadd.f32 %v111, %v225
  %227 = vmatmul.f32.gmra.mxu0 %v39
  %v228 = vpop.f32.mrf.mxu0
  %v229 = vadd.f32 %v111, %v228
  %230 = vmatmul.f32.gmra.mxu0 %v40
  %v231 = vpop.f32.mrf.mxu0
  %v232 = vadd.f32 %v111, %v231
  %233 = vmatmul.f32.gmra.mxu0 %v41
  %v234 = vpop.f32.mrf.mxu0
  %v235 = vadd.f32 %v111, %v234
  %236 = vmatmul.f32.gmra.mxu0 %v42
  %v237 = vpop.f32.mrf.mxu0
  %v238 = vadd.f32 %v111, %v237
  %239 = vdwg.mxu0
  %240 = vmatpush.msra.mxu0 %v106
  %241 = vmatpush.msra.mxu0 %v102
  %242 = vmatpush.msra.mxu0 %v98
  %243 = vmatpush.msra.mxu0 %v94
  %244 = vmatpush.msra.mxu0 %v90
  %245 = vmatpush.msra.mxu0 %v86
  %246 = vmatpush.msra.mxu0 %v82
  %247 = vmatpush.msra.mxu0 %v78
  %248 = vmatpush.msra.mxu0 %v74
  %249 = vmatpush.msra.mxu0 %v70
  %250 = vmatpush.msra.mxu0 %v66
  %251 = vmatpush.msra.mxu0 %v62
  %252 = vmatpush.msra.mxu0 %v58
  %253 = vmatpush.msra.mxu0 %v54
  %254 = vmatpush.msra.mxu0 %v50
  %255 = vmatpush.msra.mxu0 %v46
  %256 = vmatmul.f32.gmra.mxu0 %v35
  %v257 = vpop.f32.mrf.mxu0
  %v258 = vadd.f32 %v112, %v257
  %259 = vmatmul.f32.gmra.mxu0 %v36
  %v260 = vpop.f32.mrf.mxu0
  %v261 = vadd.f32 %v112, %v260
  %262 = vmatmul.f32.gmra.mxu0 %v37
  %v263 = vpop.f32.mrf.mxu0
  %v264 = vadd.f32 %v112, %v263
  %265 = vmatmul.f32.gmra.mxu0 %v38
  %v266 = vpop.f32.mrf.mxu0
  %v267 = vadd.f32 %v112, %v266
  %268 = vmatmul.f32.gmra.mxu0 %v39
  %v269 = vpop.f32.mrf.mxu0
  %v270 = vadd.f32 %v112, %v269
  %271 = vmatmul.f32.gmra.mxu0 %v40
  %v272 = vpop.f32.mrf.mxu0
  %v273 = vadd.f32 %v112, %v272
  %274 = vmatmul.f32.gmra.mxu0 %v41
  %v275 = vpop.f32.mrf.mxu0
  %v276 = vadd.f32 %v112, %v275
  %277 = vmatmul.f32.gmra.mxu0 %v42
  %v278 = vpop.f32.mrf.mxu0
  %v279 = vadd.f32 %v112, %v278
  %280 = vdwg.mxu0
  %281 = vst [vmem:[#allocation2] sm:$0xff] %v135
  %282 = vst [vmem:[#allocation2 + $0x8] sm:$0xff] %v176
  %283 = vst [vmem:[#allocation2 + $0x10] sm:$0xff] %v217
  %284 = vst [vmem:[#allocation2 + $0x18] sm:$0xff] %v258
  %285 = vst [vmem:[#allocation2 + $0x20] sm:$0xff] %v138
  %286 = vst [vmem:[#allocation2 + $0x28] sm:$0xff] %v179
  %287 = vst [vmem:[#allocation2 + $0x30] sm:$0xff] %v220
  %288 = vst [vmem:[#allocation2 + $0x38] sm:$0xff] %v261
  %289 = vst [vmem:[#allocation2 + $0x40] sm:$0xff] %v141
  %290 = vst [vmem:[#allocation2 + $0x48] sm:$0xff] %v182
  %291 = vst [vmem:[#allocation2 + $0x50] sm:$0xff] %v223
  %292 = vst [vmem:[#allocation2 + $0x58] sm:$0xff] %v264
  %293 = vst [vmem:[#allocation2 + $0x60] sm:$0xff] %v144
  %294 = vst [vmem:[#allocation2 + $0x68] sm:$0xff] %v185
  %295 = vst [vmem:[#allocation2 + $0x70] sm:$0xff] %v226
  %296 = vst [vmem:[#allocation2 + $0x78] sm:$0xff] %v267
  %297 = vst [vmem:[#allocation2 + $0x80] sm:$0xff] %v147
  %298 = vst [vmem:[#allocation2 + $0x88] sm:$0xff] %v188
  %299 = vst [vmem:[#allocation2 + $0x90] sm:$0xff] %v229
  %300 = vst [vmem:[#allocation2 + $0x98] sm:$0xff] %v270
  %301 = vst [vmem:[#allocation2 + $0xa0] sm:$0xff] %v150
  %302 = vst [vmem:[#allocation2 + $0xa8] sm:$0xff] %v191
  %303 = vst [vmem:[#allocation2 + $0xb0] sm:$0xff] %v232
  %304 = vst [vmem:[#allocation2 + $0xb8] sm:$0xff] %v273
  %305 = vst [vmem:[#allocation2 + $0xc0] sm:$0xff] %v153
  %306 = vst [vmem:[#allocation2 + $0xc8] sm:$0xff] %v194
  %307 = vst [vmem:[#allocation2 + $0xd0] sm:$0xff] %v235
  %308 = vst [vmem:[#allocation2 + $0xd8] sm:$0xff] %v276
  %309 = vst [vmem:[#allocation2 + $0xe0] sm:$0xff] %v156
  %310 = vst [vmem:[#allocation2 + $0xe8] sm:$0xff] %v197
  %311 = vst [vmem:[#allocation2 + $0xf0] sm:$0xff] %v238
  %312 = vst [vmem:[#allocation2 + $0xf8] sm:$0xff] %v279
  %v313 = vld [vmem:[%s2] sm:$0xff]
  %v314 = vld [vmem:[%s2 + $0x8] sm:$0xff]
  %v315 = vld [vmem:[%s2 + $0x10] sm:$0xff]
  %v316 = vld [vmem:[%s2 + $0x18] sm:$0xff]
  %v317 = vld [vmem:[%s2 + $0x20] sm:$0xff]
  %v318 = vld [vmem:[%s2 + $0x28] sm:$0xff]
  %v319 = vld [vmem:[%s2 + $0x30] sm:$0xff]
  %v320 = vld [vmem:[%s2 + $0x38] sm:$0xff]
  %v321 = vld [vmem:[%s2 + $0x40] sm:$0xff]
  %v322 = vld [vmem:[%s2 + $0x48] sm:$0xff]
  %v323 = vld [vmem:[%s2 + $0x50] sm:$0xff]
  %v324 = vld [vmem:[%s2 + $0x58] sm:$0xff]
  %v325 = vld [vmem:[%s2 + $0x60] sm:$0xff]
  %v326 = vld [vmem:[%s2 + $0x68] sm:$0xff]
  %v327 = vld [vmem:[%s2 + $0x70] sm:$0xff]
  %v328 = vld [vmem:[%s2 + $0x78] sm:$0xff]
  %v329 = vld [vmem:[%s2 + $0x80] sm:$0xff]
  %v330 = vld [vmem:[%s2 + $0x88] sm:$0xff]
  %v331 = vld [vmem:[%s2 + $0x90] sm:$0xff]
  %v332 = vld [vmem:[%s2 + $0x98] sm:$0xff]
  %v333 = vld [vmem:[%s2 + $0xa0] sm:$0xff]
  %v334 = vld [vmem:[%s2 + $0xa8] sm:$0xff]
  %v335 = vld [vmem:[%s2 + $0xb0] sm:$0xff]
  %v336 = vld [vmem:[%s2 + $0xb8] sm:$0xff]
  %v337 = vld [vmem:[%s2 + $0xc0] sm:$0xff]
  %v338 = vld [vmem:[%s2 + $0xc8] sm:$0xff]
  %v339 = vld [vmem:[%s2 + $0xd0] sm:$0xff]
  %v340 = vld [vmem:[%s2 + $0xd8] sm:$0xff]
  %v341 = vld [vmem:[%s2 + $0xe0] sm:$0xff]
  %v342 = vld [vmem:[%s2 + $0xe8] sm:$0xff]
  %v343 = vld [vmem:[%s2 + $0xf0] sm:$0xff]
  %v344 = vld [vmem:[%s2 + $0xf8] sm:$0xff]
  %v345 = vld [vmem:[%s2 + $0x100] sm:$0xff]
  %v346 = vld [vmem:[%s2 + $0x108] sm:$0xff]
  %v347 = vld [vmem:[%s2 + $0x110] sm:$0xff]
  %v348 = vld [vmem:[%s2 + $0x118] sm:$0xff]
  %v349 = vld [vmem:[%s2 + $0x120] sm:$0xff]
  %v350 = vld [vmem:[%s2 + $0x128] sm:$0xff]
  %v351 = vld [vmem:[%s2 + $0x130] sm:$0xff]
  %v352 = vld [vmem:[%s2 + $0x138] sm:$0xff]
  %v353 = vld [vmem:[%s2 + $0x140] sm:$0xff]
  %v354 = vld [vmem:[%s2 + $0x148] sm:$0xff]
  %v355 = vld [vmem:[%s2 + $0x150] sm:$0xff]
  %v356 = vld [vmem:[%s2 + $0x158] sm:$0xff]
  %v357 = vld [vmem:[%s2 + $0x160] sm:$0xff]
  %v358 = vld [vmem:[%s2 + $0x168] sm:$0xff]
  %v359 = vld [vmem:[%s2 + $0x170] sm:$0xff]
  %v360 = vld [vmem:[%s2 + $0x178] sm:$0xff]
  %v361 = vld [vmem:[%s2 + $0x180] sm:$0xff]
  %v362 = vld [vmem:[%s2 + $0x188] sm:$0xff]
  %v363 = vld [vmem:[%s2 + $0x190] sm:$0xff]
  %v364 = vld [vmem:[%s2 + $0x198] sm:$0xff]
  %v365 = vld [vmem:[%s2 + $0x1a0] sm:$0xff]
  %v366 = vld [vmem:[%s2 + $0x1a8] sm:$0xff]
  %v367 = vld [vmem:[%s2 + $0x1b0] sm:$0xff]
  %v368 = vld [vmem:[%s2 + $0x1b8] sm:$0xff]
  %v369 = vld [vmem:[%s2 + $0x1c0] sm:$0xff]
  %v370 = vld [vmem:[%s2 + $0x1c8] sm:$0xff]
  %v371 = vld [vmem:[%s2 + $0x1d0] sm:$0xff]
  %v372 = vld [vmem:[%s2 + $0x1d8] sm:$0xff]
  %v373 = vld [vmem:[%s2 + $0x1e0] sm:$0xff]
  %v374 = vld [vmem:[%s2 + $0x1e8] sm:$0xff]
  %v375 = vld [vmem:[%s2 + $0x1f0] sm:$0xff]
  %v376 = vld [vmem:[%s2 + $0x1f8] sm:$0xff]
  %v377 = vld [vmem:[#allocation2] sm:$0xff]
  %v378 = vld [vmem:[#allocation2 + $0x8] sm:$0xff]
  %v379 = vld [vmem:[#allocation2 + $0x10] sm:$0xff]
  %v380 = vld [vmem:[#allocation2 + $0x18] sm:$0xff]
  %381 = vmatpush.msra.mxu0 %v373
  %382 = vmatpush.msra.mxu0 %v369
  %383 = vmatpush.msra.mxu0 %v365
  %384 = vmatpush.msra.mxu0 %v361
  %385 = vmatpush.msra.mxu0 %v357
  %386 = vmatpush.msra.mxu0 %v353
  %387 = vmatpush.msra.mxu0 %v349
  %388 = vmatpush.msra.mxu0 %v345
  %389 = vmatpush.msra.mxu0 %v341
  %390 = vmatpush.msra.mxu0 %v337
  %391 = vmatpush.msra.mxu0 %v333
  %392 = vmatpush.msra.mxu0 %v329
  %393 = vmatpush.msra.mxu0 %v325
  %394 = vmatpush.msra.mxu0 %v321
  %395 = vmatpush.msra.mxu0 %v317
  %396 = vmatpush.msra.mxu0 %v313
  %397 = vmatmul.f32.gmra.mxu0 0.0
  %v398 = vpop.f32.mrf.mxu0
  %v399 = vadd.f32 0.0, %v398
  %400 = vdwg.mxu0
  %401 = vmatpush.msra.mxu0 %v374
  %402 = vmatpush.msra.mxu0 %v370
  %403 = vmatpush.msra.mxu0 %v366
  %404 = vmatpush.msra.mxu0 %v362
  %405 = vmatpush.msra.mxu0 %v358
  %406 = vmatpush.msra.mxu0 %v354
  %407 = vmatpush.msra.mxu0 %v350
  %408 = vmatpush.msra.mxu0 %v346
  %409 = vmatpush.msra.mxu0 %v342
  %410 = vmatpush.msra.mxu0 %v338
  %411 = vmatpush.msra.mxu0 %v334
  %412 = vmatpush.msra.mxu0 %v330
  %413 = vmatpush.msra.mxu0 %v326
  %414 = vmatpush.msra.mxu0 %v322
  %415 = vmatpush.msra.mxu0 %v318
  %416 = vmatpush.msra.mxu0 %v314
  %417 = vmatmul.f32.gmra.mxu0 0.0
  %v418 = vpop.f32.mrf.mxu0
  %v419 = vadd.f32 0.0, %v418
  %420 = vdwg.mxu0
  %421 = vmatpush.msra.mxu0 %v375
  %422 = vmatpush.msra.mxu0 %v371
  %423 = vmatpush.msra.mxu0 %v367
  %424 = vmatpush.msra.mxu0 %v363
  %425 = vmatpush.msra.mxu0 %v359
  %426 = vmatpush.msra.mxu0 %v355
  %427 = vmatpush.msra.mxu0 %v351
  %428 = vmatpush.msra.mxu0 %v347
  %429 = vmatpush.msra.mxu0 %v343
  %430 = vmatpush.msra.mxu0 %v339
  %431 = vmatpush.msra.mxu0 %v335
  %432 = vmatpush.msra.mxu0 %v331
  %433 = vmatpush.msra.mxu0 %v327
  %434 = vmatpush.msra.mxu0 %v323
  %435 = vmatpush.msra.mxu0 %v319
  %436 = vmatpush.msra.mxu0 %v315
  %437 = vmatmul.f32.gmra.mxu0 0.0
  %v438 = vpop.f32.mrf.mxu0
  %v439 = vadd.f32 0.0, %v438
  %440 = vdwg.mxu0
  %441 = vmatpush.msra.mxu0 %v376
  %442 = vmatpush.msra.mxu0 %v372
  %443 = vmatpush.msra.mxu0 %v368
  %444 = vmatpush.msra.mxu0 %v364
  %445 = vmatpush.msra.mxu0 %v360
  %446 = vmatpush.msra.mxu0 %v356
  %447 = vmatpush.msra.mxu0 %v352
  %448 = vmatpush.msra.mxu0 %v348
  %449 = vmatpush.msra.mxu0 %v344
  %450 = vmatpush.msra.mxu0 %v340
  %451 = vmatpush.msra.mxu0 %v336
  %452 = vmatpush.msra.mxu0 %v332
  %453 = vmatpush.msra.mxu0 %v328
  %454 = vmatpush.msra.mxu0 %v324
  %455 = vmatpush.msra.mxu0 %v320
  %456 = vmatpush.msra.mxu0 %v316
  %457 = vmatmul.f32.gmra.mxu0 0.0
  %v458 = vpop.f32.mrf.mxu0
  %v459 = vadd.f32 0.0, %v458
  %460 = vdwg.mxu0
  %v461 = vadd.f32 %v377, %v399
  %v462 = vadd.f32 %v378, %v419
  %v463 = vadd.f32 %v379, %v439
  %v464 = vadd.f32 %v380, %v459
  %v465 = vxor.u32 %v461, 2147483648
  %v466 = vmul.f32 %v465, 1.442695
  %v467 = vpow.pop %v466
  %v468 = vadd.f32 %v467, 1.0
  %v469 = vrcp.pop %v468
  %v470 = vmul.f32 %v468, %v469
  %v471 = vsub.f32 1.0, %v470
  %v472 = vmul.f32 %v469, %v471
  %v473 = vadd.f32 %v469, %v472
  %vm474 = vweird.f32 %v468
  %vm475 = vweird.f32 %v469
  %vm476 = vmor %vm474, %vm475
  %v477 = vsel %vm476, %v469, %v473
  %v478 = vand.u32 2147483647, %v468
  %vm479 = vcmp.eq.f32.partialorder %v478, 8.507059e+37
  %v480 = vand.u32 %v468, 2147483648
  %v481 = vor.u32 1.1754944e-38, %v480
  %v482 = vsel %vm479, %v481, %v477
  %v483 = vmul.f32 1.0, %v482
  %v484 = vxor.u32 %v462, 2147483648
  %v485 = vmul.f32 %v484, 1.442695
  %v486 = vpow.pop %v485
  %v487 = vadd.f32 %v486, 1.0
  %v488 = vrcp.pop %v487
  %v489 = vmul.f32 %v487, %v488
  %v490 = vsub.f32 1.0, %v489
  %v491 = vmul.f32 %v488, %v490
  %v492 = vadd.f32 %v488, %v491
  %vm493 = vweird.f32 %v487
  %vm494 = vweird.f32 %v488
  %vm495 = vmor %vm493, %vm494
  %v496 = vsel %vm495, %v488, %v492
  %v497 = vand.u32 2147483647, %v487
  %vm498 = vcmp.eq.f32.partialorder %v497, 8.507059e+37
  %v499 = vand.u32 %v487, 2147483648
  %v500 = vor.u32 1.1754944e-38, %v499
  %v501 = vsel %vm498, %v500, %v496
  %v502 = vmul.f32 1.0, %v501
  %v503 = vtanh.pop %v463
  %v504 = vxor.u32 %v464, 2147483648
  %v505 = vmul.f32 %v504, 1.442695
  %v506 = vpow.pop %v505
  %v507 = vadd.f32 %v506, 1.0
  %v508 = vrcp.pop %v507
  %v509 = vmul.f32 %v507, %v508
  %v510 = vsub.f32 1.0, %v509
  %v511 = vmul.f32 %v508, %v510
  %v512 = vadd.f32 %v508, %v511
  %vm513 = vweird.f32 %v507
  %vm514 = vweird.f32 %v508
  %vm515 = vmor %vm513, %vm514
  %v516 = vsel %vm515, %v508, %v512
  %v517 = vand.u32 2147483647, %v507
  %vm518 = vcmp.eq.f32.partialorder %v517, 8.507059e+37
  %v519 = vand.u32 %v507, 2147483648
  %v520 = vor.u32 1.1754944e-38, %v519
  %v521 = vsel %vm518, %v520, %v516
  %v522 = vmul.f32 1.0, %v521
  %v523 = vmul.f32 %v502, 0.0
  %v524 = vmul.f32 %v483, %v503
  %v525 = vadd.f32 %v523, %v524
  %v526 = vtanh.pop %v525
  %v527 = vmul.f32 %v522, %v526
  %s528 = scalar_lea.vmem [#allocation2], 32
  %v529 = vld [vmem:[%s528] sm:$0xff]
  %v530 = vld [vmem:[%s528 + $0x8] sm:$0xff]
  %v531 = vld [vmem:[%s528 + $0x10] sm:$0xff]
  %v532 = vld [vmem:[%s528 + $0x18] sm:$0xff]
  %533 = vmatpush.msra.mxu0 %v373
  %534 = vmatpush.msra.mxu0 %v369
  %535 = vmatpush.msra.mxu0 %v365
  %536 = vmatpush.msra.mxu0 %v361
  %537 = vmatpush.msra.mxu0 %v357
  %538 = vmatpush.msra.mxu0 %v353
  %539 = vmatpush.msra.mxu0 %v349
  %540 = vmatpush.msra.mxu0 %v345
  %541 = vmatpush.msra.mxu0 %v341
  %542 = vmatpush.msra.mxu0 %v337
  %543 = vmatpush.msra.mxu0 %v333
  %544 = vmatpush.msra.mxu0 %v329
  %545 = vmatpush.msra.mxu0 %v325
  %546 = vmatpush.msra.mxu0 %v321
  %547 = vmatpush.msra.mxu0 %v317
  %548 = vmatpush.msra.mxu0 %v313
  %549 = vmatmul.f32.gmra.mxu0 %v527
  %v550 = vpop.f32.mrf.mxu0
  %v551 = vadd.f32 0.0, %v550
  %552 = vdwg.mxu0
  %553 = vmatpush.msra.mxu0 %v374
  %554 = vmatpush.msra.mxu0 %v370
  %555 = vmatpush.msra.mxu0 %v366
  %556 = vmatpush.msra.mxu0 %v362
  %557 = vmatpush.msra.mxu0 %v358
  %558 = vmatpush.msra.mxu0 %v354
  %559 = vmatpush.msra.mxu0 %v350
  %560 = vmatpush.msra.mxu0 %v346
  %561 = vmatpush.msra.mxu0 %v342
  %562 = vmatpush.msra.mxu0 %v338
  %563 = vmatpush.msra.mxu0 %v334
  %564 = vmatpush.msra.mxu0 %v330
  %565 = vmatpush.msra.mxu0 %v326
  %566 = vmatpush.msra.mxu0 %v322
  %567 = vmatpush.msra.mxu0 %v318
  %568 = vmatpush.msra.mxu0 %v314
  %569 = vmatmul.f32.gmra.mxu0 %v527
  %v570 = vpop.f32.mrf.mxu0
  %v571 = vadd.f32 0.0, %v570
  %572 = vdwg.mxu0
  %573 = vmatpush.msra.mxu0 %v375
  %574 = vmatpush.msra.mxu0 %v371
  %575 = vmatpush.msra.mxu0 %v367
  %576 = vmatpush.msra.mxu0 %v363
  %577 = vmatpush.msra.mxu0 %v359
  %578 = vmatpush.msra.mxu0 %v355
  %579 = vmatpush.msra.mxu0 %v351
  %580 = vmatpush.msra.mxu0 %v347
  %581 = vmatpush.msra.mxu0 %v343
  %582 = vmatpush.msra.mxu0 %v339
  %583 = vmatpush.msra.mxu0 %v335
  %584 = vmatpush.msra.mxu0 %v331
  %585 = vmatpush.msra.mxu0 %v327
  %586 = vmatpush.msra.mxu0 %v323
  %587 = vmatpush.msra.mxu0 %v319
  %588 = vmatpush.msra.mxu0 %v315
  %589 = vmatmul.f32.gmra.mxu0 %v527
  %v590 = vpop.f32.mrf.mxu0
  %v591 = vadd.f32 0.0, %v590
  %592 = vdwg.mxu0
  %593 = vmatpush.msra.mxu0 %v376
  %594 = vmatpush.msra.mxu0 %v372
  %595 = vmatpush.msra.mxu0 %v368
  %596 = vmatpush.msra.mxu0 %v364
  %597 = vmatpush.msra.mxu0 %v360
  %598 = vmatpush.msra.mxu0 %v356
  %599 = vmatpush.msra.mxu0 %v352
  %600 = vmatpush.msra.mxu0 %v348
  %601 = vmatpush.msra.mxu0 %v344
  %602 = vmatpush.msra.mxu0 %v340
  %603 = vmatpush.msra.mxu0 %v336
  %604 = vmatpush.msra.mxu0 %v332
  %605 = vmatpush.msra.mxu0 %v328
  %606 = vmatpush.msra.mxu0 %v324
  %607 = vmatpush.msra.mxu0 %v320
  %608 = vmatpush.msra.mxu0 %v316
  %609 = vmatmul.f32.gmra.mxu0 %v527
  %v610 = vpop.f32.mrf.mxu0
  %v611 = vadd.f32 0.0, %v610
  %612 = vdwg.mxu0
  %v613 = vadd.f32 %v529, %v551
  %v614 = vadd.f32 %v530, %v571
  %v615 = vadd.f32 %v531, %v591
  %v616 = vadd.f32 %v532, %v611
  %v617 = vxor.u32 %v613, 2147483648
  %v618 = vmul.f32 %v617, 1.442695
  %v619 = vpow.pop %v618
  %v620 = vadd.f32 %v619, 1.0
  %v621 = vrcp.pop %v620
  %v622 = vmul.f32 %v620, %v621
  %v623 = vsub.f32 1.0, %v622
  %v624 = vmul.f32 %v621, %v623
  %v625 = vadd.f32 %v621, %v624
  %vm626 = vweird.f32 %v620
  %vm627 = vweird.f32 %v621
  %vm628 = vmor %vm626, %vm627
  %v629 = vsel %vm628, %v621, %v625
  %v630 = vand.u32 2147483647, %v620
  %vm631 = vcmp.eq.f32.partialorder %v630, 8.507059e+37
  %v632 = vand.u32 %v620, 2147483648
  %v633 = vor.u32 1.1754944e-38, %v632
  %v634 = vsel %vm631, %v633, %v629
  %v635 = vmul.f32 1.0, %v634
  %v636 = vxor.u32 %v614, 2147483648
  %v637 = vmul.f32 %v636, 1.442695
  %v638 = vpow.pop %v637
  %v639 = vadd.f32 %v638, 1.0
  %v640 = vrcp.pop %v639
  %v641 = vmul.f32 %v639, %v640
  %v642 = vsub.f32 1.0, %v641
  %v643 = vmul.f32 %v640, %v642
  %v644 = vadd.f32 %v640, %v643
  %vm645 = vweird.f32 %v639
  %vm646 = vweird.f32 %v640
  %vm647 = vmor %vm645, %vm646
  %v648 = vsel %vm647, %v640, %v644
  %v649 = vand.u32 2147483647, %v639
  %vm650 = vcmp.eq.f32.partialorder %v649, 8.507059e+37
  %v651 = vand.u32 %v639, 2147483648
  %v652 = vor.u32 1.1754944e-38, %v651
  %v653 = vsel %vm650, %v652, %v648
  %v654 = vmul.f32 1.0, %v653
  %v655 = vtanh.pop %v615
  %v656 = vxor.u32 %v616, 2147483648
  %v657 = vmul.f32 %v656, 1.442695
  %v658 = vpow.pop %v657
  %v659 = vadd.f32 %v658, 1.0
  %v660 = vrcp.pop %v659
  %v661 = vmul.f32 %v659, %v660
  %v662 = vsub.f32 1.0, %v661
  %v663 = vmul.f32 %v660, %v662
  %v664 = vadd.f32 %v660, %v663
  %vm665 = vweird.f32 %v659
  %vm666 = vweird.f32 %v660
  %vm667 = vmor %vm665, %vm666
  %v668 = vsel %vm667, %v660, %v664
  %v669 = vand.u32 2147483647, %v659
  %vm670 = vcmp.eq.f32.partialorder %v669, 8.507059e+37
  %v671 = vand.u32 %v659, 2147483648
  %v672 = vor.u32 1.1754944e-38, %v671
  %v673 = vsel %vm670, %v672, %v668
  %v674 = vmul.f32 1.0, %v673
  %v675 = vmul.f32 %v654, %v525
  %v676 = vmul.f32 %v635, %v655
  %v677 = vadd.f32 %v675, %v676
  %v678 = vtanh.pop %v677
  %v679 = vmul.f32 %v674, %v678
  %s680 = scalar_lea.vmem [#allocation2], 64
  %v681 = vld [vmem:[%s680] sm:$0xff]
  %v682 = vld [vmem:[%s680 + $0x8] sm:$0xff]
  %v683 = vld [vmem:[%s680 + $0x10] sm:$0xff]
  %v684 = vld [vmem:[%s680 + $0x18] sm:$0xff]
  %685 = vmatpush.msra.mxu0 %v373
  %686 = vmatpush.msra.mxu0 %v369
  %687 = vmatpush.msra.mxu0 %v365
  %688 = vmatpush.msra.mxu0 %v361
  %689 = vmatpush.msra.mxu0 %v357
  %690 = vmatpush.msra.mxu0 %v353
  %691 = vmatpush.msra.mxu0 %v349
  %692 = vmatpush.msra.mxu0 %v345
  %693 = vmatpush.msra.mxu0 %v341
  %694 = vmatpush.msra.mxu0 %v337
  %695 = vmatpush.msra.mxu0 %v333
  %696 = vmatpush.msra.mxu0 %v329
  %697 = vmatpush.msra.mxu0 %v325
  %698 = vmatpush.msra.mxu0 %v321
  %699 = vmatpush.msra.mxu0 %v317
  %700 = vmatpush.msra.mxu0 %v313
  %701 = vmatmul.f32.gmra.mxu0 %v679
  %v702 = vpop.f32.mrf.mxu0
  %v703 = vadd.f32 0.0, %v702
  %704 = vdwg.mxu0
  %705 = vmatpush.msra.mxu0 %v374
  %706 = vmatpush.msra.mxu0 %v370
  %707 = vmatpush.msra.mxu0 %v366
  %708 = vmatpush.msra.mxu0 %v362
  %709 = vmatpush.msra.mxu0 %v358
  %710 = vmatpush.msra.mxu0 %v354
  %711 = vmatpush.msra.mxu0 %v350
  %712 = vmatpush.msra.mxu0 %v346
  %713 = vmatpush.msra.mxu0 %v342
  %714 = vmatpush.msra.mxu0 %v338
  %715 = vmatpush.msra.mxu0 %v334
  %716 = vmatpush.msra.mxu0 %v330
  %717 = vmatpush.msra.mxu0 %v326
  %718 = vmatpush.msra.mxu0 %v322
  %719 = vmatpush.msra.mxu0 %v318
  %720 = vmatpush.msra.mxu0 %v314
  %721 = vmatmul.f32.gmra.mxu0 %v679
  %v722 = vpop.f32.mrf.mxu0
  %v723 = vadd.f32 0.0, %v722
  %724 = vdwg.mxu0
  %725 = vmatpush.msra.mxu0 %v375
  %726 = vmatpush.msra.mxu0 %v371
  %727 = vmatpush.msra.mxu0 %v367
  %728 = vmatpush.msra.mxu0 %v363
  %729 = vmatpush.msra.mxu0 %v359
  %730 = vmatpush.msra.mxu0 %v355
  %731 = vmatpush.msra.mxu0 %v351
  %732 = vmatpush.msra.mxu0 %v347
  %733 = vmatpush.msra.mxu0 %v343
  %734 = vmatpush.msra.mxu0 %v339
  %735 = vmatpush.msra.mxu0 %v335
  %736 = vmatpush.msra.mxu0 %v331
  %737 = vmatpush.msra.mxu0 %v327
  %738 = vmatpush.msra.mxu0 %v323
  %739 = vmatpush.msra.mxu0 %v319
  %740 = vmatpush.msra.mxu0 %v315
  %741 = vmatmul.f32.gmra.mxu0 %v679
  %v742 = vpop.f32.mrf.mxu0
  %v743 = vadd.f32 0.0, %v742
  %744 = vdwg.mxu0
  %745 = vmatpush.msra.mxu0 %v376
  %746 = vmatpush.msra.mxu0 %v372
  %747 = vmatpush.msra.mxu0 %v368
  %748 = vmatpush.msra.mxu0 %v364
  %749 = vmatpush.msra.mxu0 %v360
  %750 = vmatpush.msra.mxu0 %v356
  %751 = vmatpush.msra.mxu0 %v352
  %752 = vmatpush.msra.mxu0 %v348
  %753 = vmatpush.msra.mxu0 %v344
  %754 = vmatpush.msra.mxu0 %v340
  %755 = vmatpush.msra.mxu0 %v336
  %756 = vmatpush.msra.mxu0 %v332
  %757 = vmatpush.msra.mxu0 %v328
  %758 = vmatpush.msra.mxu0 %v324
  %759 = vmatpush.msra.mxu0 %v320
  %760 = vmatpush.msra.mxu0 %v316
  %761 = vmatmul.f32.gmra.mxu0 %v679
  %v762 = vpop.f32.mrf.mxu0
  %v763 = vadd.f32 0.0, %v762
  %764 = vdwg.mxu0
  %v765 = vadd.f32 %v681, %v703
  %v766 = vadd.f32 %v682, %v723
  %v767 = vadd.f32 %v683, %v743
  %v768 = vadd.f32 %v684, %v763
  %v769 = vxor.u32 %v765, 2147483648
  %v770 = vmul.f32 %v769, 1.442695
  %v771 = vpow.pop %v770
  %v772 = vadd.f32 %v771, 1.0
  %v773 = vrcp.pop %v772
  %v774 = vmul.f32 %v772, %v773
  %v775 = vsub.f32 1.0, %v774
  %v776 = vmul.f32 %v773, %v775
  %v777 = vadd.f32 %v773, %v776
  %vm778 = vweird.f32 %v772
  %vm779 = vweird.f32 %v773
  %vm780 = vmor %vm778, %vm779
  %v781 = vsel %vm780, %v773, %v777
  %v782 = vand.u32 2147483647, %v772
  %vm783 = vcmp.eq.f32.partialorder %v782, 8.507059e+37
  %v784 = vand.u32 %v772, 2147483648
  %v785 = vor.u32 1.1754944e-38, %v784
  %v786 = vsel %vm783, %v785, %v781
  %v787 = vmul.f32 1.0, %v786
  %v788 = vxor.u32 %v766, 2147483648
  %v789 = vmul.f32 %v788, 1.442695
  %v790 = vpow.pop %v789
  %v791 = vadd.f32 %v790, 1.0
  %v792 = vrcp.pop %v791
  %v793 = vmul.f32 %v791, %v792
  %v794 = vsub.f32 1.0, %v793
  %v795 = vmul.f32 %v792, %v794
  %v796 = vadd.f32 %v792, %v795
  %vm797 = vweird.f32 %v791
  %vm798 = vweird.f32 %v792
  %vm799 = vmor %vm797, %vm798
  %v800 = vsel %vm799, %v792, %v796
  %v801 = vand.u32 2147483647, %v791
  %vm802 = vcmp.eq.f32.partialorder %v801, 8.507059e+37
  %v803 = vand.u32 %v791, 2147483648
  %v804 = vor.u32 1.1754944e-38, %v803
  %v805 = vsel %vm802, %v804, %v800
  %v806 = vmul.f32 1.0, %v805
  %v807 = vtanh.pop %v767
  %v808 = vxor.u32 %v768, 2147483648
  %v809 = vmul.f32 %v808, 1.442695
  %v810 = vpow.pop %v809
  %v811 = vadd.f32 %v810, 1.0
  %v812 = vrcp.pop %v811
  %v813 = vmul.f32 %v811, %v812
  %v814 = vsub.f32 1.0, %v813
  %v815 = vmul.f32 %v812, %v814
  %v816 = vadd.f32 %v812, %v815
  %vm817 = vweird.f32 %v811
  %vm818 = vweird.f32 %v812
  %vm819 = vmor %vm817, %vm818
  %v820 = vsel %vm819, %v812, %v816
  %v821 = vand.u32 2147483647, %v811
  %vm822 = vcmp.eq.f32.partialorder %v821, 8.507059e+37
  %v823 = vand.u32 %v811, 2147483648
  %v824 = vor.u32 1.1754944e-38, %v823
  %v825 = vsel %vm822, %v824, %v820
  %v826 = vmul.f32 1.0, %v825
  %v827 = vmul.f32 %v806, %v677
  %v828 = vmul.f32 %v787, %v807
  %v829 = vadd.f32 %v827, %v828
  %v830 = vtanh.pop %v829
  %v831 = vmul.f32 %v826, %v830
  %s832 = scalar_lea.vmem [#allocation2], 96
  %v833 = vld [vmem:[%s832] sm:$0xff]
  %v834 = vld [vmem:[%s832 + $0x8] sm:$0xff]
  %v835 = vld [vmem:[%s832 + $0x10] sm:$0xff]
  %v836 = vld [vmem:[%s832 + $0x18] sm:$0xff]
  %837 = vmatpush.msra.mxu0 %v373
  %838 = vmatpush.msra.mxu0 %v369
  %839 = vmatpush.msra.mxu0 %v365
  %840 = vmatpush.msra.mxu0 %v361
  %841 = vmatpush.msra.mxu0 %v357
  %842 = vmatpush.msra.mxu0 %v353
  %843 = vmatpush.msra.mxu0 %v349
  %844 = vmatpush.msra.mxu0 %v345
  %845 = vmatpush.msra.mxu0 %v341
  %846 = vmatpush.msra.mxu0 %v337
  %847 = vmatpush.msra.mxu0 %v333
  %848 = vmatpush.msra.mxu0 %v329
  %849 = vmatpush.msra.mxu0 %v325
  %850 = vmatpush.msra.mxu0 %v321
  %851 = vmatpush.msra.mxu0 %v317
  %852 = vmatpush.msra.mxu0 %v313
  %853 = vmatmul.f32.gmra.mxu0 %v831
  %v854 = vpop.f32.mrf.mxu0
  %v855 = vadd.f32 0.0, %v854
  %856 = vdwg.mxu0
  %857 = vmatpush.msra.mxu0 %v374
  %858 = vmatpush.msra.mxu0 %v370
  %859 = vmatpush.msra.mxu0 %v366
  %860 = vmatpush.msra.mxu0 %v362
  %861 = vmatpush.msra.mxu0 %v358
  %862 = vmatpush.msra.mxu0 %v354
  %863 = vmatpush.msra.mxu0 %v350
  %864 = vmatpush.msra.mxu0 %v346
  %865 = vmatpush.msra.mxu0 %v342
  %866 = vmatpush.msra.mxu0 %v338
  %867 = vmatpush.msra.mxu0 %v334
  %868 = vmatpush.msra.mxu0 %v330
  %869 = vmatpush.msra.mxu0 %v326
  %870 = vmatpush.msra.mxu0 %v322
  %871 = vmatpush.msra.mxu0 %v318
  %872 = vmatpush.msra.mxu0 %v314
  %873 = vmatmul.f32.gmra.mxu0 %v831
  %v874 = vpop.f32.mrf.mxu0
  %v875 = vadd.f32 0.0, %v874
  %876 = vdwg.mxu0
  %877 = vmatpush.msra.mxu0 %v375
  %878 = vmatpush.msra.mxu0 %v371
  %879 = vmatpush.msra.mxu0 %v367
  %880 = vmatpush.msra.mxu0 %v363
  %881 = vmatpush.msra.mxu0 %v359
  %882 = vmatpush.msra.mxu0 %v355
  %883 = vmatpush.msra.mxu0 %v351
  %884 = vmatpush.msra.mxu0 %v347
  %885 = vmatpush.msra.mxu0 %v343
  %886 = vmatpush.msra.mxu0 %v339
  %887 = vmatpush.msra.mxu0 %v335
  %888 = vmatpush.msra.mxu0 %v331
  %889 = vmatpush.msra.mxu0 %v327
  %890 = vmatpush.msra.mxu0 %v323
  %891 = vmatpush.msra.mxu0 %v319
  %892 = vmatpush.msra.mxu0 %v315
  %893 = vmatmul.f32.gmra.mxu0 %v831
  %v894 = vpop.f32.mrf.mxu0
  %v895 = vadd.f32 0.0, %v894
  %896 = vdwg.mxu0
  %897 = vmatpush.msra.mxu0 %v376
  %898 = vmatpush.msra.mxu0 %v372
  %899 = vmatpush.msra.mxu0 %v368
  %900 = vmatpush.msra.mxu0 %v364
  %901 = vmatpush.msra.mxu0 %v360
  %902 = vmatpush.msra.mxu0 %v356
  %903 = vmatpush.msra.mxu0 %v352
  %904 = vmatpush.msra.mxu0 %v348
  %905 = vmatpush.msra.mxu0 %v344
  %906 = vmatpush.msra.mxu0 %v340
  %907 = vmatpush.msra.mxu0 %v336
  %908 = vmatpush.msra.mxu0 %v332
  %909 = vmatpush.msra.mxu0 %v328
  %910 = vmatpush.msra.mxu0 %v324
  %911 = vmatpush.msra.mxu0 %v320
  %912 = vmatpush.msra.mxu0 %v316
  %913 = vmatmul.f32.gmra.mxu0 %v831
  %v914 = vpop.f32.mrf.mxu0
  %v915 = vadd.f32 0.0, %v914
  %916 = vdwg.mxu0
  %v917 = vadd.f32 %v833, %v855
  %v918 = vadd.f32 %v834, %v875
  %v919 = vadd.f32 %v835, %v895
  %v920 = vadd.f32 %v836, %v915
  %v921 = vxor.u32 %v917, 2147483648
  %v922 = vmul.f32 %v921, 1.442695
  %v923 = vpow.pop %v922
  %v924 = vadd.f32 %v923, 1.0
  %v925 = vrcp.pop %v924
  %v926 = vmul.f32 %v924, %v925
  %v927 = vsub.f32 1.0, %v926
  %v928 = vmul.f32 %v925, %v927
  %v929 = vadd.f32 %v925, %v928
  %vm930 = vweird.f32 %v924
  %vm931 = vweird.f32 %v925
  %vm932 = vmor %vm930, %vm931
  %v933 = vsel %vm932, %v925, %v929
  %v934 = vand.u32 2147483647, %v924
  %vm935 = vcmp.eq.f32.partialorder %v934, 8.507059e+37
  %v936 = vand.u32 %v924, 2147483648
  %v937 = vor.u32 1.1754944e-38, %v936
  %v938 = vsel %vm935, %v937, %v933
  %v939 = vmul.f32 1.0, %v938
  %v940 = vxor.u32 %v918, 2147483648
  %v941 = vmul.f32 %v940, 1.442695
  %v942 = vpow.pop %v941
  %v943 = vadd.f32 %v942, 1.0
  %v944 = vrcp.pop %v943
  %v945 = vmul.f32 %v943, %v944
  %v946 = vsub.f32 1.0, %v945
  %v947 = vmul.f32 %v944, %v946
  %v948 = vadd.f32 %v944, %v947
  %vm949 = vweird.f32 %v943
  %vm950 = vweird.f32 %v944
  %vm951 = vmor %vm949, %vm950
  %v952 = vsel %vm951, %v944, %v948
  %v953 = vand.u32 2147483647, %v943
  %vm954 = vcmp.eq.f32.partialorder %v953, 8.507059e+37
  %v955 = vand.u32 %v943, 2147483648
  %v956 = vor.u32 1.1754944e-38, %v955
  %v957 = vsel %vm954, %v956, %v952
  %v958 = vmul.f32 1.0, %v957
  %v959 = vtanh.pop %v919
  %v960 = vxor.u32 %v920, 2147483648
  %v961 = vmul.f32 %v960, 1.442695
  %v962 = vpow.pop %v961
  %v963 = vadd.f32 %v962, 1.0
  %v964 = vrcp.pop %v963
  %v965 = vmul.f32 %v963, %v964
  %v966 = vsub.f32 1.0, %v965
  %v967 = vmul.f32 %v964, %v966
  %v968 = vadd.f32 %v964, %v967
  %vm969 = vweird.f32 %v963
  %vm970 = vweird.f32 %v964
  %vm971 = vmor %vm969, %vm970
  %v972 = vsel %vm971, %v964, %v968
  %v973 = vand.u32 2147483647, %v963
  %vm974 = vcmp.eq.f32.partialorder %v973, 8.507059e+37
  %v975 = vand.u32 %v963, 2147483648
  %v976 = vor.u32 1.1754944e-38, %v975
  %v977 = vsel %vm974, %v976, %v972
  %v978 = vmul.f32 1.0, %v977
  %v979 = vmul.f32 %v958, %v829
  %v980 = vmul.f32 %v939, %v959
  %v981 = vadd.f32 %v979, %v980
  %v982 = vtanh.pop %v981
  %v983 = vmul.f32 %v978, %v982
  %s984 = scalar_lea.vmem [#allocation2], 128
  %v985 = vld [vmem:[%s984] sm:$0xff]
  %v986 = vld [vmem:[%s984 + $0x8] sm:$0xff]
  %v987 = vld [vmem:[%s984 + $0x10] sm:$0xff]
  %v988 = vld [vmem:[%s984 + $0x18] sm:$0xff]
  %989 = vmatpush.msra.mxu0 %v373
  %990 = vmatpush.msra.mxu0 %v369
  %991 = vmatpush.msra.mxu0 %v365
  %992 = vmatpush.msra.mxu0 %v361
  %993 = vmatpush.msra.mxu0 %v357
  %994 = vmatpush.msra.mxu0 %v353
  %995 = vmatpush.msra.mxu0 %v349
  %996 = vmatpush.msra.mxu0 %v345
  %997 = vmatpush.msra.mxu0 %v341
  %998 = vmatpush.msra.mxu0 %v337
  %999 = vmatpush.msra.mxu0 %v333
  %1000 = vmatpush.msra.mxu0 %v329
  %1001 = vmatpush.msra.mxu0 %v325
  %1002 = vmatpush.msra.mxu0 %v321
  %1003 = vmatpush.msra.mxu0 %v317
  %1004 = vmatpush.msra.mxu0 %v313
  %1005 = vmatmul.f32.gmra.mxu0 %v983
  %v1006 = vpop.f32.mrf.mxu0
  %v1007 = vadd.f32 0.0, %v1006
  %1008 = vdwg.mxu0
  %1009 = vmatpush.msra.mxu0 %v374
  %1010 = vmatpush.msra.mxu0 %v370
  %1011 = vmatpush.msra.mxu0 %v366
  %1012 = vmatpush.msra.mxu0 %v362
  %1013 = vmatpush.msra.mxu0 %v358
  %1014 = vmatpush.msra.mxu0 %v354
  %1015 = vmatpush.msra.mxu0 %v350
  %1016 = vmatpush.msra.mxu0 %v346
  %1017 = vmatpush.msra.mxu0 %v342
  %1018 = vmatpush.msra.mxu0 %v338
  %1019 = vmatpush.msra.mxu0 %v334
  %1020 = vmatpush.msra.mxu0 %v330
  %1021 = vmatpush.msra.mxu0 %v326
  %1022 = vmatpush.msra.mxu0 %v322
  %1023 = vmatpush.msra.mxu0 %v318
  %1024 = vmatpush.msra.mxu0 %v314
  %1025 = vmatmul.f32.gmra.mxu0 %v983
  %v1026 = vpop.f32.mrf.mxu0
  %v1027 = vadd.f32 0.0, %v1026
  %1028 = vdwg.mxu0
  %1029 = vmatpush.msra.mxu0 %v375
  %1030 = vmatpush.msra.mxu0 %v371
  %1031 = vmatpush.msra.mxu0 %v367
  %1032 = vmatpush.msra.mxu0 %v363
  %1033 = vmatpush.msra.mxu0 %v359
  %1034 = vmatpush.msra.mxu0 %v355
  %1035 = vmatpush.msra.mxu0 %v351
  %1036 = vmatpush.msra.mxu0 %v347
  %1037 = vmatpush.msra.mxu0 %v343
  %1038 = vmatpush.msra.mxu0 %v339
  %1039 = vmatpush.msra.mxu0 %v335
  %1040 = vmatpush.msra.mxu0 %v331
  %1041 = vmatpush.msra.mxu0 %v327
  %1042 = vmatpush.msra.mxu0 %v323
  %1043 = vmatpush.msra.mxu0 %v319
  %1044 = vmatpush.msra.mxu0 %v315
  %1045 = vmatmul.f32.gmra.mxu0 %v983
  %v1046 = vpop.f32.mrf.mxu0
  %v1047 = vadd.f32 0.0, %v1046
  %1048 = vdwg.mxu0
  %1049 = vmatpush.msra.mxu0 %v376
  %1050 = vmatpush.msra.mxu0 %v372
  %1051 = vmatpush.msra.mxu0 %v368
  %1052 = vmatpush.msra.mxu0 %v364
  %1053 = vmatpush.msra.mxu0 %v360
  %1054 = vmatpush.msra.mxu0 %v356
  %1055 = vmatpush.msra.mxu0 %v352
  %1056 = vmatpush.msra.mxu0 %v348
  %1057 = vmatpush.msra.mxu0 %v344
  %1058 = vmatpush.msra.mxu0 %v340
  %1059 = vmatpush.msra.mxu0 %v336
  %1060 = vmatpush.msra.mxu0 %v332
  %1061 = vmatpush.msra.mxu0 %v328
  %1062 = vmatpush.msra.mxu0 %v324
  %1063 = vmatpush.msra.mxu0 %v320
  %1064 = vmatpush.msra.mxu0 %v316
  %1065 = vmatmul.f32.gmra.mxu0 %v983
  %v1066 = vpop.f32.mrf.mxu0
  %v1067 = vadd.f32 0.0, %v1066
  %1068 = vdwg.mxu0
  %v1069 = vadd.f32 %v985, %v1007
  %v1070 = vadd.f32 %v986, %v1027
  %v1071 = vadd.f32 %v987, %v1047
  %v1072 = vadd.f32 %v988, %v1067
  %v1073 = vxor.u32 %v1069, 2147483648
  %v1074 = vmul.f32 %v1073, 1.442695
  %v1075 = vpow.pop %v1074
  %v1076 = vadd.f32 %v1075, 1.0
  %v1077 = vrcp.pop %v1076
  %v1078 = vmul.f32 %v1076, %v1077
  %v1079 = vsub.f32 1.0, %v1078
  %v1080 = vmul.f32 %v1077, %v1079
  %v1081 = vadd.f32 %v1077, %v1080
  %vm1082 = vweird.f32 %v1076
  %vm1083 = vweird.f32 %v1077
  %vm1084 = vmor %vm1082, %vm1083
  %v1085 = vsel %vm1084, %v1077, %v1081
  %v1086 = vand.u32 2147483647, %v1076
  %vm1087 = vcmp.eq.f32.partialorder %v1086, 8.507059e+37
  %v1088 = vand.u32 %v1076, 2147483648
  %v1089 = vor.u32 1.1754944e-38, %v1088
  %v1090 = vsel %vm1087, %v1089, %v1085
  %v1091 = vmul.f32 1.0, %v1090
  %v1092 = vxor.u32 %v1070, 2147483648
  %v1093 = vmul.f32 %v1092, 1.442695
  %v1094 = vpow.pop %v1093
  %v1095 = vadd.f32 %v1094, 1.0
  %v1096 = vrcp.pop %v1095
  %v1097 = vmul.f32 %v1095, %v1096
  %v1098 = vsub.f32 1.0, %v1097
  %v1099 = vmul.f32 %v1096, %v1098
  %v1100 = vadd.f32 %v1096, %v1099
  %vm1101 = vweird.f32 %v1095
  %vm1102 = vweird.f32 %v1096
  %vm1103 = vmor %vm1101, %vm1102
  %v1104 = vsel %vm1103, %v1096, %v1100
  %v1105 = vand.u32 2147483647, %v1095
  %vm1106 = vcmp.eq.f32.partialorder %v1105, 8.507059e+37
  %v1107 = vand.u32 %v1095, 2147483648
  %v1108 = vor.u32 1.1754944e-38, %v1107
  %v1109 = vsel %vm1106, %v1108, %v1104
  %v1110 = vmul.f32 1.0, %v1109
  %v1111 = vtanh.pop %v1071
  %v1112 = vxor.u32 %v1072, 2147483648
  %v1113 = vmul.f32 %v1112, 1.442695
  %v1114 = vpow.pop %v1113
  %v1115 = vadd.f32 %v1114, 1.0
  %v1116 = vrcp.pop %v1115
  %v1117 = vmul.f32 %v1115, %v1116
  %v1118 = vsub.f32 1.0, %v1117
  %v1119 = vmul.f32 %v1116, %v1118
  %v1120 = vadd.f32 %v1116, %v1119
  %vm1121 = vweird.f32 %v1115
  %vm1122 = vweird.f32 %v1116
  %vm1123 = vmor %vm1121, %vm1122
  %v1124 = vsel %vm1123, %v1116, %v1120
  %v1125 = vand.u32 2147483647, %v1115
  %vm1126 = vcmp.eq.f32.partialorder %v1125, 8.507059e+37
  %v1127 = vand.u32 %v1115, 2147483648
  %v1128 = vor.u32 1.1754944e-38, %v1127
  %v1129 = vsel %vm1126, %v1128, %v1124
  %v1130 = vmul.f32 1.0, %v1129
  %v1131 = vmul.f32 %v1110, %v981
  %v1132 = vmul.f32 %v1091, %v1111
  %v1133 = vadd.f32 %v1131, %v1132
  %v1134 = vtanh.pop %v1133
  %v1135 = vmul.f32 %v1130, %v1134
  %s1136 = scalar_lea.vmem [#allocation2], 160
  %v1137 = vld [vmem:[%s1136] sm:$0xff]
  %v1138 = vld [vmem:[%s1136 + $0x8] sm:$0xff]
  %v1139 = vld [vmem:[%s1136 + $0x10] sm:$0xff]
  %v1140 = vld [vmem:[%s1136 + $0x18] sm:$0xff]
  %1141 = vmatpush.msra.mxu0 %v373
  %1142 = vmatpush.msra.mxu0 %v369
  %1143 = vmatpush.msra.mxu0 %v365
  %1144 = vmatpush.msra.mxu0 %v361
  %1145 = vmatpush.msra.mxu0 %v357
  %1146 = vmatpush.msra.mxu0 %v353
  %1147 = vmatpush.msra.mxu0 %v349
  %1148 = vmatpush.msra.mxu0 %v345
  %1149 = vmatpush.msra.mxu0 %v341
  %1150 = vmatpush.msra.mxu0 %v337
  %1151 = vmatpush.msra.mxu0 %v333
  %1152 = vmatpush.msra.mxu0 %v329
  %1153 = vmatpush.msra.mxu0 %v325
  %1154 = vmatpush.msra.mxu0 %v321
  %1155 = vmatpush.msra.mxu0 %v317
  %1156 = vmatpush.msra.mxu0 %v313
  %1157 = vmatmul.f32.gmra.mxu0 %v1135
  %v1158 = vpop.f32.mrf.mxu0
  %v1159 = vadd.f32 0.0, %v1158
  %1160 = vdwg.mxu0
  %1161 = vmatpush.msra.mxu0 %v374
  %1162 = vmatpush.msra.mxu0 %v370
  %1163 = vmatpush.msra.mxu0 %v366
  %1164 = vmatpush.msra.mxu0 %v362
  %1165 = vmatpush.msra.mxu0 %v358
  %1166 = vmatpush.msra.mxu0 %v354
  %1167 = vmatpush.msra.mxu0 %v350
  %1168 = vmatpush.msra.mxu0 %v346
  %1169 = vmatpush.msra.mxu0 %v342
  %1170 = vmatpush.msra.mxu0 %v338
  %1171 = vmatpush.msra.mxu0 %v334
  %1172 = vmatpush.msra.mxu0 %v330
  %1173 = vmatpush.msra.mxu0 %v326
  %1174 = vmatpush.msra.mxu0 %v322
  %1175 = vmatpush.msra.mxu0 %v318
  %1176 = vmatpush.msra.mxu0 %v314
  %1177 = vmatmul.f32.gmra.mxu0 %v1135
  %v1178 = vpop.f32.mrf.mxu0
  %v1179 = vadd.f32 0.0, %v1178
  %1180 = vdwg.mxu0
  %1181 = vmatpush.msra.mxu0 %v375
  %1182 = vmatpush.msra.mxu0 %v371
  %1183 = vmatpush.msra.mxu0 %v367
  %1184 = vmatpush.msra.mxu0 %v363
  %1185 = vmatpush.msra.mxu0 %v359
  %1186 = vmatpush.msra.mxu0 %v355
  %1187 = vmatpush.msra.mxu0 %v351
  %1188 = vmatpush.msra.mxu0 %v347
  %1189 = vmatpush.msra.mxu0 %v343
  %1190 = vmatpush.msra.mxu0 %v339
  %1191 = vmatpush.msra.mxu0 %v335
  %1192 = vmatpush.msra.mxu0 %v331
  %1193 = vmatpush.msra.mxu0 %v327
  %1194 = vmatpush.msra.mxu0 %v323
  %1195 = vmatpush.msra.mxu0 %v319
  %1196 = vmatpush.msra.mxu0 %v315
  %1197 = vmatmul.f32.gmra.mxu0 %v1135
  %v1198 = vpop.f32.mrf.mxu0
  %v1199 = vadd.f32 0.0, %v1198
  %1200 = vdwg.mxu0
  %1201 = vmatpush.msra.mxu0 %v376
  %1202 = vmatpush.msra.mxu0 %v372
  %1203 = vmatpush.msra.mxu0 %v368
  %1204 = vmatpush.msra.mxu0 %v364
  %1205 = vmatpush.msra.mxu0 %v360
  %1206 = vmatpush.msra.mxu0 %v356
  %1207 = vmatpush.msra.mxu0 %v352
  %1208 = vmatpush.msra.mxu0 %v348
  %1209 = vmatpush.msra.mxu0 %v344
  %1210 = vmatpush.msra.mxu0 %v340
  %1211 = vmatpush.msra.mxu0 %v336
  %1212 = vmatpush.msra.mxu0 %v332
  %1213 = vmatpush.msra.mxu0 %v328
  %1214 = vmatpush.msra.mxu0 %v324
  %1215 = vmatpush.msra.mxu0 %v320
  %1216 = vmatpush.msra.mxu0 %v316
  %1217 = vmatmul.f32.gmra.mxu0 %v1135
  %v1218 = vpop.f32.mrf.mxu0
  %v1219 = vadd.f32 0.0, %v1218
  %1220 = vdwg.mxu0
  %v1221 = vadd.f32 %v1137, %v1159
  %v1222 = vadd.f32 %v1138, %v1179
  %v1223 = vadd.f32 %v1139, %v1199
  %v1224 = vadd.f32 %v1140, %v1219
  %v1225 = vxor.u32 %v1221, 2147483648
  %v1226 = vmul.f32 %v1225, 1.442695
  %v1227 = vpow.pop %v1226
  %v1228 = vadd.f32 %v1227, 1.0
  %v1229 = vrcp.pop %v1228
  %v1230 = vmul.f32 %v1228, %v1229
  %v1231 = vsub.f32 1.0, %v1230
  %v1232 = vmul.f32 %v1229, %v1231
  %v1233 = vadd.f32 %v1229, %v1232
  %vm1234 = vweird.f32 %v1228
  %vm1235 = vweird.f32 %v1229
  %vm1236 = vmor %vm1234, %vm1235
  %v1237 = vsel %vm1236, %v1229, %v1233
  %v1238 = vand.u32 2147483647, %v1228
  %vm1239 = vcmp.eq.f32.partialorder %v1238, 8.507059e+37
  %v1240 = vand.u32 %v1228, 2147483648
  %v1241 = vor.u32 1.1754944e-38, %v1240
  %v1242 = vsel %vm1239, %v1241, %v1237
  %v1243 = vmul.f32 1.0, %v1242
  %v1244 = vxor.u32 %v1222, 2147483648
  %v1245 = vmul.f32 %v1244, 1.442695
  %v1246 = vpow.pop %v1245
  %v1247 = vadd.f32 %v1246, 1.0
  %v1248 = vrcp.pop %v1247
  %v1249 = vmul.f32 %v1247, %v1248
  %v1250 = vsub.f32 1.0, %v1249
  %v1251 = vmul.f32 %v1248, %v1250
  %v1252 = vadd.f32 %v1248, %v1251
  %vm1253 = vweird.f32 %v1247
  %vm1254 = vweird.f32 %v1248
  %vm1255 = vmor %vm1253, %vm1254
  %v1256 = vsel %vm1255, %v1248, %v1252
  %v1257 = vand.u32 2147483647, %v1247
  %vm1258 = vcmp.eq.f32.partialorder %v1257, 8.507059e+37
  %v1259 = vand.u32 %v1247, 2147483648
  %v1260 = vor.u32 1.1754944e-38, %v1259
  %v1261 = vsel %vm1258, %v1260, %v1256
  %v1262 = vmul.f32 1.0, %v1261
  %v1263 = vtanh.pop %v1223
  %v1264 = vxor.u32 %v1224, 2147483648
  %v1265 = vmul.f32 %v1264, 1.442695
  %v1266 = vpow.pop %v1265
  %v1267 = vadd.f32 %v1266, 1.0
  %v1268 = vrcp.pop %v1267
  %v1269 = vmul.f32 %v1267, %v1268
  %v1270 = vsub.f32 1.0, %v1269
  %v1271 = vmul.f32 %v1268, %v1270
  %v1272 = vadd.f32 %v1268, %v1271
  %vm1273 = vweird.f32 %v1267
  %vm1274 = vweird.f32 %v1268
  %vm1275 = vmor %vm1273, %vm1274
  %v1276 = vsel %vm1275, %v1268, %v1272
  %v1277 = vand.u32 2147483647, %v1267
  %vm1278 = vcmp.eq.f32.partialorder %v1277, 8.507059e+37
  %v1279 = vand.u32 %v1267, 2147483648
  %v1280 = vor.u32 1.1754944e-38, %v1279
  %v1281 = vsel %vm1278, %v1280, %v1276
  %v1282 = vmul.f32 1.0, %v1281
  %v1283 = vmul.f32 %v1262, %v1133
  %v1284 = vmul.f32 %v1243, %v1263
  %v1285 = vadd.f32 %v1283, %v1284
  %v1286 = vtanh.pop %v1285
  %v1287 = vmul.f32 %v1282, %v1286
  %s1288 = scalar_lea.vmem [#allocation2], 192
  %v1289 = vld [vmem:[%s1288] sm:$0xff]
  %v1290 = vld [vmem:[%s1288 + $0x8] sm:$0xff]
  %v1291 = vld [vmem:[%s1288 + $0x10] sm:$0xff]
  %v1292 = vld [vmem:[%s1288 + $0x18] sm:$0xff]
  %1293 = vmatpush.msra.mxu0 %v373
  %1294 = vmatpush.msra.mxu0 %v369
  %1295 = vmatpush.msra.mxu0 %v365
  %1296 = vmatpush.msra.mxu0 %v361
  %1297 = vmatpush.msra.mxu0 %v357
  %1298 = vmatpush.msra.mxu0 %v353
  %1299 = vmatpush.msra.mxu0 %v349
  %1300 = vmatpush.msra.mxu0 %v345
  %1301 = vmatpush.msra.mxu0 %v341
  %1302 = vmatpush.msra.mxu0 %v337
  %1303 = vmatpush.msra.mxu0 %v333
  %1304 = vmatpush.msra.mxu0 %v329
  %1305 = vmatpush.msra.mxu0 %v325
  %1306 = vmatpush.msra.mxu0 %v321
  %1307 = vmatpush.msra.mxu0 %v317
  %1308 = vmatpush.msra.mxu0 %v313
  %1309 = vmatmul.f32.gmra.mxu0 %v1287
  %v1310 = vpop.f32.mrf.mxu0
  %v1311 = vadd.f32 0.0, %v1310
  %1312 = vdwg.mxu0
  %1313 = vmatpush.msra.mxu0 %v374
  %1314 = vmatpush.msra.mxu0 %v370
  %1315 = vmatpush.msra.mxu0 %v366
  %1316 = vmatpush.msra.mxu0 %v362
  %1317 = vmatpush.msra.mxu0 %v358
  %1318 = vmatpush.msra.mxu0 %v354
  %1319 = vmatpush.msra.mxu0 %v350
  %1320 = vmatpush.msra.mxu0 %v346
  %1321 = vmatpush.msra.mxu0 %v342
  %1322 = vmatpush.msra.mxu0 %v338
  %1323 = vmatpush.msra.mxu0 %v334
  %1324 = vmatpush.msra.mxu0 %v330
  %1325 = vmatpush.msra.mxu0 %v326
  %1326 = vmatpush.msra.mxu0 %v322
  %1327 = vmatpush.msra.mxu0 %v318
  %1328 = vmatpush.msra.mxu0 %v314
  %1329 = vmatmul.f32.gmra.mxu0 %v1287
  %v1330 = vpop.f32.mrf.mxu0
  %v1331 = vadd.f32 0.0, %v1330
  %1332 = vdwg.mxu0
  %1333 = vmatpush.msra.mxu0 %v375
  %1334 = vmatpush.msra.mxu0 %v371
  %1335 = vmatpush.msra.mxu0 %v367
  %1336 = vmatpush.msra.mxu0 %v363
  %1337 = vmatpush.msra.mxu0 %v359
  %1338 = vmatpush.msra.mxu0 %v355
  %1339 = vmatpush.msra.mxu0 %v351
  %1340 = vmatpush.msra.mxu0 %v347
  %1341 = vmatpush.msra.mxu0 %v343
  %1342 = vmatpush.msra.mxu0 %v339
  %1343 = vmatpush.msra.mxu0 %v335
  %1344 = vmatpush.msra.mxu0 %v331
  %1345 = vmatpush.msra.mxu0 %v327
  %1346 = vmatpush.msra.mxu0 %v323
  %1347 = vmatpush.msra.mxu0 %v319
  %1348 = vmatpush.msra.mxu0 %v315
  %1349 = vmatmul.f32.gmra.mxu0 %v1287
  %v1350 = vpop.f32.mrf.mxu0
  %v1351 = vadd.f32 0.0, %v1350
  %1352 = vdwg.mxu0
  %1353 = vmatpush.msra.mxu0 %v376
  %1354 = vmatpush.msra.mxu0 %v372
  %1355 = vmatpush.msra.mxu0 %v368
  %1356 = vmatpush.msra.mxu0 %v364
  %1357 = vmatpush.msra.mxu0 %v360
  %1358 = vmatpush.msra.mxu0 %v356
  %1359 = vmatpush.msra.mxu0 %v352
  %1360 = vmatpush.msra.mxu0 %v348
  %1361 = vmatpush.msra.mxu0 %v344
  %1362 = vmatpush.msra.mxu0 %v340
  %1363 = vmatpush.msra.mxu0 %v336
  %1364 = vmatpush.msra.mxu0 %v332
  %1365 = vmatpush.msra.mxu0 %v328
  %1366 = vmatpush.msra.mxu0 %v324
  %1367 = vmatpush.msra.mxu0 %v320
  %1368 = vmatpush.msra.mxu0 %v316
  %1369 = vmatmul.f32.gmra.mxu0 %v1287
  %v1370 = vpop.f32.mrf.mxu0
  %v1371 = vadd.f32 0.0, %v1370
  %1372 = vdwg.mxu0
  %v1373 = vadd.f32 %v1289, %v1311
  %v1374 = vadd.f32 %v1290, %v1331
  %v1375 = vadd.f32 %v1291, %v1351
  %v1376 = vadd.f32 %v1292, %v1371
  %v1377 = vxor.u32 %v1373, 2147483648
  %v1378 = vmul.f32 %v1377, 1.442695
  %v1379 = vpow.pop %v1378
  %v1380 = vadd.f32 %v1379, 1.0
  %v1381 = vrcp.pop %v1380
  %v1382 = vmul.f32 %v1380, %v1381
  %v1383 = vsub.f32 1.0, %v1382
  %v1384 = vmul.f32 %v1381, %v1383
  %v1385 = vadd.f32 %v1381, %v1384
  %vm1386 = vweird.f32 %v1380
  %vm1387 = vweird.f32 %v1381
  %vm1388 = vmor %vm1386, %vm1387
  %v1389 = vsel %vm1388, %v1381, %v1385
  %v1390 = vand.u32 2147483647, %v1380
  %vm1391 = vcmp.eq.f32.partialorder %v1390, 8.507059e+37
  %v1392 = vand.u32 %v1380, 2147483648
  %v1393 = vor.u32 1.1754944e-38, %v1392
  %v1394 = vsel %vm1391, %v1393, %v1389
  %v1395 = vmul.f32 1.0, %v1394
  %v1396 = vxor.u32 %v1374, 2147483648
  %v1397 = vmul.f32 %v1396, 1.442695
  %v1398 = vpow.pop %v1397
  %v1399 = vadd.f32 %v1398, 1.0
  %v1400 = vrcp.pop %v1399
  %v1401 = vmul.f32 %v1399, %v1400
  %v1402 = vsub.f32 1.0, %v1401
  %v1403 = vmul.f32 %v1400, %v1402
  %v1404 = vadd.f32 %v1400, %v1403
  %vm1405 = vweird.f32 %v1399
  %vm1406 = vweird.f32 %v1400
  %vm1407 = vmor %vm1405, %vm1406
  %v1408 = vsel %vm1407, %v1400, %v1404
  %v1409 = vand.u32 2147483647, %v1399
  %vm1410 = vcmp.eq.f32.partialorder %v1409, 8.507059e+37
  %v1411 = vand.u32 %v1399, 2147483648
  %v1412 = vor.u32 1.1754944e-38, %v1411
  %v1413 = vsel %vm1410, %v1412, %v1408
  %v1414 = vmul.f32 1.0, %v1413
  %v1415 = vtanh.pop %v1375
  %v1416 = vxor.u32 %v1376, 2147483648
  %v1417 = vmul.f32 %v1416, 1.442695
  %v1418 = vpow.pop %v1417
  %v1419 = vadd.f32 %v1418, 1.0
  %v1420 = vrcp.pop %v1419
  %v1421 = vmul.f32 %v1419, %v1420
  %v1422 = vsub.f32 1.0, %v1421
  %v1423 = vmul.f32 %v1420, %v1422
  %v1424 = vadd.f32 %v1420, %v1423
  %vm1425 = vweird.f32 %v1419
  %vm1426 = vweird.f32 %v1420
  %vm1427 = vmor %vm1425, %vm1426
  %v1428 = vsel %vm1427, %v1420, %v1424
  %v1429 = vand.u32 2147483647, %v1419
  %vm1430 = vcmp.eq.f32.partialorder %v1429, 8.507059e+37
  %v1431 = vand.u32 %v1419, 2147483648
  %v1432 = vor.u32 1.1754944e-38, %v1431
  %v1433 = vsel %vm1430, %v1432, %v1428
  %v1434 = vmul.f32 1.0, %v1433
  %v1435 = vmul.f32 %v1414, %v1285
  %v1436 = vmul.f32 %v1395, %v1415
  %v1437 = vadd.f32 %v1435, %v1436
  %v1438 = vtanh.pop %v1437
  %v1439 = vmul.f32 %v1434, %v1438
  %s1440 = scalar_lea.vmem [#allocation2], 224
  %v1441 = vld [vmem:[%s1440] sm:$0xff]
  %v1442 = vld [vmem:[%s1440 + $0x8] sm:$0xff]
  %v1443 = vld [vmem:[%s1440 + $0x10] sm:$0xff]
  %v1444 = vld [vmem:[%s1440 + $0x18] sm:$0xff]
  %1445 = vmatpush.msra.mxu0 %v373
  %1446 = vmatpush.msra.mxu0 %v369
  %1447 = vmatpush.msra.mxu0 %v365
  %1448 = vmatpush.msra.mxu0 %v361
  %1449 = vmatpush.msra.mxu0 %v357
  %1450 = vmatpush.msra.mxu0 %v353
  %1451 = vmatpush.msra.mxu0 %v349
  %1452 = vmatpush.msra.mxu0 %v345
  %1453 = vmatpush.msra.mxu0 %v341
  %1454 = vmatpush.msra.mxu0 %v337
  %1455 = vmatpush.msra.mxu0 %v333
  %1456 = vmatpush.msra.mxu0 %v329
  %1457 = vmatpush.msra.mxu0 %v325
  %1458 = vmatpush.msra.mxu0 %v321
  %1459 = vmatpush.msra.mxu0 %v317
  %1460 = vmatpush.msra.mxu0 %v313
  %1461 = vmatmul.f32.gmra.mxu0 %v1439
  %v1462 = vpop.f32.mrf.mxu0
  %v1463 = vadd.f32 0.0, %v1462
  %1464 = vdwg.mxu0
  %1465 = vmatpush.msra.mxu0 %v374
  %1466 = vmatpush.msra.mxu0 %v370
  %1467 = vmatpush.msra.mxu0 %v366
  %1468 = vmatpush.msra.mxu0 %v362
  %1469 = vmatpush.msra.mxu0 %v358
  %1470 = vmatpush.msra.mxu0 %v354
  %1471 = vmatpush.msra.mxu0 %v350
  %1472 = vmatpush.msra.mxu0 %v346
  %1473 = vmatpush.msra.mxu0 %v342
  %1474 = vmatpush.msra.mxu0 %v338
  %1475 = vmatpush.msra.mxu0 %v334
  %1476 = vmatpush.msra.mxu0 %v330
  %1477 = vmatpush.msra.mxu0 %v326
  %1478 = vmatpush.msra.mxu0 %v322
  %1479 = vmatpush.msra.mxu0 %v318
  %1480 = vmatpush.msra.mxu0 %v314
  %1481 = vmatmul.f32.gmra.mxu0 %v1439
  %v1482 = vpop.f32.mrf.mxu0
  %v1483 = vadd.f32 0.0, %v1482
  %1484 = vdwg.mxu0
  %1485 = vmatpush.msra.mxu0 %v375
  %1486 = vmatpush.msra.mxu0 %v371
  %1487 = vmatpush.msra.mxu0 %v367
  %1488 = vmatpush.msra.mxu0 %v363
  %1489 = vmatpush.msra.mxu0 %v359
  %1490 = vmatpush.msra.mxu0 %v355
  %1491 = vmatpush.msra.mxu0 %v351
  %1492 = vmatpush.msra.mxu0 %v347
  %1493 = vmatpush.msra.mxu0 %v343
  %1494 = vmatpush.msra.mxu0 %v339
  %1495 = vmatpush.msra.mxu0 %v335
  %1496 = vmatpush.msra.mxu0 %v331
  %1497 = vmatpush.msra.mxu0 %v327
  %1498 = vmatpush.msra.mxu0 %v323
  %1499 = vmatpush.msra.mxu0 %v319
  %1500 = vmatpush.msra.mxu0 %v315
  %1501 = vmatmul.f32.gmra.mxu0 %v1439
  %v1502 = vpop.f32.mrf.mxu0
  %v1503 = vadd.f32 0.0, %v1502
  %1504 = vdwg.mxu0
  %1505 = vmatpush.msra.mxu0 %v376
  %1506 = vmatpush.msra.mxu0 %v372
  %1507 = vmatpush.msra.mxu0 %v368
  %1508 = vmatpush.msra.mxu0 %v364
  %1509 = vmatpush.msra.mxu0 %v360
  %1510 = vmatpush.msra.mxu0 %v356
  %1511 = vmatpush.msra.mxu0 %v352
  %1512 = vmatpush.msra.mxu0 %v348
  %1513 = vmatpush.msra.mxu0 %v344
  %1514 = vmatpush.msra.mxu0 %v340
  %1515 = vmatpush.msra.mxu0 %v336
  %1516 = vmatpush.msra.mxu0 %v332
  %1517 = vmatpush.msra.mxu0 %v328
  %1518 = vmatpush.msra.mxu0 %v324
  %1519 = vmatpush.msra.mxu0 %v320
  %1520 = vmatpush.msra.mxu0 %v316
  %1521 = vmatmul.f32.gmra.mxu0 %v1439
  %v1522 = vpop.f32.mrf.mxu0
  %v1523 = vadd.f32 0.0, %v1522
  %1524 = vdwg.mxu0
  %v1525 = vadd.f32 %v1441, %v1463
  %v1526 = vadd.f32 %v1442, %v1483
  %v1527 = vadd.f32 %v1443, %v1503
  %v1528 = vadd.f32 %v1444, %v1523
  %v1529 = vxor.u32 %v1525, 2147483648
  %v1530 = vmul.f32 %v1529, 1.442695
  %v1531 = vpow.pop %v1530
  %v1532 = vadd.f32 %v1531, 1.0
  %v1533 = vrcp.pop %v1532
  %v1534 = vmul.f32 %v1532, %v1533
  %v1535 = vsub.f32 1.0, %v1534
  %v1536 = vmul.f32 %v1533, %v1535
  %v1537 = vadd.f32 %v1533, %v1536
  %vm1538 = vweird.f32 %v1532
  %vm1539 = vweird.f32 %v1533
  %vm1540 = vmor %vm1538, %vm1539
  %v1541 = vsel %vm1540, %v1533, %v1537
  %v1542 = vand.u32 2147483647, %v1532
  %vm1543 = vcmp.eq.f32.partialorder %v1542, 8.507059e+37
  %v1544 = vand.u32 %v1532, 2147483648
  %v1545 = vor.u32 1.1754944e-38, %v1544
  %v1546 = vsel %vm1543, %v1545, %v1541
  %v1547 = vmul.f32 1.0, %v1546
  %v1548 = vxor.u32 %v1526, 2147483648
  %v1549 = vmul.f32 %v1548, 1.442695
  %v1550 = vpow.pop %v1549
  %v1551 = vadd.f32 %v1550, 1.0
  %v1552 = vrcp.pop %v1551
  %v1553 = vmul.f32 %v1551, %v1552
  %v1554 = vsub.f32 1.0, %v1553
  %v1555 = vmul.f32 %v1552, %v1554
  %v1556 = vadd.f32 %v1552, %v1555
  %vm1557 = vweird.f32 %v1551
  %vm1558 = vweird.f32 %v1552
  %vm1559 = vmor %vm1557, %vm1558
  %v1560 = vsel %vm1559, %v1552, %v1556
  %v1561 = vand.u32 2147483647, %v1551
  %vm1562 = vcmp.eq.f32.partialorder %v1561, 8.507059e+37
  %v1563 = vand.u32 %v1551, 2147483648
  %v1564 = vor.u32 1.1754944e-38, %v1563
  %v1565 = vsel %vm1562, %v1564, %v1560
  %v1566 = vmul.f32 1.0, %v1565
  %v1567 = vtanh.pop %v1527
  %v1568 = vxor.u32 %v1528, 2147483648
  %v1569 = vmul.f32 %v1568, 1.442695
  %v1570 = vpow.pop %v1569
  %v1571 = vadd.f32 %v1570, 1.0
  %v1572 = vrcp.pop %v1571
  %v1573 = vmul.f32 %v1571, %v1572
  %v1574 = vsub.f32 1.0, %v1573
  %v1575 = vmul.f32 %v1572, %v1574
  %v1576 = vadd.f32 %v1572, %v1575
  %vm1577 = vweird.f32 %v1571
  %vm1578 = vweird.f32 %v1572
  %vm1579 = vmor %vm1577, %vm1578
  %v1580 = vsel %vm1579, %v1572, %v1576
  %v1581 = vand.u32 2147483647, %v1571
  %vm1582 = vcmp.eq.f32.partialorder %v1581, 8.507059e+37
  %v1583 = vand.u32 %v1571, 2147483648
  %v1584 = vor.u32 1.1754944e-38, %v1583
  %v1585 = vsel %vm1582, %v1584, %v1580
  %v1586 = vmul.f32 1.0, %v1585
  %v1587 = vmul.f32 %v1566, %v1437
  %v1588 = vmul.f32 %v1547, %v1567
  %v1589 = vadd.f32 %v1587, %v1588
  %v1590 = vtanh.pop %v1589
  %v1591 = vmul.f32 %v1586, %v1590
  %v1592 = vld [vmem:[%s4] sm:$0xff]
  %v1593 = vld [vmem:[%s4 + $0x8] sm:$0xff]
  %v1594 = vld [vmem:[%s4 + $0x10] sm:$0xff]
  %v1595 = vld [vmem:[%s4 + $0x18] sm:$0xff]
  %v1596 = vld [vmem:[%s4 + $0x20] sm:$0xff]
  %v1597 = vld [vmem:[%s4 + $0x28] sm:$0xff]
  %v1598 = vld [vmem:[%s4 + $0x30] sm:$0xff]
  %v1599 = vld [vmem:[%s4 + $0x38] sm:$0xff]
  %v1600 = vld [vmem:[%s4 + $0x40] sm:$0xff]
  %v1601 = vld [vmem:[%s4 + $0x48] sm:$0xff]
  %v1602 = vld [vmem:[%s4 + $0x50] sm:$0xff]
  %v1603 = vld [vmem:[%s4 + $0x58] sm:$0xff]
  %v1604 = vld [vmem:[%s4 + $0x60] sm:$0xff]
  %v1605 = vld [vmem:[%s4 + $0x68] sm:$0xff]
  %v1606 = vld [vmem:[%s4 + $0x70] sm:$0xff]
  %v1607 = vld [vmem:[%s4 + $0x78] sm:$0xff]
  %v1608 = vld [vmem:[%s4 + $0x80] sm:$0xff]
  %v1609 = vld [vmem:[%s4 + $0x88] sm:$0xff]
  %v1610 = vld [vmem:[%s4 + $0x90] sm:$0xff]
  %v1611 = vld [vmem:[%s4 + $0x98] sm:$0xff]
  %v1612 = vld [vmem:[%s4 + $0xa0] sm:$0xff]
  %v1613 = vld [vmem:[%s4 + $0xa8] sm:$0xff]
  %v1614 = vld [vmem:[%s4 + $0xb0] sm:$0xff]
  %v1615 = vld [vmem:[%s4 + $0xb8] sm:$0xff]
  %v1616 = vld [vmem:[%s4 + $0xc0] sm:$0xff]
  %v1617 = vld [vmem:[%s4 + $0xc8] sm:$0xff]
  %v1618 = vld [vmem:[%s4 + $0xd0] sm:$0xff]
  %v1619 = vld [vmem:[%s4 + $0xd8] sm:$0xff]
  %v1620 = vld [vmem:[%s4 + $0xe0] sm:$0xff]
  %v1621 = vld [vmem:[%s4 + $0xe8] sm:$0xff]
  %v1622 = vld [vmem:[%s4 + $0xf0] sm:$0xff]
  %v1623 = vld [vmem:[%s4 + $0xf8] sm:$0xff]
  %v1624 = vld [vmem:[%s4 + $0x100] sm:$0xff]
  %v1625 = vld [vmem:[%s4 + $0x108] sm:$0xff]
  %v1626 = vld [vmem:[%s4 + $0x110] sm:$0xff]
  %v1627 = vld [vmem:[%s4 + $0x118] sm:$0xff]
  %v1628 = vld [vmem:[%s4 + $0x120] sm:$0xff]
  %v1629 = vld [vmem:[%s4 + $0x128] sm:$0xff]
  %v1630 = vld [vmem:[%s4 + $0x130] sm:$0xff]
  %v1631 = vld [vmem:[%s4 + $0x138] sm:$0xff]
  %v1632 = vld [vmem:[%s4 + $0x140] sm:$0xff]
  %v1633 = vld [vmem:[%s4 + $0x148] sm:$0xff]
  %v1634 = vld [vmem:[%s4 + $0x150] sm:$0xff]
  %v1635 = vld [vmem:[%s4 + $0x158] sm:$0xff]
  %v1636 = vld [vmem:[%s4 + $0x160] sm:$0xff]
  %v1637 = vld [vmem:[%s4 + $0x168] sm:$0xff]
  %v1638 = vld [vmem:[%s4 + $0x170] sm:$0xff]
  %v1639 = vld [vmem:[%s4 + $0x178] sm:$0xff]
  %v1640 = vld [vmem:[%s4 + $0x180] sm:$0xff]
  %v1641 = vld [vmem:[%s4 + $0x188] sm:$0xff]
  %v1642 = vld [vmem:[%s4 + $0x190] sm:$0xff]
  %v1643 = vld [vmem:[%s4 + $0x198] sm:$0xff]
  %v1644 = vld [vmem:[%s4 + $0x1a0] sm:$0xff]
  %v1645 = vld [vmem:[%s4 + $0x1a8] sm:$0xff]
  %v1646 = vld [vmem:[%s4 + $0x1b0] sm:$0xff]
  %v1647 = vld [vmem:[%s4 + $0x1b8] sm:$0xff]
  %v1648 = vld [vmem:[%s4 + $0x1c0] sm:$0xff]
  %v1649 = vld [vmem:[%s4 + $0x1c8] sm:$0xff]
  %v1650 = vld [vmem:[%s4 + $0x1d0] sm:$0xff]
  %v1651 = vld [vmem:[%s4 + $0x1d8] sm:$0xff]
  %v1652 = vld [vmem:[%s4 + $0x1e0] sm:$0xff]
  %v1653 = vld [vmem:[%s4 + $0x1e8] sm:$0xff]
  %v1654 = vld [vmem:[%s4 + $0x1f0] sm:$0xff]
  %v1655 = vld [vmem:[%s4 + $0x1f8] sm:$0xff]
  %v1656 = vld [vmem:[%s5] sm:$0xf]
  %v1658 = vperm.slane %v1656, 0
  %v1659 = vperm.slane %v1656, 1
  %v1660 = vperm.slane %v1656, 2
  %v1661 = vperm.slane %v1656, 3
  %1666 = vmatpush.msra.mxu0 %v1652
  %1667 = vmatpush.msra.mxu0 %v1648
  %1668 = vmatpush.msra.mxu0 %v1644
  %1669 = vmatpush.msra.mxu0 %v1640
  %1670 = vmatpush.msra.mxu0 %v1636
  %1671 = vmatpush.msra.mxu0 %v1632
  %1672 = vmatpush.msra.mxu0 %v1628
  %1673 = vmatpush.msra.mxu0 %v1624
  %1674 = vmatpush.msra.mxu0 %v1620
  %1675 = vmatpush.msra.mxu0 %v1616
  %1676 = vmatpush.msra.mxu0 %v1612
  %1677 = vmatpush.msra.mxu0 %v1608
  %1678 = vmatpush.msra.mxu0 %v1604
  %1679 = vmatpush.msra.mxu0 %v1600
  %1680 = vmatpush.msra.mxu0 %v1596
  %1681 = vmatpush.msra.mxu0 %v1592
  %1682 = vmatmul.f32.gmra.mxu0 %v1591
  %v1683 = vpop.f32.mrf.mxu0
  %v1684 = vadd.f32 %v1658, %v1683
  %1685 = vdwg.mxu0
  %1686 = vmatpush.msra.mxu0 %v1653
  %1687 = vmatpush.msra.mxu0 %v1649
  %1688 = vmatpush.msra.mxu0 %v1645
  %1689 = vmatpush.msra.mxu0 %v1641
  %1690 = vmatpush.msra.mxu0 %v1637
  %1691 = vmatpush.msra.mxu0 %v1633
  %1692 = vmatpush.msra.mxu0 %v1629
  %1693 = vmatpush.msra.mxu0 %v1625
  %1694 = vmatpush.msra.mxu0 %v1621
  %1695 = vmatpush.msra.mxu0 %v1617
  %1696 = vmatpush.msra.mxu0 %v1613
  %1697 = vmatpush.msra.mxu0 %v1609
  %1698 = vmatpush.msra.mxu0 %v1605
  %1699 = vmatpush.msra.mxu0 %v1601
  %1700 = vmatpush.msra.mxu0 %v1597
  %1701 = vmatpush.msra.mxu0 %v1593
  %1702 = vmatmul.f32.gmra.mxu0 %v1591
  %v1703 = vpop.f32.mrf.mxu0
  %v1704 = vadd.f32 %v1659, %v1703
  %1705 = vdwg.mxu0
  %1706 = vmatpush.msra.mxu0 %v1654
  %1707 = vmatpush.msra.mxu0 %v1650
  %1708 = vmatpush.msra.mxu0 %v1646
  %1709 = vmatpush.msra.mxu0 %v1642
  %1710 = vmatpush.msra.mxu0 %v1638
  %1711 = vmatpush.msra.mxu0 %v1634
  %1712 = vmatpush.msra.mxu0 %v1630
  %1713 = vmatpush.msra.mxu0 %v1626
  %1714 = vmatpush.msra.mxu0 %v1622
  %1715 = vmatpush.msra.mxu0 %v1618
  %1716 = vmatpush.msra.mxu0 %v1614
  %1717 = vmatpush.msra.mxu0 %v1610
  %1718 = vmatpush.msra.mxu0 %v1606
  %1719 = vmatpush.msra.mxu0 %v1602
  %1720 = vmatpush.msra.mxu0 %v1598
  %1721 = vmatpush.msra.mxu0 %v1594
  %1722 = vmatmul.f32.gmra.mxu0 %v1591
  %v1723 = vpop.f32.mrf.mxu0
  %v1724 = vadd.f32 %v1660, %v1723
  %1725 = vdwg.mxu0
  %1726 = vmatpush.msra.mxu0 %v1655
  %1727 = vmatpush.msra.mxu0 %v1651
  %1728 = vmatpush.msra.mxu0 %v1647
  %1729 = vmatpush.msra.mxu0 %v1643
  %1730 = vmatpush.msra.mxu0 %v1639
  %1731 = vmatpush.msra.mxu0 %v1635
  %1732 = vmatpush.msra.mxu0 %v1631
  %1733 = vmatpush.msra.mxu0 %v1627
  %1734 = vmatpush.msra.mxu0 %v1623
  %1735 = vmatpush.msra.mxu0 %v1619
  %1736 = vmatpush.msra.mxu0 %v1615
  %1737 = vmatpush.msra.mxu0 %v1611
  %1738 = vmatpush.msra.mxu0 %v1607
  %1739 = vmatpush.msra.mxu0 %v1603
  %1740 = vmatpush.msra.mxu0 %v1599
  %1741 = vmatpush.msra.mxu0 %v1595
  %1742 = vmatmul.f32.gmra.mxu0 %v1591
  %v1743 = vpop.f32.mrf.mxu0
  %v1744 = vadd.f32 %v1661, %v1743
  %1745 = vdwg.mxu0
  %v1746 = vxor.u32 %v1684, 2147483648
  %v1747 = vmul.f32 %v1746, 1.442695
  %v1748 = vpow.pop %v1747
  %v1749 = vadd.f32 %v1748, 1.0
  %v1750 = vrcp.pop %v1749
  %v1751 = vmul.f32 %v1749, %v1750
  %v1752 = vsub.f32 1.0, %v1751
  %v1753 = vmul.f32 %v1750, %v1752
  %v1754 = vadd.f32 %v1750, %v1753
  %vm1755 = vweird.f32 %v1749
  %vm1756 = vweird.f32 %v1750
  %vm1757 = vmor %vm1755, %vm1756
  %v1758 = vsel %vm1757, %v1750, %v1754
  %v1759 = vand.u32 2147483647, %v1749
  %vm1760 = vcmp.eq.f32.partialorder %v1759, 8.507059e+37
  %v1761 = vand.u32 %v1749, 2147483648
  %v1762 = vor.u32 1.1754944e-38, %v1761
  %v1763 = vsel %vm1760, %v1762, %v1758
  %v1764 = vmul.f32 1.0, %v1763
  %v1765 = vxor.u32 %v1704, 2147483648
  %v1766 = vmul.f32 %v1765, 1.442695
  %v1767 = vpow.pop %v1766
  %v1768 = vadd.f32 %v1767, 1.0
  %v1769 = vrcp.pop %v1768
  %v1770 = vmul.f32 %v1768, %v1769
  %v1771 = vsub.f32 1.0, %v1770
  %v1772 = vmul.f32 %v1769, %v1771
  %v1773 = vadd.f32 %v1769, %v1772
  %vm1774 = vweird.f32 %v1768
  %vm1775 = vweird.f32 %v1769
  %vm1776 = vmor %vm1774, %vm1775
  %v1777 = vsel %vm1776, %v1769, %v1773
  %v1778 = vand.u32 2147483647, %v1768
  %vm1779 = vcmp.eq.f32.partialorder %v1778, 8.507059e+37
  %v1780 = vand.u32 %v1768, 2147483648
  %v1781 = vor.u32 1.1754944e-38, %v1780
  %v1782 = vsel %vm1779, %v1781, %v1777
  %v1783 = vmul.f32 1.0, %v1782
  %v1784 = vtanh.pop %v1724
  %v1785 = vxor.u32 %v1744, 2147483648
  %v1786 = vmul.f32 %v1785, 1.442695
  %v1787 = vpow.pop %v1786
  %v1788 = vadd.f32 %v1787, 1.0
  %v1789 = vrcp.pop %v1788
  %v1790 = vmul.f32 %v1788, %v1789
  %v1791 = vsub.f32 1.0, %v1790
  %v1792 = vmul.f32 %v1789, %v1791
  %v1793 = vadd.f32 %v1789, %v1792
  %vm1794 = vweird.f32 %v1788
  %vm1795 = vweird.f32 %v1789
  %vm1796 = vmor %vm1794, %vm1795
  %v1797 = vsel %vm1796, %v1789, %v1793
  %v1798 = vand.u32 2147483647, %v1788
  %vm1799 = vcmp.eq.f32.partialorder %v1798, 8.507059e+37
  %v1800 = vand.u32 %v1788, 2147483648
  %v1801 = vor.u32 1.1754944e-38, %v1800
  %v1802 = vsel %vm1799, %v1801, %v1797
  %v1803 = vmul.f32 1.0, %v1802
  %v1804 = vmul.f32 %v1783, %v1589
  %v1805 = vmul.f32 %v1764, %v1784
  %v1806 = vadd.f32 %v1804, %v1805
  %v1807 = vtanh.pop %v1806
  %v1808 = vmul.f32 %v1803, %v1807
  %1809 = vst [vmem:[#allocation3] sm:$0xff] %v1808
  %v1810 = vld [vmem:[%s6] sm:$0xff]
  %v1811 = vld [vmem:[%s6 + $0x8] sm:$0xff]
  %v1812 = vld [vmem:[%s6 + $0x10] sm:$0xff]
  %v1813 = vld [vmem:[%s6 + $0x18] sm:$0xff]
  %v1814 = vld [vmem:[%s6 + $0x20] sm:$0xff]
  %v1815 = vld [vmem:[%s6 + $0x28] sm:$0xff]
  %v1816 = vld [vmem:[%s6 + $0x30] sm:$0xff]
  %v1817 = vld [vmem:[%s6 + $0x38] sm:$0xff]
  %v1818 = vld [vmem:[%s6 + $0x40] sm:$0xff]
  %v1819 = vld [vmem:[%s6 + $0x48] sm:$0xff]
  %v1820 = vld [vmem:[%s6 + $0x50] sm:$0xff]
  %v1821 = vld [vmem:[%s6 + $0x58] sm:$0xff]
  %v1822 = vld [vmem:[%s6 + $0x60] sm:$0xff]
  %v1823 = vld [vmem:[%s6 + $0x68] sm:$0xff]
  %v1824 = vld [vmem:[%s6 + $0x70] sm:$0xff]
  %v1825 = vld [vmem:[%s6 + $0x78] sm:$0xff]
  %v1826 = vld [vmem:[%s6 + $0x80] sm:$0xff]
  %v1827 = vld [vmem:[%s6 + $0x88] sm:$0xff]
  %v1828 = vld [vmem:[%s6 + $0x90] sm:$0xff]
  %v1829 = vld [vmem:[%s6 + $0x98] sm:$0xff]
  %v1830 = vld [vmem:[%s6 + $0xa0] sm:$0xff]
  %v1831 = vld [vmem:[%s6 + $0xa8] sm:$0xff]
  %v1832 = vld [vmem:[%s6 + $0xb0] sm:$0xff]
  %v1833 = vld [vmem:[%s6 + $0xb8] sm:$0xff]
  %v1834 = vld [vmem:[%s6 + $0xc0] sm:$0xff]
  %v1835 = vld [vmem:[%s6 + $0xc8] sm:$0xff]
  %v1836 = vld [vmem:[%s6 + $0xd0] sm:$0xff]
  %v1837 = vld [vmem:[%s6 + $0xd8] sm:$0xff]
  %v1838 = vld [vmem:[%s6 + $0xe0] sm:$0xff]
  %v1839 = vld [vmem:[%s6 + $0xe8] sm:$0xff]
  %v1840 = vld [vmem:[%s6 + $0xf0] sm:$0xff]
  %v1841 = vld [vmem:[%s6 + $0xf8] sm:$0xff]
  %v1842 = vld [vmem:[%s6 + $0x100] sm:$0xff]
  %v1843 = vld [vmem:[%s6 + $0x108] sm:$0xff]
  %v1844 = vld [vmem:[%s6 + $0x110] sm:$0xff]
  %v1845 = vld [vmem:[%s6 + $0x118] sm:$0xff]
  %v1846 = vld [vmem:[%s6 + $0x120] sm:$0xff]
  %v1847 = vld [vmem:[%s6 + $0x128] sm:$0xff]
  %v1848 = vld [vmem:[%s6 + $0x130] sm:$0xff]
  %v1849 = vld [vmem:[%s6 + $0x138] sm:$0xff]
  %v1850 = vld [vmem:[%s6 + $0x140] sm:$0xff]
  %v1851 = vld [vmem:[%s6 + $0x148] sm:$0xff]
  %v1852 = vld [vmem:[%s6 + $0x150] sm:$0xff]
  %v1853 = vld [vmem:[%s6 + $0x158] sm:$0xff]
  %v1854 = vld [vmem:[%s6 + $0x160] sm:$0xff]
  %v1855 = vld [vmem:[%s6 + $0x168] sm:$0xff]
  %v1856 = vld [vmem:[%s6 + $0x170] sm:$0xff]
  %v1857 = vld [vmem:[%s6 + $0x178] sm:$0xff]
  %v1858 = vld [vmem:[%s6 + $0x180] sm:$0xff]
  %v1859 = vld [vmem:[%s6 + $0x188] sm:$0xff]
  %v1860 = vld [vmem:[%s6 + $0x190] sm:$0xff]
  %v1861 = vld [vmem:[%s6 + $0x198] sm:$0xff]
  %v1862 = vld [vmem:[%s6 + $0x1a0] sm:$0xff]
  %v1863 = vld [vmem:[%s6 + $0x1a8] sm:$0xff]
  %v1864 = vld [vmem:[%s6 + $0x1b0] sm:$0xff]
  %v1865 = vld [vmem:[%s6 + $0x1b8] sm:$0xff]
  %v1866 = vld [vmem:[%s6 + $0x1c0] sm:$0xff]
  %v1867 = vld [vmem:[%s6 + $0x1c8] sm:$0xff]
  %v1868 = vld [vmem:[%s6 + $0x1d0] sm:$0xff]
  %v1869 = vld [vmem:[%s6 + $0x1d8] sm:$0xff]
  %v1870 = vld [vmem:[%s6 + $0x1e0] sm:$0xff]
  %v1871 = vld [vmem:[%s6 + $0x1e8] sm:$0xff]
  %v1872 = vld [vmem:[%s6 + $0x1f0] sm:$0xff]
  %v1873 = vld [vmem:[%s6 + $0x1f8] sm:$0xff]
  %v1874 = vld [vmem:[%s7] sm:$0xf]
  %v1876 = vperm.slane %v1874, 0
  %v1877 = vperm.slane %v1874, 1
  %v1878 = vperm.slane %v1874, 2
  %v1879 = vperm.slane %v1874, 3
  %1884 = vmatpush.msra.mxu0 %v1870
  %1885 = vmatpush.msra.mxu0 %v1866
  %1886 = vmatpush.msra.mxu0 %v1862
  %1887 = vmatpush.msra.mxu0 %v1858
  %1888 = vmatpush.msra.mxu0 %v1854
  %1889 = vmatpush.msra.mxu0 %v1850
  %1890 = vmatpush.msra.mxu0 %v1846
  %1891 = vmatpush.msra.mxu0 %v1842
  %1892 = vmatpush.msra.mxu0 %v1838
  %1893 = vmatpush.msra.mxu0 %v1834
  %1894 = vmatpush.msra.mxu0 %v1830
  %1895 = vmatpush.msra.mxu0 %v1826
  %1896 = vmatpush.msra.mxu0 %v1822
  %1897 = vmatpush.msra.mxu0 %v1818
  %1898 = vmatpush.msra.mxu0 %v1814
  %1899 = vmatpush.msra.mxu0 %v1810
  %1900 = vmatmul.f32.gmra.mxu0 %v1808
  %v1901 = vpop.f32.mrf.mxu0
  %v1902 = vadd.f32 %v1876, %v1901
  %1903 = vdwg.mxu0
  %1904 = vmatpush.msra.mxu0 %v1871
  %1905 = vmatpush.msra.mxu0 %v1867
  %1906 = vmatpush.msra.mxu0 %v1863
  %1907 = vmatpush.msra.mxu0 %v1859
  %1908 = vmatpush.msra.mxu0 %v1855
  %1909 = vmatpush.msra.mxu0 %v1851
  %1910 = vmatpush.msra.mxu0 %v1847
  %1911 = vmatpush.msra.mxu0 %v1843
  %1912 = vmatpush.msra.mxu0 %v1839
  %1913 = vmatpush.msra.mxu0 %v1835
  %1914 = vmatpush.msra.mxu0 %v1831
  %1915 = vmatpush.msra.mxu0 %v1827
  %1916 = vmatpush.msra.mxu0 %v1823
  %1917 = vmatpush.msra.mxu0 %v1819
  %1918 = vmatpush.msra.mxu0 %v1815
  %1919 = vmatpush.msra.mxu0 %v1811
  %1920 = vmatmul.f32.gmra.mxu0 %v1808
  %v1921 = vpop.f32.mrf.mxu0
  %v1922 = vadd.f32 %v1877, %v1921
  %1923 = vdwg.mxu0
  %1924 = vmatpush.msra.mxu0 %v1872
  %1925 = vmatpush.msra.mxu0 %v1868
  %1926 = vmatpush.msra.mxu0 %v1864
  %1927 = vmatpush.msra.mxu0 %v1860
  %1928 = vmatpush.msra.mxu0 %v1856
  %1929 = vmatpush.msra.mxu0 %v1852
  %1930 = vmatpush.msra.mxu0 %v1848
  %1931 = vmatpush.msra.mxu0 %v1844
  %1932 = vmatpush.msra.mxu0 %v1840
  %1933 = vmatpush.msra.mxu0 %v1836
  %1934 = vmatpush.msra.mxu0 %v1832
  %1935 = vmatpush.msra.mxu0 %v1828
  %1936 = vmatpush.msra.mxu0 %v1824
  %1937 = vmatpush.msra.mxu0 %v1820
  %1938 = vmatpush.msra.mxu0 %v1816
  %1939 = vmatpush.msra.mxu0 %v1812
  %1940 = vmatmul.f32.gmra.mxu0 %v1808
  %v1941 = vpop.f32.mrf.mxu0
  %v1942 = vadd.f32 %v1878, %v1941
  %1943 = vdwg.mxu0
  %1944 = vmatpush.msra.mxu0 %v1873
  %1945 = vmatpush.msra.mxu0 %v1869
  %1946 = vmatpush.msra.mxu0 %v1865
  %1947 = vmatpush.msra.mxu0 %v1861
  %1948 = vmatpush.msra.mxu0 %v1857
  %1949 = vmatpush.msra.mxu0 %v1853
  %1950 = vmatpush.msra.mxu0 %v1849
  %1951 = vmatpush.msra.mxu0 %v1845
  %1952 = vmatpush.msra.mxu0 %v1841
  %1953 = vmatpush.msra.mxu0 %v1837
  %1954 = vmatpush.msra.mxu0 %v1833
  %1955 = vmatpush.msra.mxu0 %v1829
  %1956 = vmatpush.msra.mxu0 %v1825
  %1957 = vmatpush.msra.mxu0 %v1821
  %1958 = vmatpush.msra.mxu0 %v1817
  %1959 = vmatpush.msra.mxu0 %v1813
  %1960 = vmatmul.f32.gmra.mxu0 %v1808
  %v1961 = vpop.f32.mrf.mxu0
  %v1962 = vadd.f32 %v1879, %v1961
  %1963 = vdwg.mxu0
  %v1964 = vxor.u32 %v1902, 2147483648
  %v1965 = vmul.f32 %v1964, 1.442695
  %v1966 = vpow.pop %v1965
  %v1967 = vadd.f32 %v1966, 1.0
  %v1968 = vrcp.pop %v1967
  %v1969 = vmul.f32 %v1967, %v1968
  %v1970 = vsub.f32 1.0, %v1969
  %v1971 = vmul.f32 %v1968, %v1970
  %v1972 = vadd.f32 %v1968, %v1971
  %vm1973 = vweird.f32 %v1967
  %vm1974 = vweird.f32 %v1968
  %vm1975 = vmor %vm1973, %vm1974
  %v1976 = vsel %vm1975, %v1968, %v1972
  %v1977 = vand.u32 2147483647, %v1967
  %vm1978 = vcmp.eq.f32.partialorder %v1977, 8.507059e+37
  %v1979 = vand.u32 %v1967, 2147483648
  %v1980 = vor.u32 1.1754944e-38, %v1979
  %v1981 = vsel %vm1978, %v1980, %v1976
  %v1982 = vmul.f32 1.0, %v1981
  %v1983 = vxor.u32 %v1922, 2147483648
  %v1984 = vmul.f32 %v1983, 1.442695
  %v1985 = vpow.pop %v1984
  %v1986 = vadd.f32 %v1985, 1.0
  %v1987 = vrcp.pop %v1986
  %v1988 = vmul.f32 %v1986, %v1987
  %v1989 = vsub.f32 1.0, %v1988
  %v1990 = vmul.f32 %v1987, %v1989
  %v1991 = vadd.f32 %v1987, %v1990
  %vm1992 = vweird.f32 %v1986
  %vm1993 = vweird.f32 %v1987
  %vm1994 = vmor %vm1992, %vm1993
  %v1995 = vsel %vm1994, %v1987, %v1991
  %v1996 = vand.u32 2147483647, %v1986
  %vm1997 = vcmp.eq.f32.partialorder %v1996, 8.507059e+37
  %v1998 = vand.u32 %v1986, 2147483648
  %v1999 = vor.u32 1.1754944e-38, %v1998
  %v2000 = vsel %vm1997, %v1999, %v1995
  %v2001 = vmul.f32 1.0, %v2000
  %v2002 = vtanh.pop %v1942
  %v2003 = vxor.u32 %v1962, 2147483648
  %v2004 = vmul.f32 %v2003, 1.442695
  %v2005 = vpow.pop %v2004
  %v2006 = vadd.f32 %v2005, 1.0
  %v2007 = vrcp.pop %v2006
  %v2008 = vmul.f32 %v2006, %v2007
  %v2009 = vsub.f32 1.0, %v2008
  %v2010 = vmul.f32 %v2007, %v2009
  %v2011 = vadd.f32 %v2007, %v2010
  %vm2012 = vweird.f32 %v2006
  %vm2013 = vweird.f32 %v2007
  %vm2014 = vmor %vm2012, %vm2013
  %v2015 = vsel %vm2014, %v2007, %v2011
  %v2016 = vand.u32 2147483647, %v2006
  %vm2017 = vcmp.eq.f32.partialorder %v2016, 8.507059e+37
  %v2018 = vand.u32 %v2006, 2147483648
  %v2019 = vor.u32 1.1754944e-38, %v2018
  %v2020 = vsel %vm2017, %v2019, %v2015
  %v2021 = vmul.f32 1.0, %v2020
  %v2022 = vmul.f32 %v2001, %v1806
  %v2023 = vmul.f32 %v1982, %v2002
  %v2024 = vadd.f32 %v2022, %v2023
  %v2025 = vtanh.pop %v2024
  %v2026 = vmul.f32 %v2021, %v2025
  %s2027 = scalar_lea.vmem [#allocation3], 8
  %2028 = vst [vmem:[%s2027] sm:$0xff] %v2026
  %2029 = vmatpush.msra.mxu0 %v1870
  %2030 = vmatpush.msra.mxu0 %v1866
  %2031 = vmatpush.msra.mxu0 %v1862
  %2032 = vmatpush.msra.mxu0 %v1858
  %2033 = vmatpush.msra.mxu0 %v1854
  %2034 = vmatpush.msra.mxu0 %v1850
  %2035 = vmatpush.msra.mxu0 %v1846
  %2036 = vmatpush.msra.mxu0 %v1842
  %2037 = vmatpush.msra.mxu0 %v1838
  %2038 = vmatpush.msra.mxu0 %v1834
  %2039 = vmatpush.msra.mxu0 %v1830
  %2040 = vmatpush.msra.mxu0 %v1826
  %2041 = vmatpush.msra.mxu0 %v1822
  %2042 = vmatpush.msra.mxu0 %v1818
  %2043 = vmatpush.msra.mxu0 %v1814
  %2044 = vmatpush.msra.mxu0 %v1810
  %2045 = vmatmul.f32.gmra.mxu0 %v2026
  %v2046 = vpop.f32.mrf.mxu0
  %v2047 = vadd.f32 %v1876, %v2046
  %2048 = vdwg.mxu0
  %2049 = vmatpush.msra.mxu0 %v1871
  %2050 = vmatpush.msra.mxu0 %v1867
  %2051 = vmatpush.msra.mxu0 %v1863
  %2052 = vmatpush.msra.mxu0 %v1859
  %2053 = vmatpush.msra.mxu0 %v1855
  %2054 = vmatpush.msra.mxu0 %v1851
  %2055 = vmatpush.msra.mxu0 %v1847
  %2056 = vmatpush.msra.mxu0 %v1843
  %2057 = vmatpush.msra.mxu0 %v1839
  %2058 = vmatpush.msra.mxu0 %v1835
  %2059 = vmatpush.msra.mxu0 %v1831
  %2060 = vmatpush.msra.mxu0 %v1827
  %2061 = vmatpush.msra.mxu0 %v1823
  %2062 = vmatpush.msra.mxu0 %v1819
  %2063 = vmatpush.msra.mxu0 %v1815
  %2064 = vmatpush.msra.mxu0 %v1811
  %2065 = vmatmul.f32.gmra.mxu0 %v2026
  %v2066 = vpop.f32.mrf.mxu0
  %v2067 = vadd.f32 %v1877, %v2066
  %2068 = vdwg.mxu0
  %2069 = vmatpush.msra.mxu0 %v1872
  %2070 = vmatpush.msra.mxu0 %v1868
  %2071 = vmatpush.msra.mxu0 %v1864
  %2072 = vmatpush.msra.mxu0 %v1860
  %2073 = vmatpush.msra.mxu0 %v1856
  %2074 = vmatpush.msra.mxu0 %v1852
  %2075 = vmatpush.msra.mxu0 %v1848
  %2076 = vmatpush.msra.mxu0 %v1844
  %2077 = vmatpush.msra.mxu0 %v1840
  %2078 = vmatpush.msra.mxu0 %v1836
  %2079 = vmatpush.msra.mxu0 %v1832
  %2080 = vmatpush.msra.mxu0 %v1828
  %2081 = vmatpush.msra.mxu0 %v1824
  %2082 = vmatpush.msra.mxu0 %v1820
  %2083 = vmatpush.msra.mxu0 %v1816
  %2084 = vmatpush.msra.mxu0 %v1812
  %2085 = vmatmul.f32.gmra.mxu0 %v2026
  %v2086 = vpop.f32.mrf.mxu0
  %v2087 = vadd.f32 %v1878, %v2086
  %2088 = vdwg.mxu0
  %2089 = vmatpush.msra.mxu0 %v1873
  %2090 = vmatpush.msra.mxu0 %v1869
  %2091 = vmatpush.msra.mxu0 %v1865
  %2092 = vmatpush.msra.mxu0 %v1861
  %2093 = vmatpush.msra.mxu0 %v1857
  %2094 = vmatpush.msra.mxu0 %v1853
  %2095 = vmatpush.msra.mxu0 %v1849
  %2096 = vmatpush.msra.mxu0 %v1845
  %2097 = vmatpush.msra.mxu0 %v1841
  %2098 = vmatpush.msra.mxu0 %v1837
  %2099 = vmatpush.msra.mxu0 %v1833
  %2100 = vmatpush.msra.mxu0 %v1829
  %2101 = vmatpush.msra.mxu0 %v1825
  %2102 = vmatpush.msra.mxu0 %v1821
  %2103 = vmatpush.msra.mxu0 %v1817
  %2104 = vmatpush.msra.mxu0 %v1813
  %2105 = vmatmul.f32.gmra.mxu0 %v2026
  %v2106 = vpop.f32.mrf.mxu0
  %v2107 = vadd.f32 %v1879, %v2106
  %2108 = vdwg.mxu0
  %v2109 = vxor.u32 %v2047, 2147483648
  %v2110 = vmul.f32 %v2109, 1.442695
  %v2111 = vpow.pop %v2110
  %v2112 = vadd.f32 %v2111, 1.0
  %v2113 = vrcp.pop %v2112
  %v2114 = vmul.f32 %v2112, %v2113
  %v2115 = vsub.f32 1.0, %v2114
  %v2116 = vmul.f32 %v2113, %v2115
  %v2117 = vadd.f32 %v2113, %v2116
  %vm2118 = vweird.f32 %v2112
  %vm2119 = vweird.f32 %v2113
  %vm2120 = vmor %vm2118, %vm2119
  %v2121 = vsel %vm2120, %v2113, %v2117
  %v2122 = vand.u32 2147483647, %v2112
  %vm2123 = vcmp.eq.f32.partialorder %v2122, 8.507059e+37
  %v2124 = vand.u32 %v2112, 2147483648
  %v2125 = vor.u32 1.1754944e-38, %v2124
  %v2126 = vsel %vm2123, %v2125, %v2121
  %v2127 = vmul.f32 1.0, %v2126
  %v2128 = vxor.u32 %v2067, 2147483648
  %v2129 = vmul.f32 %v2128, 1.442695
  %v2130 = vpow.pop %v2129
  %v2131 = vadd.f32 %v2130, 1.0
  %v2132 = vrcp.pop %v2131
  %v2133 = vmul.f32 %v2131, %v2132
  %v2134 = vsub.f32 1.0, %v2133
  %v2135 = vmul.f32 %v2132, %v2134
  %v2136 = vadd.f32 %v2132, %v2135
  %vm2137 = vweird.f32 %v2131
  %vm2138 = vweird.f32 %v2132
  %vm2139 = vmor %vm2137, %vm2138
  %v2140 = vsel %vm2139, %v2132, %v2136
  %v2141 = vand.u32 2147483647, %v2131
  %vm2142 = vcmp.eq.f32.partialorder %v2141, 8.507059e+37
  %v2143 = vand.u32 %v2131, 2147483648
  %v2144 = vor.u32 1.1754944e-38, %v2143
  %v2145 = vsel %vm2142, %v2144, %v2140
  %v2146 = vmul.f32 1.0, %v2145
  %v2147 = vtanh.pop %v2087
  %v2148 = vxor.u32 %v2107, 2147483648
  %v2149 = vmul.f32 %v2148, 1.442695
  %v2150 = vpow.pop %v2149
  %v2151 = vadd.f32 %v2150, 1.0
  %v2152 = vrcp.pop %v2151
  %v2153 = vmul.f32 %v2151, %v2152
  %v2154 = vsub.f32 1.0, %v2153
  %v2155 = vmul.f32 %v2152, %v2154
  %v2156 = vadd.f32 %v2152, %v2155
  %vm2157 = vweird.f32 %v2151
  %vm2158 = vweird.f32 %v2152
  %vm2159 = vmor %vm2157, %vm2158
  %v2160 = vsel %vm2159, %v2152, %v2156
  %v2161 = vand.u32 2147483647, %v2151
  %vm2162 = vcmp.eq.f32.partialorder %v2161, 8.507059e+37
  %v2163 = vand.u32 %v2151, 2147483648
  %v2164 = vor.u32 1.1754944e-38, %v2163
  %v2165 = vsel %vm2162, %v2164, %v2160
  %v2166 = vmul.f32 1.0, %v2165
  %v2167 = vmul.f32 %v2146, %v2024
  %v2168 = vmul.f32 %v2127, %v2147
  %v2169 = vadd.f32 %v2167, %v2168
  %v2170 = vtanh.pop %v2169
  %v2171 = vmul.f32 %v2166, %v2170
  %s2172 = scalar_lea.vmem [#allocation3], 16
  %2173 = vst [vmem:[%s2172] sm:$0xff] %v2171
  %2174 = vmatpush.msra.mxu0 %v1870
  %2175 = vmatpush.msra.mxu0 %v1866
  %2176 = vmatpush.msra.mxu0 %v1862
  %2177 = vmatpush.msra.mxu0 %v1858
  %2178 = vmatpush.msra.mxu0 %v1854
  %2179 = vmatpush.msra.mxu0 %v1850
  %2180 = vmatpush.msra.mxu0 %v1846
  %2181 = vmatpush.msra.mxu0 %v1842
  %2182 = vmatpush.msra.mxu0 %v1838
  %2183 = vmatpush.msra.mxu0 %v1834
  %2184 = vmatpush.msra.mxu0 %v1830
  %2185 = vmatpush.msra.mxu0 %v1826
  %2186 = vmatpush.msra.mxu0 %v1822
  %2187 = vmatpush.msra.mxu0 %v1818
  %2188 = vmatpush.msra.mxu0 %v1814
  %2189 = vmatpush.msra.mxu0 %v1810
  %2190 = vmatmul.f32.gmra.mxu0 %v2171
  %v2191 = vpop.f32.mrf.mxu0
  %v2192 = vadd.f32 %v1876, %v2191
  %2193 = vdwg.mxu0
  %2194 = vmatpush.msra.mxu0 %v1871
  %2195 = vmatpush.msra.mxu0 %v1867
  %2196 = vmatpush.msra.mxu0 %v1863
  %2197 = vmatpush.msra.mxu0 %v1859
  %2198 = vmatpush.msra.mxu0 %v1855
  %2199 = vmatpush.msra.mxu0 %v1851
  %2200 = vmatpush.msra.mxu0 %v1847
  %2201 = vmatpush.msra.mxu0 %v1843
  %2202 = vmatpush.msra.mxu0 %v1839
  %2203 = vmatpush.msra.mxu0 %v1835
  %2204 = vmatpush.msra.mxu0 %v1831
  %2205 = vmatpush.msra.mxu0 %v1827
  %2206 = vmatpush.msra.mxu0 %v1823
  %2207 = vmatpush.msra.mxu0 %v1819
  %2208 = vmatpush.msra.mxu0 %v1815
  %2209 = vmatpush.msra.mxu0 %v1811
  %2210 = vmatmul.f32.gmra.mxu0 %v2171
  %v2211 = vpop.f32.mrf.mxu0
  %v2212 = vadd.f32 %v1877, %v2211
  %2213 = vdwg.mxu0
  %2214 = vmatpush.msra.mxu0 %v1872
  %2215 = vmatpush.msra.mxu0 %v1868
  %2216 = vmatpush.msra.mxu0 %v1864
  %2217 = vmatpush.msra.mxu0 %v1860
  %2218 = vmatpush.msra.mxu0 %v1856
  %2219 = vmatpush.msra.mxu0 %v1852
  %2220 = vmatpush.msra.mxu0 %v1848
  %2221 = vmatpush.msra.mxu0 %v1844
  %2222 = vmatpush.msra.mxu0 %v1840
  %2223 = vmatpush.msra.mxu0 %v1836
  %2224 = vmatpush.msra.mxu0 %v1832
  %2225 = vmatpush.msra.mxu0 %v1828
  %2226 = vmatpush.msra.mxu0 %v1824
  %2227 = vmatpush.msra.mxu0 %v1820
  %2228 = vmatpush.msra.mxu0 %v1816
  %2229 = vmatpush.msra.mxu0 %v1812
  %2230 = vmatmul.f32.gmra.mxu0 %v2171
  %v2231 = vpop.f32.mrf.mxu0
  %v2232 = vadd.f32 %v1878, %v2231
  %2233 = vdwg.mxu0
  %2234 = vmatpush.msra.mxu0 %v1873
  %2235 = vmatpush.msra.mxu0 %v1869
  %2236 = vmatpush.msra.mxu0 %v1865
  %2237 = vmatpush.msra.mxu0 %v1861
  %2238 = vmatpush.msra.mxu0 %v1857
  %2239 = vmatpush.msra.mxu0 %v1853
  %2240 = vmatpush.msra.mxu0 %v1849
  %2241 = vmatpush.msra.mxu0 %v1845
  %2242 = vmatpush.msra.mxu0 %v1841
  %2243 = vmatpush.msra.mxu0 %v1837
  %2244 = vmatpush.msra.mxu0 %v1833
  %2245 = vmatpush.msra.mxu0 %v1829
  %2246 = vmatpush.msra.mxu0 %v1825
  %2247 = vmatpush.msra.mxu0 %v1821
  %2248 = vmatpush.msra.mxu0 %v1817
  %2249 = vmatpush.msra.mxu0 %v1813
  %2250 = vmatmul.f32.gmra.mxu0 %v2171
  %v2251 = vpop.f32.mrf.mxu0
  %v2252 = vadd.f32 %v1879, %v2251
  %2253 = vdwg.mxu0
  %v2254 = vxor.u32 %v2192, 2147483648
  %v2255 = vmul.f32 %v2254, 1.442695
  %v2256 = vpow.pop %v2255
  %v2257 = vadd.f32 %v2256, 1.0
  %v2258 = vrcp.pop %v2257
  %v2259 = vmul.f32 %v2257, %v2258
  %v2260 = vsub.f32 1.0, %v2259
  %v2261 = vmul.f32 %v2258, %v2260
  %v2262 = vadd.f32 %v2258, %v2261
  %vm2263 = vweird.f32 %v2257
  %vm2264 = vweird.f32 %v2258
  %vm2265 = vmor %vm2263, %vm2264
  %v2266 = vsel %vm2265, %v2258, %v2262
  %v2267 = vand.u32 2147483647, %v2257
  %vm2268 = vcmp.eq.f32.partialorder %v2267, 8.507059e+37
  %v2269 = vand.u32 %v2257, 2147483648
  %v2270 = vor.u32 1.1754944e-38, %v2269
  %v2271 = vsel %vm2268, %v2270, %v2266
  %v2272 = vmul.f32 1.0, %v2271
  %v2273 = vxor.u32 %v2212, 2147483648
  %v2274 = vmul.f32 %v2273, 1.442695
  %v2275 = vpow.pop %v2274
  %v2276 = vadd.f32 %v2275, 1.0
  %v2277 = vrcp.pop %v2276
  %v2278 = vmul.f32 %v2276, %v2277
  %v2279 = vsub.f32 1.0, %v2278
  %v2280 = vmul.f32 %v2277, %v2279
  %v2281 = vadd.f32 %v2277, %v2280
  %vm2282 = vweird.f32 %v2276
  %vm2283 = vweird.f32 %v2277
  %vm2284 = vmor %vm2282, %vm2283
  %v2285 = vsel %vm2284, %v2277, %v2281
  %v2286 = vand.u32 2147483647, %v2276
  %vm2287 = vcmp.eq.f32.partialorder %v2286, 8.507059e+37
  %v2288 = vand.u32 %v2276, 2147483648
  %v2289 = vor.u32 1.1754944e-38, %v2288
  %v2290 = vsel %vm2287, %v2289, %v2285
  %v2291 = vmul.f32 1.0, %v2290
  %v2292 = vtanh.pop %v2232
  %v2293 = vxor.u32 %v2252, 2147483648
  %v2294 = vmul.f32 %v2293, 1.442695
  %v2295 = vpow.pop %v2294
  %v2296 = vadd.f32 %v2295, 1.0
  %v2297 = vrcp.pop %v2296
  %v2298 = vmul.f32 %v2296, %v2297
  %v2299 = vsub.f32 1.0, %v2298
  %v2300 = vmul.f32 %v2297, %v2299
  %v2301 = vadd.f32 %v2297, %v2300
  %vm2302 = vweird.f32 %v2296
  %vm2303 = vweird.f32 %v2297
  %vm2304 = vmor %vm2302, %vm2303
  %v2305 = vsel %vm2304, %v2297, %v2301
  %v2306 = vand.u32 2147483647, %v2296
  %vm2307 = vcmp.eq.f32.partialorder %v2306, 8.507059e+37
  %v2308 = vand.u32 %v2296, 2147483648
  %v2309 = vor.u32 1.1754944e-38, %v2308
  %v2310 = vsel %vm2307, %v2309, %v2305
  %v2311 = vmul.f32 1.0, %v2310
  %v2312 = vmul.f32 %v2291, %v2169
  %v2313 = vmul.f32 %v2272, %v2292
  %v2314 = vadd.f32 %v2312, %v2313
  %v2315 = vtanh.pop %v2314
  %v2316 = vmul.f32 %v2311, %v2315
  %s2317 = scalar_lea.vmem [#allocation3], 24
  %2318 = vst [vmem:[%s2317] sm:$0xff] %v2316
  %2319 = vmatpush.msra.mxu0 %v1870
  %2320 = vmatpush.msra.mxu0 %v1866
  %2321 = vmatpush.msra.mxu0 %v1862
  %2322 = vmatpush.msra.mxu0 %v1858
  %2323 = vmatpush.msra.mxu0 %v1854
  %2324 = vmatpush.msra.mxu0 %v1850
  %2325 = vmatpush.msra.mxu0 %v1846
  %2326 = vmatpush.msra.mxu0 %v1842
  %2327 = vmatpush.msra.mxu0 %v1838
  %2328 = vmatpush.msra.mxu0 %v1834
  %2329 = vmatpush.msra.mxu0 %v1830
  %2330 = vmatpush.msra.mxu0 %v1826
  %2331 = vmatpush.msra.mxu0 %v1822
  %2332 = vmatpush.msra.mxu0 %v1818
  %2333 = vmatpush.msra.mxu0 %v1814
  %2334 = vmatpush.msra.mxu0 %v1810
  %2335 = vmatmul.f32.gmra.mxu0 %v2316
  %v2336 = vpop.f32.mrf.mxu0
  %v2337 = vadd.f32 %v1876, %v2336
  %2338 = vdwg.mxu0
  %2339 = vmatpush.msra.mxu0 %v1871
  %2340 = vmatpush.msra.mxu0 %v1867
  %2341 = vmatpush.msra.mxu0 %v1863
  %2342 = vmatpush.msra.mxu0 %v1859
  %2343 = vmatpush.msra.mxu0 %v1855
  %2344 = vmatpush.msra.mxu0 %v1851
  %2345 = vmatpush.msra.mxu0 %v1847
  %2346 = vmatpush.msra.mxu0 %v1843
  %2347 = vmatpush.msra.mxu0 %v1839
  %2348 = vmatpush.msra.mxu0 %v1835
  %2349 = vmatpush.msra.mxu0 %v1831
  %2350 = vmatpush.msra.mxu0 %v1827
  %2351 = vmatpush.msra.mxu0 %v1823
  %2352 = vmatpush.msra.mxu0 %v1819
  %2353 = vmatpush.msra.mxu0 %v1815
  %2354 = vmatpush.msra.mxu0 %v1811
  %2355 = vmatmul.f32.gmra.mxu0 %v2316
  %v2356 = vpop.f32.mrf.mxu0
  %v2357 = vadd.f32 %v1877, %v2356
  %2358 = vdwg.mxu0
  %2359 = vmatpush.msra.mxu0 %v1872
  %2360 = vmatpush.msra.mxu0 %v1868
  %2361 = vmatpush.msra.mxu0 %v1864
  %2362 = vmatpush.msra.mxu0 %v1860
  %2363 = vmatpush.msra.mxu0 %v1856
  %2364 = vmatpush.msra.mxu0 %v1852
  %2365 = vmatpush.msra.mxu0 %v1848
  %2366 = vmatpush.msra.mxu0 %v1844
  %2367 = vmatpush.msra.mxu0 %v1840
  %2368 = vmatpush.msra.mxu0 %v1836
  %2369 = vmatpush.msra.mxu0 %v1832
  %2370 = vmatpush.msra.mxu0 %v1828
  %2371 = vmatpush.msra.mxu0 %v1824
  %2372 = vmatpush.msra.mxu0 %v1820
  %2373 = vmatpush.msra.mxu0 %v1816
  %2374 = vmatpush.msra.mxu0 %v1812
  %2375 = vmatmul.f32.gmra.mxu0 %v2316
  %v2376 = vpop.f32.mrf.mxu0
  %v2377 = vadd.f32 %v1878, %v2376
  %2378 = vdwg.mxu0
  %2379 = vmatpush.msra.mxu0 %v1873
  %2380 = vmatpush.msra.mxu0 %v1869
  %2381 = vmatpush.msra.mxu0 %v1865
  %2382 = vmatpush.msra.mxu0 %v1861
  %2383 = vmatpush.msra.mxu0 %v1857
  %2384 = vmatpush.msra.mxu0 %v1853
  %2385 = vmatpush.msra.mxu0 %v1849
  %2386 = vmatpush.msra.mxu0 %v1845
  %2387 = vmatpush.msra.mxu0 %v1841
  %2388 = vmatpush.msra.mxu0 %v1837
  %2389 = vmatpush.msra.mxu0 %v1833
  %2390 = vmatpush.msra.mxu0 %v1829
  %2391 = vmatpush.msra.mxu0 %v1825
  %2392 = vmatpush.msra.mxu0 %v1821
  %2393 = vmatpush.msra.mxu0 %v1817
  %2394 = vmatpush.msra.mxu0 %v1813
  %2395 = vmatmul.f32.gmra.mxu0 %v2316
  %v2396 = vpop.f32.mrf.mxu0
  %v2397 = vadd.f32 %v1879, %v2396
  %2398 = vdwg.mxu0
  %v2399 = vxor.u32 %v2337, 2147483648
  %v2400 = vmul.f32 %v2399, 1.442695
  %v2401 = vpow.pop %v2400
  %v2402 = vadd.f32 %v2401, 1.0
  %v2403 = vrcp.pop %v2402
  %v2404 = vmul.f32 %v2402, %v2403
  %v2405 = vsub.f32 1.0, %v2404
  %v2406 = vmul.f32 %v2403, %v2405
  %v2407 = vadd.f32 %v2403, %v2406
  %vm2408 = vweird.f32 %v2402
  %vm2409 = vweird.f32 %v2403
  %vm2410 = vmor %vm2408, %vm2409
  %v2411 = vsel %vm2410, %v2403, %v2407
  %v2412 = vand.u32 2147483647, %v2402
  %vm2413 = vcmp.eq.f32.partialorder %v2412, 8.507059e+37
  %v2414 = vand.u32 %v2402, 2147483648
  %v2415 = vor.u32 1.1754944e-38, %v2414
  %v2416 = vsel %vm2413, %v2415, %v2411
  %v2417 = vmul.f32 1.0, %v2416
  %v2418 = vxor.u32 %v2357, 2147483648
  %v2419 = vmul.f32 %v2418, 1.442695
  %v2420 = vpow.pop %v2419
  %v2421 = vadd.f32 %v2420, 1.0
  %v2422 = vrcp.pop %v2421
  %v2423 = vmul.f32 %v2421, %v2422
  %v2424 = vsub.f32 1.0, %v2423
  %v2425 = vmul.f32 %v2422, %v2424
  %v2426 = vadd.f32 %v2422, %v2425
  %vm2427 = vweird.f32 %v2421
  %vm2428 = vweird.f32 %v2422
  %vm2429 = vmor %vm2427, %vm2428
  %v2430 = vsel %vm2429, %v2422, %v2426
  %v2431 = vand.u32 2147483647, %v2421
  %vm2432 = vcmp.eq.f32.partialorder %v2431, 8.507059e+37
  %v2433 = vand.u32 %v2421, 2147483648
  %v2434 = vor.u32 1.1754944e-38, %v2433
  %v2435 = vsel %vm2432, %v2434, %v2430
  %v2436 = vmul.f32 1.0, %v2435
  %v2437 = vtanh.pop %v2377
  %v2438 = vxor.u32 %v2397, 2147483648
  %v2439 = vmul.f32 %v2438, 1.442695
  %v2440 = vpow.pop %v2439
  %v2441 = vadd.f32 %v2440, 1.0
  %v2442 = vrcp.pop %v2441
  %v2443 = vmul.f32 %v2441, %v2442
  %v2444 = vsub.f32 1.0, %v2443
  %v2445 = vmul.f32 %v2442, %v2444
  %v2446 = vadd.f32 %v2442, %v2445
  %vm2447 = vweird.f32 %v2441
  %vm2448 = vweird.f32 %v2442
  %vm2449 = vmor %vm2447, %vm2448
  %v2450 = vsel %vm2449, %v2442, %v2446
  %v2451 = vand.u32 2147483647, %v2441
  %vm2452 = vcmp.eq.f32.partialorder %v2451, 8.507059e+37
  %v2453 = vand.u32 %v2441, 2147483648
  %v2454 = vor.u32 1.1754944e-38, %v2453
  %v2455 = vsel %vm2452, %v2454, %v2450
  %v2456 = vmul.f32 1.0, %v2455
  %v2457 = vmul.f32 %v2436, %v2314
  %v2458 = vmul.f32 %v2417, %v2437
  %v2459 = vadd.f32 %v2457, %v2458
  %v2460 = vtanh.pop %v2459
  %v2461 = vmul.f32 %v2456, %v2460
  %s2462 = scalar_lea.vmem [#allocation3], 32
  %2463 = vst [vmem:[%s2462] sm:$0xff] %v2461
  %2464 = vmatpush.msra.mxu0 %v1870
  %2465 = vmatpush.msra.mxu0 %v1866
  %2466 = vmatpush.msra.mxu0 %v1862
  %2467 = vmatpush.msra.mxu0 %v1858
  %2468 = vmatpush.msra.mxu0 %v1854
  %2469 = vmatpush.msra.mxu0 %v1850
  %2470 = vmatpush.msra.mxu0 %v1846
  %2471 = vmatpush.msra.mxu0 %v1842
  %2472 = vmatpush.msra.mxu0 %v1838
  %2473 = vmatpush.msra.mxu0 %v1834
  %2474 = vmatpush.msra.mxu0 %v1830
  %2475 = vmatpush.msra.mxu0 %v1826
  %2476 = vmatpush.msra.mxu0 %v1822
  %2477 = vmatpush.msra.mxu0 %v1818
  %2478 = vmatpush.msra.mxu0 %v1814
  %2479 = vmatpush.msra.mxu0 %v1810
  %2480 = vmatmul.f32.gmra.mxu0 %v2461
  %v2481 = vpop.f32.mrf.mxu0
  %v2482 = vadd.f32 %v1876, %v2481
  %2483 = vdwg.mxu0
  %2484 = vmatpush.msra.mxu0 %v1871
  %2485 = vmatpush.msra.mxu0 %v1867
  %2486 = vmatpush.msra.mxu0 %v1863
  %2487 = vmatpush.msra.mxu0 %v1859
  %2488 = vmatpush.msra.mxu0 %v1855
  %2489 = vmatpush.msra.mxu0 %v1851
  %2490 = vmatpush.msra.mxu0 %v1847
  %2491 = vmatpush.msra.mxu0 %v1843
  %2492 = vmatpush.msra.mxu0 %v1839
  %2493 = vmatpush.msra.mxu0 %v1835
  %2494 = vmatpush.msra.mxu0 %v1831
  %2495 = vmatpush.msra.mxu0 %v1827
  %2496 = vmatpush.msra.mxu0 %v1823
  %2497 = vmatpush.msra.mxu0 %v1819
  %2498 = vmatpush.msra.mxu0 %v1815
  %2499 = vmatpush.msra.mxu0 %v1811
  %2500 = vmatmul.f32.gmra.mxu0 %v2461
  %v2501 = vpop.f32.mrf.mxu0
  %v2502 = vadd.f32 %v1877, %v2501
  %2503 = vdwg.mxu0
  %2504 = vmatpush.msra.mxu0 %v1872
  %2505 = vmatpush.msra.mxu0 %v1868
  %2506 = vmatpush.msra.mxu0 %v1864
  %2507 = vmatpush.msra.mxu0 %v1860
  %2508 = vmatpush.msra.mxu0 %v1856
  %2509 = vmatpush.msra.mxu0 %v1852
  %2510 = vmatpush.msra.mxu0 %v1848
  %2511 = vmatpush.msra.mxu0 %v1844
  %2512 = vmatpush.msra.mxu0 %v1840
  %2513 = vmatpush.msra.mxu0 %v1836
  %2514 = vmatpush.msra.mxu0 %v1832
  %2515 = vmatpush.msra.mxu0 %v1828
  %2516 = vmatpush.msra.mxu0 %v1824
  %2517 = vmatpush.msra.mxu0 %v1820
  %2518 = vmatpush.msra.mxu0 %v1816
  %2519 = vmatpush.msra.mxu0 %v1812
  %2520 = vmatmul.f32.gmra.mxu0 %v2461
  %v2521 = vpop.f32.mrf.mxu0
  %v2522 = vadd.f32 %v1878, %v2521
  %2523 = vdwg.mxu0
  %2524 = vmatpush.msra.mxu0 %v1873
  %2525 = vmatpush.msra.mxu0 %v1869
  %2526 = vmatpush.msra.mxu0 %v1865
  %2527 = vmatpush.msra.mxu0 %v1861
  %2528 = vmatpush.msra.mxu0 %v1857
  %2529 = vmatpush.msra.mxu0 %v1853
  %2530 = vmatpush.msra.mxu0 %v1849
  %2531 = vmatpush.msra.mxu0 %v1845
  %2532 = vmatpush.msra.mxu0 %v1841
  %2533 = vmatpush.msra.mxu0 %v1837
  %2534 = vmatpush.msra.mxu0 %v1833
  %2535 = vmatpush.msra.mxu0 %v1829
  %2536 = vmatpush.msra.mxu0 %v1825
  %2537 = vmatpush.msra.mxu0 %v1821
  %2538 = vmatpush.msra.mxu0 %v1817
  %2539 = vmatpush.msra.mxu0 %v1813
  %2540 = vmatmul.f32.gmra.mxu0 %v2461
  %v2541 = vpop.f32.mrf.mxu0
  %v2542 = vadd.f32 %v1879, %v2541
  %2543 = vdwg.mxu0
  %v2544 = vxor.u32 %v2482, 2147483648
  %v2545 = vmul.f32 %v2544, 1.442695
  %v2546 = vpow.pop %v2545
  %v2547 = vadd.f32 %v2546, 1.0
  %v2548 = vrcp.pop %v2547
  %v2549 = vmul.f32 %v2547, %v2548
  %v2550 = vsub.f32 1.0, %v2549
  %v2551 = vmul.f32 %v2548, %v2550
  %v2552 = vadd.f32 %v2548, %v2551
  %vm2553 = vweird.f32 %v2547
  %vm2554 = vweird.f32 %v2548
  %vm2555 = vmor %vm2553, %vm2554
  %v2556 = vsel %vm2555, %v2548, %v2552
  %v2557 = vand.u32 2147483647, %v2547
  %vm2558 = vcmp.eq.f32.partialorder %v2557, 8.507059e+37
  %v2559 = vand.u32 %v2547, 2147483648
  %v2560 = vor.u32 1.1754944e-38, %v2559
  %v2561 = vsel %vm2558, %v2560, %v2556
  %v2562 = vmul.f32 1.0, %v2561
  %v2563 = vxor.u32 %v2502, 2147483648
  %v2564 = vmul.f32 %v2563, 1.442695
  %v2565 = vpow.pop %v2564
  %v2566 = vadd.f32 %v2565, 1.0
  %v2567 = vrcp.pop %v2566
  %v2568 = vmul.f32 %v2566, %v2567
  %v2569 = vsub.f32 1.0, %v2568
  %v2570 = vmul.f32 %v2567, %v2569
  %v2571 = vadd.f32 %v2567, %v2570
  %vm2572 = vweird.f32 %v2566
  %vm2573 = vweird.f32 %v2567
  %vm2574 = vmor %vm2572, %vm2573
  %v2575 = vsel %vm2574, %v2567, %v2571
  %v2576 = vand.u32 2147483647, %v2566
  %vm2577 = vcmp.eq.f32.partialorder %v2576, 8.507059e+37
  %v2578 = vand.u32 %v2566, 2147483648
  %v2579 = vor.u32 1.1754944e-38, %v2578
  %v2580 = vsel %vm2577, %v2579, %v2575
  %v2581 = vmul.f32 1.0, %v2580
  %v2582 = vtanh.pop %v2522
  %v2583 = vxor.u32 %v2542, 2147483648
  %v2584 = vmul.f32 %v2583, 1.442695
  %v2585 = vpow.pop %v2584
  %v2586 = vadd.f32 %v2585, 1.0
  %v2587 = vrcp.pop %v2586
  %v2588 = vmul.f32 %v2586, %v2587
  %v2589 = vsub.f32 1.0, %v2588
  %v2590 = vmul.f32 %v2587, %v2589
  %v2591 = vadd.f32 %v2587, %v2590
  %vm2592 = vweird.f32 %v2586
  %vm2593 = vweird.f32 %v2587
  %vm2594 = vmor %vm2592, %vm2593
  %v2595 = vsel %vm2594, %v2587, %v2591
  %v2596 = vand.u32 2147483647, %v2586
  %vm2597 = vcmp.eq.f32.partialorder %v2596, 8.507059e+37
  %v2598 = vand.u32 %v2586, 2147483648
  %v2599 = vor.u32 1.1754944e-38, %v2598
  %v2600 = vsel %vm2597, %v2599, %v2595
  %v2601 = vmul.f32 1.0, %v2600
  %v2602 = vmul.f32 %v2581, %v2459
  %v2603 = vmul.f32 %v2562, %v2582
  %v2604 = vadd.f32 %v2602, %v2603
  %v2605 = vtanh.pop %v2604
  %v2606 = vmul.f32 %v2601, %v2605
  %s2607 = scalar_lea.vmem [#allocation3], 40
  %2608 = vst [vmem:[%s2607] sm:$0xff] %v2606
  %v2609 = vld [vmem:[#allocation3] sm:$0xff]
  %v2610 = vld [vmem:[#allocation3 + $0x8] sm:$0xff]
  %v2611 = vld [vmem:[#allocation3 + $0x10] sm:$0xff]
  %v2612 = vld [vmem:[#allocation3 + $0x18] sm:$0xff]
  %v2613 = vld [vmem:[#allocation3 + $0x20] sm:$0xff]
  %v2614 = vld [vmem:[#allocation3 + $0x28] sm:$0xff]
  %v2615 = vld [vmem:[%s8] sm:$0xff]
  %v2616 = vld [vmem:[%s8 + $0x8] sm:$0xff]
  %v2617 = vld [vmem:[%s8 + $0x10] sm:$0xff]
  %v2618 = vld [vmem:[%s8 + $0x18] sm:$0xff]
  %v2619 = vld [vmem:[%s8 + $0x20] sm:$0xff]
  %v2620 = vld [vmem:[%s8 + $0x28] sm:$0xff]
  %v2621 = vld [vmem:[%s8 + $0x30] sm:$0xff]
  %v2622 = vld [vmem:[%s8 + $0x38] sm:$0xff]
  %v2623 = vld [vmem:[%s8 + $0x40] sm:$0xff]
  %v2624 = vld [vmem:[%s8 + $0x48] sm:$0xff]
  %v2625 = vld [vmem:[%s8 + $0x50] sm:$0xff]
  %v2626 = vld [vmem:[%s8 + $0x58] sm:$0xff]
  %v2627 = vld [vmem:[%s8 + $0x60] sm:$0xff]
  %v2628 = vld [vmem:[%s8 + $0x68] sm:$0xff]
  %v2629 = vld [vmem:[%s8 + $0x70] sm:$0xff]
  %v2630 = vld [vmem:[%s8 + $0x78] sm:$0xff]
  %v2631 = vld [vmem:[%s9] sm:$0x1]
  %v2633 = vperm.slane %v2631, 0
  %2635 = vmatpush.msra.mxu0 %v2630
  %2636 = vmatpush.msra.mxu0 %v2629
  %2637 = vmatpush.msra.mxu0 %v2628
  %2638 = vmatpush.msra.mxu0 %v2627
  %2639 = vmatpush.msra.mxu0 %v2626
  %2640 = vmatpush.msra.mxu0 %v2625
  %2641 = vmatpush.msra.mxu0 %v2624
  %2642 = vmatpush.msra.mxu0 %v2623
  %2643 = vmatpush.msra.mxu0 %v2622
  %2644 = vmatpush.msra.mxu0 %v2621
  %2645 = vmatpush.msra.mxu0 %v2620
  %2646 = vmatpush.msra.mxu0 %v2619
  %2647 = vmatpush.msra.mxu0 %v2618
  %2648 = vmatpush.msra.mxu0 %v2617
  %2649 = vmatpush.msra.mxu0 %v2616
  %2650 = vmatpush.msra.mxu0 %v2615
  %2651 = vmatmul.f32.gmra.mxu0 %v2609
  %v2652 = vpop.f32.mrf.mxu0
  %v2653 = vadd.f32 %v2633, %v2652
  %2654 = vmatmul.f32.gmra.mxu0 %v2610
  %v2655 = vpop.f32.mrf.mxu0
  %v2656 = vadd.f32 %v2633, %v2655
  %2657 = vmatmul.f32.gmra.mxu0 %v2611
  %v2658 = vpop.f32.mrf.mxu0
  %v2659 = vadd.f32 %v2633, %v2658
  %2660 = vmatmul.f32.gmra.mxu0 %v2612
  %v2661 = vpop.f32.mrf.mxu0
  %v2662 = vadd.f32 %v2633, %v2661
  %2663 = vmatmul.f32.gmra.mxu0 %v2613
  %v2664 = vpop.f32.mrf.mxu0
  %v2665 = vadd.f32 %v2633, %v2664
  %2666 = vmatmul.f32.gmra.mxu0 %v2614
  %v2667 = vpop.f32.mrf.mxu0
  %v2668 = vadd.f32 %v2633, %v2667
  %2669 = vdwg.mxu0
  %2670 = vst [vmem:[%s10] sm:$0xff] %v2653
  %2671 = vst [vmem:[%s10 + $0x8] sm:$0xff] %v2656
  %2672 = vst [vmem:[%s10 + $0x10] sm:$0xff] %v2659
  %2673 = vst [vmem:[%s10 + $0x18] sm:$0xff] %v2662
  %2674 = vst [vmem:[%s10 + $0x20] sm:$0xff] %v2665
  %2675 = vst [vmem:[%s10 + $0x28] sm:$0xff] %v2668
  // Predicated region
  $region42: #{seq2seq_lstm_forward.1} parent=0 // pred_check
    _
  $region43: #{seq2seq_lstm_forward.1} parent=0 // pred_check_branch
    %2677 = sbr.rel (0) target = $region45
  $region44: #{seq2seq_lstm_forward.1} parent=0 // pred_region
    _
  $region45: #{seq2seq_lstm_forward.1} parent=0 // pred_fallthru
    _
  // Predicated region
  $region46: #{seq2seq_lstm_forward.1} parent=0 // pred_check
    _
  $region47: #{seq2seq_lstm_forward.1} parent=0 // pred_check_branch
    %2679 = sbr.rel (0) target = $region49
  $region48: #{seq2seq_lstm_forward.1} parent=0 // pred_region
    _
  $region49: #{seq2seq_lstm_forward.1} parent=0 // pred_fallthru
    _

</llo_original>
